<compile_context>
chip_gen: v7x
topology: tpu7x:2x2x1
jax: 0.10.0
libtpu: 0.0.40
codegen_flags: <defaults>
</compile_context>

<pallas_src>
import functools

import jax
import jax.numpy as jnp
from jax.experimental import pallas as pl
from jax.experimental.pallas import tpu as pltpu

EPS = 1e-5
LEAKY_SLOPE = 0.2  # get_act_layer('leaky') conventionally LeakyReLU(0.2)


def _round_up(x, m):
    return ((x + m - 1) // m) * m


def _vmem_limit_bytes():
    """~3/4 of physical VMEM, capped at 96 MiB (v7x -> 48 MiB, v5e/v6e -> 96 MiB)."""
    try:
        phys = pltpu.get_tpu_info().vmem_capacity_bytes
    except Exception:
        phys = 64 * 1024 * 1024
    return int(min(96 * 1024 * 1024, phys * 3 // 4))


# ---------------------------------------------------------------------------
# kernels
# ---------------------------------------------------------------------------
def _conv_gate(xp_ref, w_ref, b_ref, row0, *, kh, kw, wp, tr, cin, cp):
    """Shared conv + gating front-end for one row tile.

    Builds the (TR, KH*KW*Cin) im2col operand by lane-concatenating the KH*KW
    shifted row-slices of the flattened padded image (pure VMEM work, no HBM
    patch expansion) and runs ONE MXU matmul against the fused
    (KH*KW*Cin, 3*Cp) [conv | mask | shortcut] weight.
    Returns (gated, shortcut) as (TR, Cp) f32.
    """
    taps = [xp_ref[0, pl.ds(row0 + i * wp + j, tr), :]
            for i in range(kh) for j in range(kw)]
    lhs = taps[0] if len(taps) == 1 else jnp.concatenate(taps, axis=-1)
    acc = jnp.dot(lhs, w_ref[...], preferred_element_type=jnp.float32)
    acc = acc + b_ref[...]
    conv = acc[:, 0:cp]
    mask = acc[:, cp:2 * cp]
    sc = acc[:, 2 * cp:3 * cp]
    # sigmoid gate: exp + approx reciprocal both ride the EUP slot
    gate = pl.reciprocal(1.0 + jnp.exp(-mask), approx=True)
    return conv * gate, sc


def _col_mask(tr, wp, w_img):
    """Which rows of the flattened (H, Wp) grid are real (w < W) columns."""
    col = jax.lax.broadcasted_iota(jnp.int32, (tr, 1), 0) % wp
    return col < w_img


def gated_conv_fused_kernel(xp_ref, w_ref, b_ref, out_ref, *,
                            kh, kw, wp, w_img, tr, cin, cp, inv_n, slope):
    """Whole image per grid step: conv + gate + instance norm + act + shortcut."""
    gated, sc = _conv_gate(xp_ref, w_ref, b_ref, 0,
                           kh=kh, kw=kw, wp=wp, tr=tr, cin=cin, cp=cp)
    gv = jnp.where(_col_mask(tr, wp, w_img), gated, 0.0)
    # single-pass masked statistics: var = E[x^2] - mean^2
    mean = jnp.sum(gv, axis=0, keepdims=True) * inv_n
    var = jnp.sum(gv * gv, axis=0, keepdims=True) * inv_n - mean * mean
    normed = (gated - mean) * jax.lax.rsqrt(jnp.maximum(var, 0.0) + EPS)
    act = jnp.where(normed >= 0, normed, slope * normed)
    out_ref[0] = (act + sc).astype(out_ref.dtype)


def conv_gate_stats_kernel(xp_ref, w_ref, b_ref, gs_ref, stats_ref, *,
                           kh, kw, wp, w_img, tr, cin, cp):
    """Row-tiled pass 1: gated conv + shortcut per tile, plus per-image
    per-channel sum / sum-of-squares accumulated across the tile axis in a
    resident (revisited) output block."""
    t = pl.program_id(1)
    row0 = pl.multiple_of(t * tr, 8)
    gated, sc = _conv_gate(xp_ref, w_ref, b_ref, row0,
                           kh=kh, kw=kw, wp=wp, tr=tr, cin=cin, cp=cp)
    gv = jnp.where(_col_mask(tr, wp, w_img), gated, 0.0)
    upd = jnp.concatenate([jnp.sum(gv, axis=0, keepdims=True),
                           jnp.sum(gv * gv, axis=0, keepdims=True)], axis=0)

    @pl.when(t == 0)
    def _():
        stats_ref[0] = upd

    @pl.when(t > 0)
    def _():
        stats_ref[0] = stats_ref[0] + upd

    gs_ref[0] = jnp.concatenate([gated, sc], axis=-1).astype(gs_ref.dtype)


def norm_act_kernel(stats_ref, gs_ref, out_ref, *, cp, inv_n, slope):
    """Row-tiled pass 2: instance norm + LeakyReLU + shortcut add."""
    gs = gs_ref[0]
    gated = gs[:, 0:cp].astype(jnp.float32)
    sc = gs[:, cp:2 * cp].astype(jnp.float32)
    s = stats_ref[0]                               # (2, Cp): [sum, sum of sq]
    mean = s[0:1, :] * inv_n
    var = jnp.maximum(s[1:2, :] * inv_n - mean * mean, 0.0)
    normed = (gated - mean) * jax.lax.rsqrt(var + EPS)
    act = jnp.where(normed >= 0, normed, slope * normed)
    out_ref[0] = (act + sc).astype(out_ref.dtype)


# ---------------------------------------------------------------------------
# one-time parameter preparation (hoisted out of the forward)
# ---------------------------------------------------------------------------
def _spectral_normalize(w):
    """Divide a conv weight (Cout, Cin, KH, KW) by its largest singular value,
    mirroring torch.nn.utils.spectral_norm at convergence."""
    cout = w.shape[0]
    sigma = jnp.linalg.norm(w.reshape(cout, -1), ord=2)
    return w / sigma


def prepare_params(params, kernel_size, padding):
    """Spectral norm, conv/mask/shortcut fusion, lane-dense channel padding,
    (KH*KW*Cin, 3*Cp) single-matmul layout, bf16 cast — all done once."""
    kh = kw = kernel_size
    w_conv = _spectral_normalize(params["w_conv"])      # (Cout, Cin, KH, KW)
    w_mask = _spectral_normalize(params["w_mask"])
    cout, cin = w_conv.shape[0], w_conv.shape[1]
    cp = _round_up(cout, 128)

    def taps(wt):   # (Cout,Cin,KH,KW) -> (KH*KW*Cin, Cout), row = tap*Cin + c
        return jnp.transpose(wt, (2, 3, 1, 0)).reshape(kh * kw * cin, cout)

    wc, wm = taps(w_conv), taps(w_mask)

    if "w_sc" in params:                                # 1x1 conv shortcut
        wsc = params["w_sc"].reshape(cout, cin).T       # (Cin, Cout)
        bsc = params["b_sc"]
    else:                                               # identity shortcut
        wsc = jnp.eye(cin, dtype=jnp.float32)
        bsc = jnp.zeros((cout,), jnp.float32)
    ws = jnp.zeros((kh * kw * cin, cout), jnp.float32)
    ctr = padding * kw + padding                        # centre tap = unpadded pixel
    ws = ws.at[ctr * cin:(ctr + 1) * cin].set(wsc)

    def padc(m):
        return jnp.pad(m, ((0, 0), (0, cp - cout)))

    def padb(b):
        return jnp.pad(b, (0, cp - cout))

    w_fused = jnp.concatenate([padc(wc), padc(wm), padc(ws)],
                              axis=-1).astype(jnp.bfloat16)   # (KH*KW*Cin, 3*Cp)
    b_fused = jnp.concatenate(
        [padb(params["b_conv"]), padb(params["b_mask"]), padb(bsc)]
    ).reshape(1, 3 * cp).astype(jnp.float32)

    return {"w_fused": w_fused, "b_fused": b_fused,
            "cin": cin, "cout": cout, "cp": cp,
            "kernel_size": kernel_size, "padding": padding}


# ---------------------------------------------------------------------------
# forward wrapper
# ---------------------------------------------------------------------------
def _auto_rows_per_tile(h, wpd, cp, kk_cin, budget_bytes):
    """Largest image-row count per tile whose per-step footprint fits the
    budget; whole image if it fits (enables the fully fused kernel)."""
    # rough per-image-row footprint: f32 acc (3*Cp) + double-buffered bf16
    # gated|shortcut output (2*2*Cp) + bf16 im2col lhs (KH*KW*Cin)
    per_row = wpd * (3 * cp * 4 + 4 * cp * 2 + kk_cin * 2)
    if h * per_row <= budget_bytes:
        return h
    cands = [r for r in range(1, h) if h % r == 0 and (r * wpd) % 8 == 0]
    if not cands:
        # TODO(synk): halo row-tiling for shapes where no divisor of H gives an
        # 8-sublane-aligned (rows*Wp) tile; fall back to whole-image blocks.
        return h
    fitting = [r for r in cands if r * per_row <= budget_bytes]
    return max(fitting) if fitting else min(cands)


def gated_conv2d(x_nchw, prep, *, rows_per_tile=None,
                 tile_budget_bytes=8 * 1024 * 1024):
    """Forward of GatedConv2d. x: (N, Cin, H, W) -> (N, Cout, H, W)."""
    kernel_size, padding = prep["kernel_size"], prep["padding"]
    kh = kw = kernel_size
    n, cin, h, w = x_nchw.shape
    cout, cp = prep["cout"], prep["cp"]
    assert cin == prep["cin"]
    # the module's "norm(act) + shortcut" add requires a same-size conv
    assert 2 * padding == kernel_size - 1, "GatedConv2d needs 'same' conv (stride 1)"

    hp, wpd = h + 2 * padding, w + 2 * padding
    rout = h * wpd                              # conv evaluated on the (H, Wp) grid
    extra_rows = 1 if kernel_size > 1 else 0    # guard rows for the deepest tap
    rin = (hp + extra_rows) * wpd

    # ONE fused transpose + pad (guard rows folded in) + reshape + bf16 cast.
    xpflat = jnp.pad(
        jnp.transpose(x_nchw, (0, 2, 3, 1)),
        ((0, 0), (padding, padding + extra_rows), (padding, padding), (0, 0)),
    ).reshape(n, rin, cin).astype(jnp.bfloat16)

    kk_cin = kh * kw * cin
    if rows_per_tile is None:
        rows_per_tile = _auto_rows_per_tile(h, wpd, cp, kk_cin, tile_budget_bytes)
    assert h % rows_per_tile == 0, "rows_per_tile must divide H"
    t_tiles = h // rows_per_tile
    tr = rows_per_tile * wpd
    if t_tiles > 1:
        assert tr % 8 == 0, "(rows_per_tile * Wp) must be a multiple of 8"

    w_fused, b_fused = prep["w_fused"], prep["b_fused"]
    vmem_limit = _vmem_limit_bytes()
    inv_n = 1.0 / float(h * w)

    if t_tiles == 1:
        # Single fused kernel: no intermediate HBM round trip.
        kern = functools.partial(
            gated_conv_fused_kernel, kh=kh, kw=kw, wp=wpd, w_img=w, tr=rout,
            cin=cin, cp=cp, inv_n=inv_n, slope=LEAKY_SLOPE)
        out = pl.pallas_call(
            kern,
            out_shape=jax.ShapeDtypeStruct((n, rout, cp), jnp.bfloat16),
            grid_spec=pltpu.PrefetchScalarGridSpec(
                num_scalar_prefetch=0,
                grid=(n,),
                in_specs=[
                    pl.BlockSpec((1, rin, cin), lambda b: (b, 0, 0)),
                    pl.BlockSpec((kk_cin, 3 * cp), lambda b: (0, 0)),
                    pl.BlockSpec((1, 3 * cp), lambda b: (0, 0)),
                ],
                out_specs=pl.BlockSpec((1, rout, cp), lambda b: (b, 0, 0)),
            ),
            compiler_params=pltpu.CompilerParams(
                dimension_semantics=("parallel",),
                vmem_limit_bytes=vmem_limit),
        )(xpflat, w_fused, b_fused)
    else:
        # Pass 1: gated conv + shortcut per row tile, resident sum/sumsq stats.
        kern_a = functools.partial(
            conv_gate_stats_kernel, kh=kh, kw=kw, wp=wpd, w_img=w, tr=tr,
            cin=cin, cp=cp)
        gs, stats = pl.pallas_call(
            kern_a,
            out_shape=(jax.ShapeDtypeStruct((n, rout, 2 * cp), jnp.bfloat16),
                       jax.ShapeDtypeStruct((n, 2, cp), jnp.float32)),
            grid_spec=pltpu.PrefetchScalarGridSpec(
                num_scalar_prefetch=0,
                grid=(n, t_tiles),
                in_specs=[
                    pl.BlockSpec((1, rin, cin), lambda b, t: (b, 0, 0)),
                    pl.BlockSpec((kk_cin, 3 * cp), lambda b, t: (0, 0)),
                    pl.BlockSpec((1, 3 * cp), lambda b, t: (0, 0)),
                ],
                out_specs=(
                    pl.BlockSpec((1, tr, 2 * cp), lambda b, t: (b, t, 0)),
                    pl.BlockSpec((1, 2, cp), lambda b, t: (b, 0, 0)),
                ),
            ),
            compiler_params=pltpu.CompilerParams(
                dimension_semantics=("parallel", "arbitrary"),
                vmem_limit_bytes=vmem_limit),
        )(xpflat, w_fused, b_fused)

        # Pass 2: lightweight normalize + LeakyReLU + shortcut add per tile.
        kern_b = functools.partial(
            norm_act_kernel, cp=cp, inv_n=inv_n, slope=LEAKY_SLOPE)
        out = pl.pallas_call(
            kern_b,
            out_shape=jax.ShapeDtypeStruct((n, rout, cp), jnp.bfloat16),
            grid_spec=pltpu.PrefetchScalarGridSpec(
                num_scalar_prefetch=0,
                grid=(n, t_tiles),
                in_specs=[
                    pl.BlockSpec((1, 2, cp), lambda b, t: (b, 0, 0)),
                    pl.BlockSpec((1, tr, 2 * cp), lambda b, t: (b, t, 0)),
                ],
                out_specs=pl.BlockSpec((1, tr, cp), lambda b, t: (b, t, 0)),
            ),
            compiler_params=pltpu.CompilerParams(
                dimension_semantics=("parallel", "parallel"),
                vmem_limit_bytes=vmem_limit),
        )(stats, gs)

    # (N, H*Wp, Cp) -> drop padded columns / channels -> NCHW (+ caller dtype)
    y = out.reshape(n, h, wpd, cp)[:, :, :w, :cout]
    return jnp.transpose(y, (0, 3, 1, 2)).astype(x_nchw.dtype)


# ---------------------------------------------------------------------------
# pure-JAX reference (validation only) and demo
# ---------------------------------------------------------------------------
def reference_forward(x, params, kernel_size, padding):
    wc = _spectral_normalize(params["w_conv"])
    wm = _spectral_normalize(params["w_mask"])

    def conv(inp, wt, b, pad):
        y = jax.lax.conv_general_dilated(
            inp, wt, window_strides=(1, 1), padding=[(pad, pad), (pad, pad)],
            dimension_numbers=("NCHW", "OIHW", "NCHW"))
        return y + b[None, :, None, None]

    c = conv(x, wc, params["b_conv"], padding)
    m = conv(x, wm, params["b_mask"], padding)
    sc = conv(x, params["w_sc"], params["b_sc"], 0) if "w_sc" in params else x
    g = c * jax.nn.sigmoid(m)
    mean = g.mean(axis=(2, 3), keepdims=True)
    var = g.var(axis=(2, 3), keepdims=True)
    gn = (g - mean) * jax.lax.rsqrt(var + EPS)
    act = jnp.where(gn >= 0, gn, LEAKY_SLOPE * gn)
    return act + sc


def init_params(key, in_channels, out_channels, kernel_size):
    ks = jax.random.split(key, 6)
    s = 0.1
    return {
        "w_conv": s * jax.random.normal(ks[0], (out_channels, in_channels, kernel_size, kernel_size), jnp.float32),
        "b_conv": s * jax.random.normal(ks[1], (out_channels,), jnp.float32),
        "w_mask": s * jax.random.normal(ks[2], (out_channels, in_channels, kernel_size, kernel_size), jnp.float32),
        "b_mask": s * jax.random.normal(ks[3], (out_channels,), jnp.float32),
        "w_sc": s * jax.random.normal(ks[4], (out_channels, in_channels, 1, 1), jnp.float32),
        "b_sc": s * jax.random.normal(ks[5], (out_channels,), jnp.float32),
    }


if __name__ == "__main__":
    key = jax.random.PRNGKey(0)
    k_x, k_p = jax.random.split(key)

    N, Cin, H, W = 2, 4, 16, 16
    Cout, K, PAD = 8, 3, 1   # in != out -> shortcut is a 1x1 conv

    x = jax.random.normal(k_x, (N, Cin, H, W), jnp.float32)
    params = init_params(k_p, Cin, Cout, K)
    prep = prepare_params(params, kernel_size=K, padding=PAD)   # hoisted, once

    ref = reference_forward(x, params, K, PAD)

    # path 1: auto tiling -> whole image fits the budget -> single fused kernel
    y_fused = jax.block_until_ready(gated_conv2d(x, prep))
    # path 2: forced small row tiles to exercise the tiled two-pass pipeline
    y_tiled = jax.block_until_ready(gated_conv2d(x, prep, rows_per_tile=4))

    for y in (y_fused, y_tiled):
        assert y.shape == (N, Cout, H, W), y.shape
        assert bool(jnp.all(jnp.isfinite(y)))
        err = float(jnp.max(jnp.abs(y - ref)))
        assert err < 0.15, f"max abs err vs reference = {err}"
    print("KERNEL_OK")
</pallas_src>

<mosaic_0001>
module attributes {stable_mosaic.version = 11 : i64} {
  func.func @gated_conv_fused_kernel(%arg0: i32, %arg1: memref<1x342x4xbf16, #tpu.memory_space<vmem>>, %arg2: memref<36x384xbf16, #tpu.memory_space<vmem>>, %arg3: memref<1x384xf32, #tpu.memory_space<vmem>>, %arg4: memref<1x288x128xbf16, #tpu.memory_space<vmem>>) attributes {dimension_semantics = [#tpu.dimension_semantics<parallel>], iteration_bounds = array<i64: 2>, scalar_prefetch = 0 : i64, scratch_operands = 0 : i64, tpu.core_type = #tpu.core_type<tc>, window_params = [{transform_indices = @transform_0, window_bounds = array<i64: 1, 342, 4>}, {pipeline_mode = #tpu.pipeline_mode<synchronous>, transform_indices = @transform_1, window_bounds = array<i64: 36, 384>}, {pipeline_mode = #tpu.pipeline_mode<synchronous>, transform_indices = @transform_2, window_bounds = array<i64: 1, 384>}, {transform_indices = @transform_3, window_bounds = array<i64: 1, 288, 128>}]} {
    %c0 = arith.constant 0 : index
    %c0_0 = arith.constant 0 : index
    %c0_1 = arith.constant 0 : index
    %0 = vector.load %arg1[%c0, %c0_0, %c0_1] : memref<1x342x4xbf16, #tpu.memory_space<vmem>>, vector<1x288x4xbf16>
    %1 = vector.shape_cast %0 : vector<1x288x4xbf16> to vector<288x4xbf16>
    %c0_2 = arith.constant 0 : index
    %c1 = arith.constant 1 : index
    %c0_3 = arith.constant 0 : index
    %2 = vector.load %arg1[%c0_2, %c1, %c0_3] : memref<1x342x4xbf16, #tpu.memory_space<vmem>>, vector<1x288x4xbf16>
    %3 = vector.shape_cast %2 : vector<1x288x4xbf16> to vector<288x4xbf16>
    %c0_4 = arith.constant 0 : index
    %c2 = arith.constant 2 : index
    %c0_5 = arith.constant 0 : index
    %4 = vector.load %arg1[%c0_4, %c2, %c0_5] : memref<1x342x4xbf16, #tpu.memory_space<vmem>>, vector<1x288x4xbf16>
    %5 = vector.shape_cast %4 : vector<1x288x4xbf16> to vector<288x4xbf16>
    %c0_6 = arith.constant 0 : index
    %c18 = arith.constant 18 : index
    %c0_7 = arith.constant 0 : index
    %6 = vector.load %arg1[%c0_6, %c18, %c0_7] : memref<1x342x4xbf16, #tpu.memory_space<vmem>>, vector<1x288x4xbf16>
    %7 = vector.shape_cast %6 : vector<1x288x4xbf16> to vector<288x4xbf16>
    %c0_8 = arith.constant 0 : index
    %c19 = arith.constant 19 : index
    %c0_9 = arith.constant 0 : index
    %8 = vector.load %arg1[%c0_8, %c19, %c0_9] : memref<1x342x4xbf16, #tpu.memory_space<vmem>>, vector<1x288x4xbf16>
    %9 = vector.shape_cast %8 : vector<1x288x4xbf16> to vector<288x4xbf16>
    %c0_10 = arith.constant 0 : index
    %c20 = arith.constant 20 : index
    %c0_11 = arith.constant 0 : index
    %10 = vector.load %arg1[%c0_10, %c20, %c0_11] : memref<1x342x4xbf16, #tpu.memory_space<vmem>>, vector<1x288x4xbf16>
    %11 = vector.shape_cast %10 : vector<1x288x4xbf16> to vector<288x4xbf16>
    %c0_12 = arith.constant 0 : index
    %c36 = arith.constant 36 : index
    %c0_13 = arith.constant 0 : index
    %12 = vector.load %arg1[%c0_12, %c36, %c0_13] : memref<1x342x4xbf16, #tpu.memory_space<vmem>>, vector<1x288x4xbf16>
    %13 = vector.shape_cast %12 : vector<1x288x4xbf16> to vector<288x4xbf16>
    %c0_14 = arith.constant 0 : index
    %c37 = arith.constant 37 : index
    %c0_15 = arith.constant 0 : index
    %14 = vector.load %arg1[%c0_14, %c37, %c0_15] : memref<1x342x4xbf16, #tpu.memory_space<vmem>>, vector<1x288x4xbf16>
    %15 = vector.shape_cast %14 : vector<1x288x4xbf16> to vector<288x4xbf16>
    %c0_16 = arith.constant 0 : index
    %c38 = arith.constant 38 : index
    %c0_17 = arith.constant 0 : index
    %16 = vector.load %arg1[%c0_16, %c38, %c0_17] : memref<1x342x4xbf16, #tpu.memory_space<vmem>>, vector<1x288x4xbf16>
    %17 = vector.shape_cast %16 : vector<1x288x4xbf16> to vector<288x4xbf16>
    %18 = tpu.concatenate %1, %3, %5, %7, %9, %11, %13, %15, %17 in 1 : vector<288x4xbf16>, vector<288x4xbf16>, vector<288x4xbf16>, vector<288x4xbf16>, vector<288x4xbf16>, vector<288x4xbf16>, vector<288x4xbf16>, vector<288x4xbf16>, vector<288x4xbf16> -> vector<288x36xbf16>
    %c0_18 = arith.constant 0 : index
    %c0_19 = arith.constant 0 : index
    %19 = vector.load %arg2[%c0_18, %c0_19] : memref<36x384xbf16, #tpu.memory_space<vmem>>, vector<36x384xbf16>
    %cst = arith.constant dense<0.000000e+00> : vector<288x384xf32>
    %20 = tpu.matmul %18, %19, %cst {dimension_numbers = #tpu.dot_dimension_numbers<[1], [0], [0], [1], [0, 0, 1, 1], [], []>} : vector<288x36xbf16>, vector<36x384xbf16>, vector<288x384xf32> -> vector<288x384xf32>
    %c0_20 = arith.constant 0 : index
    %c0_21 = arith.constant 0 : index
    %21 = vector.load %arg3[%c0_20, %c0_21] : memref<1x384xf32, #tpu.memory_space<vmem>>, vector<1x384xf32>
    %22 = vector.broadcast %21 : vector<1x384xf32> to vector<288x384xf32>
    %23 = arith.addf %20, %22 : vector<288x384xf32>
    %24 = vector.extract_strided_slice %23 {offsets = [0, 0], sizes = [288, 128], strides = [1, 1]} : vector<288x384xf32> to vector<288x128xf32>
    %25 = vector.extract_strided_slice %23 {offsets = [0, 128], sizes = [288, 128], strides = [1, 1]} : vector<288x384xf32> to vector<288x128xf32>
    %26 = vector.extract_strided_slice %23 {offsets = [0, 256], sizes = [288, 128], strides = [1, 1]} : vector<288x384xf32> to vector<288x128xf32>
    %cst_22 = arith.constant 0.000000e+00 : f32
    %27 = vector.broadcast %cst_22 : f32 to vector<288x128xf32>
    %28 = arith.subf %27, %25 : vector<288x128xf32>
    %29 = math.exp %28 : vector<288x128xf32>
    %cst_23 = arith.constant 1.000000e+00 : f32
    %30 = vector.broadcast %cst_23 : f32 to vector<288x128xf32>
    %31 = arith.addf %30, %29 : vector<288x128xf32>
    %32 = tpu.reciprocal %31 {approx = true} : vector<288x128xf32> -> vector<288x128xf32>
    %33 = arith.mulf %24, %32 : vector<288x128xf32>
    %34 = tpu.iota {dimensions = array<i32: 0>} : vector<288x1xi32>
    %c18_i32 = arith.constant 18 : i32
    %c0_i32 = arith.constant 0 : i32
    %35 = arith.cmpi eq, %c18_i32, %c0_i32 : i32
    %c1_i32 = arith.constant 1 : i32
    %36 = arith.select %35, %c1_i32, %c18_i32 : i32
    %37 = vector.broadcast %36 : i32 to vector<288x1xi32>
    %38 = arith.remsi %34, %37 : vector<288x1xi32>
    %c0_i32_24 = arith.constant 0 : i32
    %39 = vector.broadcast %c0_i32_24 : i32 to vector<288x1xi32>
    %40 = arith.cmpi ne, %38, %39 : vector<288x1xi32>
    %c0_i32_25 = arith.constant 0 : i32
    %41 = vector.broadcast %c0_i32_25 : i32 to vector<288x1xi32>
    %42 = arith.cmpi slt, %38, %41 : vector<288x1xi32>
    %c0_i32_26 = arith.constant 0 : i32
    %43 = arith.cmpi slt, %36, %c0_i32_26 : i32
    %44 = vector.broadcast %43 : i1 to vector<288x1xi1>
    %45 = vector.broadcast %44 : vector<288x1xi1> to vector<288x1xi1>
    %46 = arith.xori %42, %45 : vector<288x1xi1>
    %47 = arith.andi %46, %40 : vector<288x1xi1>
    %48 = vector.broadcast %36 : i32 to vector<288x1xi32>
    %49 = arith.addi %38, %48 : vector<288x1xi32>
    %50 = arith.select %47, %49, %38 : vector<288x1xi1>, vector<288x1xi32>
    %c16_i32 = arith.constant 16 : i32
    %51 = vector.broadcast %c16_i32 : i32 to vector<288x1xi32>
    %52 = arith.cmpi slt, %50, %51 : vector<288x1xi32>
    %cst_27 = arith.constant 0.000000e+00 : f32
    %53 = vector.shape_cast %52 : vector<288x1xi1> to vector<288x1xi1>
    %54 = vector.broadcast %53 : vector<288x1xi1> to vector<288x128xi1>
    %55 = vector.broadcast %cst_27 : f32 to vector<288x128xf32>
    %56 = arith.select %54, %33, %55 : vector<288x128xi1>, vector<288x128xf32>
    %cst_28 = arith.constant dense<0.000000e+00> : vector<128xf32>
    %57 = vector.multi_reduction <add>, %56, %cst_28 [0] : vector<288x128xf32> to vector<128xf32>
    %58 = vector.shape_cast %57 : vector<128xf32> to vector<1x128xf32>
    %cst_29 = arith.constant 3.906250e-03 : f32
    %59 = vector.broadcast %cst_29 : f32 to vector<1x128xf32>
    %60 = arith.mulf %58, %59 : vector<1x128xf32>
    %61 = arith.mulf %56, %56 : vector<288x128xf32>
    %cst_30 = arith.constant dense<0.000000e+00> : vector<128xf32>
    %62 = vector.multi_reduction <add>, %61, %cst_30 [0] : vector<288x128xf32> to vector<128xf32>
    %63 = vector.shape_cast %62 : vector<128xf32> to vector<1x128xf32>
    %cst_31 = arith.constant 3.906250e-03 : f32
    %64 = vector.broadcast %cst_31 : f32 to vector<1x128xf32>
    %65 = arith.mulf %63, %64 : vector<1x128xf32>
    %66 = arith.mulf %60, %60 : vector<1x128xf32>
    %67 = arith.subf %65, %66 : vector<1x128xf32>
    %68 = vector.broadcast %60 : vector<1x128xf32> to vector<288x128xf32>
    %69 = arith.subf %33, %68 : vector<288x128xf32>
    %cst_32 = arith.constant 0.000000e+00 : f32
    %70 = vector.broadcast %cst_32 : f32 to vector<1x128xf32>
    %71 = arith.maximumf %67, %70 : vector<1x128xf32>
    %cst_33 = arith.constant 9.99999974E-6 : f32
    %72 = vector.broadcast %cst_33 : f32 to vector<1x128xf32>
    %73 = arith.addf %71, %72 : vector<1x128xf32>
    %74 = math.rsqrt %73 : vector<1x128xf32>
    %75 = vector.broadcast %74 : vector<1x128xf32> to vector<288x128xf32>
    %76 = arith.mulf %69, %75 : vector<288x128xf32>
    %cst_34 = arith.constant 0.000000e+00 : f32
    %77 = vector.broadcast %cst_34 : f32 to vector<288x128xf32>
    %78 = arith.cmpf oge, %76, %77 : vector<288x128xf32>
    %cst_35 = arith.constant 2.000000e-01 : f32
    %79 = vector.broadcast %cst_35 : f32 to vector<288x128xf32>
    %80 = arith.mulf %79, %76 : vector<288x128xf32>
    %81 = arith.select %78, %76, %80 : vector<288x128xi1>, vector<288x128xf32>
    %82 = arith.addf %81, %26 : vector<288x128xf32>
    %83 = arith.truncf %82 : vector<288x128xf32> to vector<288x128xbf16>
    %c0_36 = arith.constant 0 : index
    %c0_37 = arith.constant 0 : index
    %c0_38 = arith.constant 0 : index
    %84 = vector.load %arg4[%c0_36, %c0_37, %c0_38] : memref<1x288x128xbf16, #tpu.memory_space<vmem>>, vector<1x288x128xbf16>
    %85 = vector.shape_cast %84 : vector<1x288x128xbf16> to vector<288x128xbf16>
    %86 = vector.shape_cast %83 : vector<288x128xbf16> to vector<1x288x128xbf16>
    tpu.vector_store %arg4[%c0_36, %c0_37, %c0_38], %86 {strides = array<i32>} : memref<1x288x128xbf16, #tpu.memory_space<vmem>>, vector<1x288x128xbf16>,
    return
  }
  func.func @transform_0(%arg0: i32) -> (i32, i32, i32) {
    %c0_i32 = arith.constant 0 : i32
    %c0_i32_0 = arith.constant 0 : i32
    %c0_i32_1 = arith.constant 0 : i32
    return %arg0, %c0_i32, %c0_i32_0 : i32, i32, i32
  }
  func.func @transform_1(%arg0: i32) -> (i32, i32) {
    %c0_i32 = arith.constant 0 : i32
    %c0_i32_0 = arith.constant 0 : i32
    %c0_i32_1 = arith.constant 0 : i32
    return %c0_i32, %c0_i32_0 : i32, i32
  }
  func.func @transform_2(%arg0: i32) -> (i32, i32) {
    %c0_i32 = arith.constant 0 : i32
    %c0_i32_0 = arith.constant 0 : i32
    %c0_i32_1 = arith.constant 0 : i32
    return %c0_i32, %c0_i32_0 : i32, i32
  }
  func.func @transform_3(%arg0: i32) -> (i32, i32, i32) {
    %c0_i32 = arith.constant 0 : i32
    %c0_i32_0 = arith.constant 0 : i32
    %c0_i32_1 = arith.constant 0 : i32
    return %arg0, %c0_i32, %c0_i32_0 : i32, i32, i32
  }
}

</mosaic_0001>

<llo_original>
// kernel: tpu_custom_call.1
$region0: #{tpu_custom_call.1}
  #allocation0 [shape = 'u32[]', space=smem, size = 0x4, offset = 0x4, fixed_abs, tag = 'smem constant byte address 0x4 - core index']
  #allocation1 [shape = 'u32[144,128]{1,0:T(1,128)}', space=vmem, size = 0x12000, scoped, tag = 'internal scratch']
  %s0 = inlined_call_operand.vmem [shape: bf16[2,342,4], index: 0, kind: input, shape index: {}]
  %s1 = inlined_call_operand.vmem [shape: bf16[36,384], index: 1, kind: input, shape index: {}]
  %s2 = inlined_call_operand.vmem [shape: f32[1,384], index: 2, kind: input, shape index: {}]
  %s3 = inlined_call_operand.hbm [shape: bf16[2,288,128], index: 3, kind: output, shape index: {}]
  %s4 = sld [smem:[#allocation0]]
  $region45: #{tpu_custom_call.1} parent=0
    _
  %s6 = ssub.s32 1, %s4
  %s7 = scalar_select 0, %s6, %s4
  $region1: #{tpu_custom_call.1} parent=0
    #allocation2 [shape = 'u8[147456]{0}', space=vmem, size = 0x24000, scoped, tag = 'output window, operand 0']
    #allocation3 [shape = 's32[2]{0}', space=sflag, size = 0x8, scoped, tag = 'scoped memory for tpu_custom_call.1']
    %8 = vsyncpa [#allocation3], 0
    %s9 = scalar_lea.sflag [#allocation3], 1
    %10 = vsyncpa %s9, 0
    loop: start=0, step=1, limit=4
    $region2: #{tpu_custom_call.1} parent=1 // loop_pre_header
      _
    $region3: #{tpu_custom_call.1} parent=1 // loop_header
      %s12 = sphi 0, %s16
      %p13 = scmp.ge.s32.totalorder %s12, 4
      %s22 = sphi 0, %s24
      %s25 = sphi 0, %s22
      %s26 = sphi 0, %s25
      %s42 = sphi 0, %s26
      %s46 = sphi 0, %s46
      %s48 = sphi 0, %s46
      %s49 = sphi 0, %s48
      %s63 = sphi 0, %s49
      %s67 = sphi 0, %s67
      %s69 = sphi 0, %s67
      %s70 = sphi 0, %s69
      %s84 = sphi 0, %s70
      %s90 = sphi 0, %s92
      %s93 = sphi 0, %s90
      %s94 = sphi 0, %s93
      %s110 = sphi 0, %s94
    $region4: #{tpu_custom_call.1} parent=1 // loop_header_branch
      %15 = sbr.rel (%p13) target = $region8
    $region5: #{tpu_custom_call.1} parent=1 // loop_body
      %s17 = ssub.s32 %s12, 1
      %s18 = ssub.s32 %s12, 2
      %s19 = sadd.s32 %s12, 1
      %s20 = ssub.s32 %s12, %s19
      %p21 = scmp.eq.s32.totalorder %s20, 0
      %s23 = sadd.s32 %s22, 1
      %s24 = scalar_select %p21, %s22, %s23
      %p27 = pneg %p21
      %p28 = scmp.eq.s32.totalorder %s12, 1
      %p29 = por %p27, %p28
      %p30 = scmp.ne.s32.totalorder %s22, %s25
      %p31 = scmp.eq.s32.totalorder %s12, 0
      %p32 = por %p30, %p31
      %p33 = scmp.ne.s32.totalorder %s22, %s25
      %p34 = scmp.eq.s32.totalorder %s17, 1
      %p35 = por %p33, %p34
      %p36 = scmp.ne.s32.totalorder %s25, %s26
      %p37 = scmp.eq.s32.totalorder %s17, 0
      %p38 = por %p36, %p37
      %p39 = scmp.ne.s32.totalorder %s25, %s26
      %p40 = scmp.eq.s32.totalorder %s18, 1
      %p41 = por %p39, %p40
      %p43 = scmp.ne.s32.totalorder %s26, %s42
      %p44 = scmp.eq.s32.totalorder %s18, 0
      %p45 = por %p43, %p44
      %s47 = sadd.s32 %s46, 1
      %p50 = scmp.eq.s32.totalorder %s12, 1
      %p51 = scmp.ne.s32.totalorder %s46, %s48
      %p52 = scmp.eq.s32.totalorder %s12, 0
      %p53 = por %p51, %p52
      %p54 = scmp.ne.s32.totalorder %s46, %s48
      %p55 = scmp.eq.s32.totalorder %s17, 1
      %p56 = por %p54, %p55
      %p57 = scmp.ne.s32.totalorder %s48, %s49
      %p58 = scmp.eq.s32.totalorder %s17, 0
      %p59 = por %p57, %p58
      %p60 = scmp.ne.s32.totalorder %s48, %s49
      %p61 = scmp.eq.s32.totalorder %s18, 1
      %p62 = por %p60, %p61
      %p64 = scmp.ne.s32.totalorder %s49, %s63
      %p65 = scmp.eq.s32.totalorder %s18, 0
      %p66 = por %p64, %p65
      %s68 = sadd.s32 %s67, 1
      %p71 = scmp.eq.s32.totalorder %s12, 1
      %p72 = scmp.ne.s32.totalorder %s67, %s69
      %p73 = scmp.eq.s32.totalorder %s12, 0
      %p74 = por %p72, %p73
      %p75 = scmp.ne.s32.totalorder %s67, %s69
      %p76 = scmp.eq.s32.totalorder %s17, 1
      %p77 = por %p75, %p76
      %p78 = scmp.ne.s32.totalorder %s69, %s70
      %p79 = scmp.eq.s32.totalorder %s17, 0
      %p80 = por %p78, %p79
      %p81 = scmp.ne.s32.totalorder %s69, %s70
      %p82 = scmp.eq.s32.totalorder %s18, 1
      %p83 = por %p81, %p82
      %p85 = scmp.ne.s32.totalorder %s70, %s84
      %p86 = scmp.eq.s32.totalorder %s18, 0
      %p87 = por %p85, %p86
      %s88 = ssub.s32 %s12, %s19
      %p89 = scmp.eq.s32.totalorder %s88, 0
      %s91 = sadd.s32 %s90, 1
      %s92 = scalar_select %p89, %s90, %s91
      %p95 = pneg %p89
      %p96 = scmp.eq.s32.totalorder %s12, 1
      %p97 = por %p95, %p96
      %p98 = scmp.ne.s32.totalorder %s90, %s93
      %p99 = scmp.eq.s32.totalorder %s12, 0
      %p100 = por %p98, %p99
      %p101 = scmp.ne.s32.totalorder %s90, %s93
      %p102 = scmp.eq.s32.totalorder %s17, 1
      %p103 = por %p101, %p102
      %p104 = scmp.ne.s32.totalorder %s93, %s94
      %p105 = scmp.eq.s32.totalorder %s17, 0
      %p106 = por %p104, %p105
      %p107 = scmp.ne.s32.totalorder %s93, %s94
      %p108 = scmp.eq.s32.totalorder %s18, 1
      %p109 = por %p107, %p108
      %p111 = scmp.ne.s32.totalorder %s94, %s110
      %p112 = scmp.eq.s32.totalorder %s18, 0
      %p113 = por %p111, %p112
      %p114 = scmp.le.s32.totalorder 1, %s12
      %p115 = scmp.lt.s32.totalorder %s12, 3
      %p116 = pnand %p114, %p115
      %p117 = pneg %p116
      // Predicated region
      $region9: #{tpu_custom_call.1} parent=5 // pred_check
        _
      $region10: #{tpu_custom_call.1} parent=5 // pred_check_branch
        %119 = sbr.rel (%p116) target = $region12
      $region11: #{tpu_custom_call.1} parent=5 // pred_region
        %s120 = ssub.s32 %s12, 1
        // Predicated region
        $region13: #{tpu_custom_call.1} parent=11 // pred_check
          %p121 = pneg %p59
        $region14: #{tpu_custom_call.1} parent=11 // pred_check_branch
          %123 = sbr.rel (%p121) target = $region16
        $region15: #{tpu_custom_call.1} parent=11 // pred_region
          _
        $region16: #{tpu_custom_call.1} parent=11 // pred_fallthru
          _
        // Predicated region
        $region17: #{tpu_custom_call.1} parent=11 // pred_check
          %p124 = pneg %p80
        $region18: #{tpu_custom_call.1} parent=11 // pred_check_branch
          %126 = sbr.rel (%p124) target = $region20
        $region19: #{tpu_custom_call.1} parent=11 // pred_region
          _
        $region20: #{tpu_custom_call.1} parent=11 // pred_fallthru
          _
      $region12: #{tpu_custom_call.1} parent=5 // pred_fallthru
        _
      %p127 = scmp.lt.s32.totalorder %s12, 2
      // Predicated region
      $region21: #{tpu_custom_call.1} parent=5 // pred_check
        %p128 = pneg %p127
      $region22: #{tpu_custom_call.1} parent=5 // pred_check_branch
        %130 = sbr.rel (%p128) target = $region24
      $region23: #{tpu_custom_call.1} parent=5 // pred_region
        // Predicated region
        $region25: #{tpu_custom_call.1} parent=23 // pred_check
          %p131 = pneg %p32
        $region26: #{tpu_custom_call.1} parent=23 // pred_check_branch
          %133 = sbr.rel (%p131) target = $region28
        $region27: #{tpu_custom_call.1} parent=23 // pred_region
          %p134 = scmp.lt.s32.totalorder %s12, 1
          %s135 = scalar_select %p134, %s12, 1
          %s136 = smul.addr %s135, 43
          %s137 = smul.addr %s136, 4
          %s138 = scalar_lea.vmem %s0, %s137
        $region28: #{tpu_custom_call.1} parent=23 // pred_fallthru
          _
      $region24: #{tpu_custom_call.1} parent=5 // pred_fallthru
        _
      %p139 = scmp.le.s32.totalorder 1, %s12
      %p140 = scmp.lt.s32.totalorder %s12, 3
      %p141 = pnand %p139, %p140
      %p142 = pneg %p141
      // Predicated region
      $region29: #{tpu_custom_call.1} parent=5 // pred_check
        _
      $region30: #{tpu_custom_call.1} parent=5 // pred_check_branch
        %144 = sbr.rel (%p141) target = $region32
      $region31: #{tpu_custom_call.1} parent=5 // pred_region
        %s145 = ssub.s32 %s12, 1
        %p146 = scmp.lt.s32.totalorder %s17, 1
        %s147 = scalar_select %p146, %s17, 1
        %s148 = smul.addr %s147, 43
        %s149 = smul.addr %s148, 4
        %s150 = scalar_lea.vmem %s0, %s149
        %p151 = pneg %p38
        %p152 = pneg %p35
        %p153 = pneg %p59
        %p154 = pneg %p56
        %p155 = pneg %p80
        %p156 = pneg %p77
        %p157 = pneg %p106
        %p158 = pneg %p103
        %s159 = sand.u32 %s93, 1
        %s160 = scalar_lea.sflag [#allocation3], %s159
        %s161 = sand.u32 %s93, 1
        %s162 = smul.addr %s161, 144
        %s163 = scalar_lea.vmem [#allocation2], %s162
        %p164 = scmp.lt.s32.totalorder %s17, 1
        %s165 = scalar_select %p164, %s17, 1
        %s166 = smul.addr %s165, 43
        %s167 = smul.addr %s166, 4
        %s168 = scalar_lea.vmem %s0, %s167
        %v170 = vld [vmem:[%s168] sm:$0xf]
        %v171 = vld [vmem:[%s168 + $0x4] sm:$0xf]
        %v172 = vld [vmem:[%s168 + $0x8] sm:$0xf]
        %v173 = vld [vmem:[%s168 + $0xc] sm:$0xf]
        %v174 = vld [vmem:[%s168 + $0x10] sm:$0xf]
        %v175 = vld [vmem:[%s168 + $0x14] sm:$0xf]
        %v176 = vld [vmem:[%s168 + $0x18] sm:$0xf]
        %v177 = vld [vmem:[%s168 + $0x1c] sm:$0xf]
        %v178 = vld [vmem:[%s168 + $0x20] sm:$0xf]
        %v179 = vld [vmem:[%s168 + $0x24] sm:$0xf]
        %v180 = vld [vmem:[%s168 + $0x28] sm:$0xf]
        %v181 = vld [vmem:[%s168 + $0x2c] sm:$0xf]
        %v182 = vld [vmem:[%s168 + $0x30] sm:$0xf]
        %v183 = vld [vmem:[%s168 + $0x34] sm:$0xf]
        %v184 = vld [vmem:[%s168 + $0x38] sm:$0xf]
        %v185 = vld [vmem:[%s168 + $0x3c] sm:$0xf]
        %v186 = vld [vmem:[%s168 + $0x40] sm:$0xf]
        %v187 = vld [vmem:[%s168 + $0x44] sm:$0xf]
        %v188 = vld [vmem:[%s168 + $0x48] sm:$0xf]
        %v189 = vld [vmem:[%s168 + $0x4c] sm:$0xf]
        %v190 = vld [vmem:[%s168 + $0x50] sm:$0xf]
        %v191 = vld [vmem:[%s168 + $0x54] sm:$0xf]
        %v192 = vld [vmem:[%s168 + $0x58] sm:$0xf]
        %v193 = vld [vmem:[%s168 + $0x5c] sm:$0xf]
        %v194 = vld [vmem:[%s168 + $0x60] sm:$0xf]
        %v195 = vld [vmem:[%s168 + $0x64] sm:$0xf]
        %v196 = vld [vmem:[%s168 + $0x68] sm:$0xf]
        %v197 = vld [vmem:[%s168 + $0x6c] sm:$0xf]
        %v198 = vld [vmem:[%s168 + $0x70] sm:$0xf]
        %v199 = vld [vmem:[%s168 + $0x74] sm:$0xf]
        %v200 = vld [vmem:[%s168 + $0x78] sm:$0xf]
        %v201 = vld [vmem:[%s168 + $0x7c] sm:$0xf]
        %v202 = vld [vmem:[%s168 + $0x80] sm:$0xf]
        %v203 = vld [vmem:[%s168 + $0x84] sm:$0xf]
        %v204 = vld [vmem:[%s168 + $0x88] sm:$0xf]
        %v205 = vld [vmem:[%s168 + $0x8c] sm:$0xf]
        %v206 = vld [vmem:[%s168 + $0x90] sm:$0x1]
        %v207 = vld [vmem:[%s168] sm:$0xe]
        %v208 = vld [vmem:[%s168 + $0x8] sm:$0xe]
        %v209 = vld [vmem:[%s168 + $0x90] sm:$0xf]
        %v210 = vld [vmem:[%s168 + $0x94] sm:$0xf]
        %v211 = vld [vmem:[%s168 + $0x98] sm:$0x1]
        %v212 = vld [vmem:[%s168 + $0x98] sm:$0x3]
        %v213 = vld [vmem:[%s168 + $0x8] sm:$0xc]
        %v214 = vld [vmem:[%s168 + $0x10] sm:$0xc]
        %v215 = vld [vmem:[%s168 + $0x98] sm:$0xf]
        %v216 = vld [vmem:[%s168 + $0x9c] sm:$0xf]
        %v217 = vld [vmem:[%s168 + $0xa0] sm:$0x3]
        %v218 = vld [vmem:[%s168 + $0xa0] sm:$0x7]
        %v219 = vld [vmem:[%s168 + $0x10] sm:$0x8]
        %v256 = vunpack.c.l.b16 %v170
        %v257 = vunpack.c.l.b16 %v171
        %v258 = vunpack.c.l.b16 %v172
        %v259 = vunpack.c.l.b16 %v173
        %v260 = vunpack.c.l.b16 %v174
        %v261 = vunpack.c.l.b16 %v175
        %v262 = vunpack.c.l.b16 %v176
        %v263 = vunpack.c.l.b16 %v177
        %v264 = vunpack.c.l.b16 %v178
        %v265 = vunpack.c.l.b16 %v179
        %v266 = vunpack.c.l.b16 %v180
        %v267 = vunpack.c.l.b16 %v181
        %v268 = vunpack.c.l.b16 %v182
        %v269 = vunpack.c.l.b16 %v183
        %v270 = vunpack.c.l.b16 %v184
        %v271 = vunpack.c.l.b16 %v185
        %v272 = vunpack.c.l.b16 %v186
        %v273 = vunpack.c.l.b16 %v187
        %v274 = vunpack.c.l.b16 %v188
        %v275 = vunpack.c.l.b16 %v189
        %v276 = vunpack.c.l.b16 %v190
        %v277 = vunpack.c.l.b16 %v191
        %v278 = vunpack.c.l.b16 %v192
        %v279 = vunpack.c.l.b16 %v193
        %v280 = vunpack.c.l.b16 %v194
        %v281 = vunpack.c.l.b16 %v195
        %v282 = vunpack.c.l.b16 %v196
        %v283 = vunpack.c.l.b16 %v197
        %v284 = vunpack.c.l.b16 %v198
        %v285 = vunpack.c.l.b16 %v199
        %v286 = vunpack.c.l.b16 %v200
        %v287 = vunpack.c.l.b16 %v201
        %v288 = vunpack.c.l.b16 %v202
        %v289 = vunpack.c.l.b16 %v203
        %v290 = vunpack.c.l.b16 %v204
        %v291 = vunpack.c.l.b16 %v205
        %v292 = vpack.c.b16 %v257, %v256
        %v293 = vpack.c.b16 %v259, %v258
        %v294 = vpack.c.b16 %v261, %v260
        %v295 = vpack.c.b16 %v263, %v262
        %v296 = vpack.c.b16 %v265, %v264
        %v297 = vpack.c.b16 %v267, %v266
        %v298 = vpack.c.b16 %v269, %v268
        %v299 = vpack.c.b16 %v271, %v270
        %v300 = vpack.c.b16 %v273, %v272
        %v301 = vpack.c.b16 %v275, %v274
        %v302 = vpack.c.b16 %v277, %v276
        %v303 = vpack.c.b16 %v279, %v278
        %v304 = vpack.c.b16 %v281, %v280
        %v305 = vpack.c.b16 %v283, %v282
        %v306 = vpack.c.b16 %v285, %v284
        %v307 = vpack.c.b16 %v287, %v286
        %v308 = vpack.c.b16 %v289, %v288
        %v309 = vpack.c.b16 %v291, %v290
        %v311 = vunpack.c.l.b16 %v206
        %v312 = vpack.c.b16 %v311, %v311
        %vm313 = vsmask.f32 7424
        %v315 = vshrl.u32 %v292, 16
        %v317 = vshll.u32 %v292, 16
        %v319 = vrot.slane %v317, 1
        %v320 = vor.u32 %v315, %v319
        %v322 = vshll.u32 %v293, 16
        %v324 = vrot.slane %v322, 1
        %v325 = vsel %vm313, %v320, %v324
        %v326 = vshrl.u32 %v293, 16
        %v328 = vor.u32 %v326, %v324
        %v330 = vshll.u32 %v294, 16
        %v332 = vrot.slane %v330, 1
        %v333 = vsel %vm313, %v328, %v332
        %v334 = vshrl.u32 %v294, 16
        %v336 = vor.u32 %v334, %v332
        %v338 = vshll.u32 %v295, 16
        %v340 = vrot.slane %v338, 1
        %v341 = vsel %vm313, %v336, %v340
        %v342 = vshrl.u32 %v295, 16
        %v344 = vor.u32 %v342, %v340
        %v346 = vshll.u32 %v296, 16
        %v348 = vrot.slane %v346, 1
        %v349 = vsel %vm313, %v344, %v348
        %v350 = vshrl.u32 %v296, 16
        %v352 = vor.u32 %v350, %v348
        %v354 = vshll.u32 %v297, 16
        %v356 = vrot.slane %v354, 1
        %v357 = vsel %vm313, %v352, %v356
        %v358 = vshrl.u32 %v297, 16
        %v360 = vor.u32 %v358, %v356
        %v362 = vshll.u32 %v298, 16
        %v364 = vrot.slane %v362, 1
        %v365 = vsel %vm313, %v360, %v364
        %v366 = vshrl.u32 %v298, 16
        %v368 = vor.u32 %v366, %v364
        %v370 = vshll.u32 %v299, 16
        %v372 = vrot.slane %v370, 1
        %v373 = vsel %vm313, %v368, %v372
        %v374 = vshrl.u32 %v299, 16
        %v376 = vor.u32 %v374, %v372
        %v378 = vshll.u32 %v300, 16
        %v380 = vrot.slane %v378, 1
        %v381 = vsel %vm313, %v376, %v380
        %v382 = vshrl.u32 %v300, 16
        %v384 = vor.u32 %v382, %v380
        %v386 = vshll.u32 %v301, 16
        %v388 = vrot.slane %v386, 1
        %v389 = vsel %vm313, %v384, %v388
        %v390 = vshrl.u32 %v301, 16
        %v392 = vor.u32 %v390, %v388
        %v394 = vshll.u32 %v302, 16
        %v396 = vrot.slane %v394, 1
        %v397 = vsel %vm313, %v392, %v396
        %v398 = vshrl.u32 %v302, 16
        %v400 = vor.u32 %v398, %v396
        %v402 = vshll.u32 %v303, 16
        %v404 = vrot.slane %v402, 1
        %v405 = vsel %vm313, %v400, %v404
        %v406 = vshrl.u32 %v303, 16
        %v408 = vor.u32 %v406, %v404
        %v410 = vshll.u32 %v304, 16
        %v412 = vrot.slane %v410, 1
        %v413 = vsel %vm313, %v408, %v412
        %v414 = vshrl.u32 %v304, 16
        %v416 = vor.u32 %v414, %v412
        %v418 = vshll.u32 %v305, 16
        %v420 = vrot.slane %v418, 1
        %v421 = vsel %vm313, %v416, %v420
        %v422 = vshrl.u32 %v305, 16
        %v424 = vor.u32 %v422, %v420
        %v426 = vshll.u32 %v306, 16
        %v428 = vrot.slane %v426, 1
        %v429 = vsel %vm313, %v424, %v428
        %v430 = vshrl.u32 %v306, 16
        %v432 = vor.u32 %v430, %v428
        %v434 = vshll.u32 %v307, 16
        %v436 = vrot.slane %v434, 1
        %v437 = vsel %vm313, %v432, %v436
        %v438 = vshrl.u32 %v307, 16
        %v440 = vor.u32 %v438, %v436
        %v442 = vshll.u32 %v308, 16
        %v444 = vrot.slane %v442, 1
        %v445 = vsel %vm313, %v440, %v444
        %v446 = vshrl.u32 %v308, 16
        %v448 = vor.u32 %v446, %v444
        %v450 = vshll.u32 %v309, 16
        %v452 = vrot.slane %v450, 1
        %v453 = vsel %vm313, %v448, %v452
        %v454 = vshrl.u32 %v309, 16
        %v456 = vor.u32 %v454, %v452
        %v458 = vshll.u32 %v312, 16
        %v460 = vrot.slane %v458, 1
        %v461 = vsel %vm313, %v456, %v460
        %462 = vrot.lane.b32.xlu0 %v325, 4
        %v463 = vpop.permute.xlu0 %462
        %464 = vrot.lane.b32.xlu0 %v333, 4
        %v465 = vpop.permute.xlu0 %464
        %466 = vrot.lane.b32.xlu0 %v341, 4
        %v467 = vpop.permute.xlu0 %466
        %468 = vrot.lane.b32.xlu0 %v349, 4
        %v469 = vpop.permute.xlu0 %468
        %470 = vrot.lane.b32.xlu0 %v357, 4
        %v471 = vpop.permute.xlu0 %470
        %472 = vrot.lane.b32.xlu0 %v365, 4
        %v473 = vpop.permute.xlu0 %472
        %474 = vrot.lane.b32.xlu0 %v373, 4
        %v475 = vpop.permute.xlu0 %474
        %476 = vrot.lane.b32.xlu0 %v381, 4
        %v477 = vpop.permute.xlu0 %476
        %478 = vrot.lane.b32.xlu0 %v389, 4
        %v479 = vpop.permute.xlu0 %478
        %480 = vrot.lane.b32.xlu0 %v397, 4
        %v481 = vpop.permute.xlu0 %480
        %482 = vrot.lane.b32.xlu0 %v405, 4
        %v483 = vpop.permute.xlu0 %482
        %484 = vrot.lane.b32.xlu0 %v413, 4
        %v485 = vpop.permute.xlu0 %484
        %486 = vrot.lane.b32.xlu0 %v421, 4
        %v487 = vpop.permute.xlu0 %486
        %488 = vrot.lane.b32.xlu0 %v429, 4
        %v489 = vpop.permute.xlu0 %488
        %490 = vrot.lane.b32.xlu0 %v437, 4
        %v491 = vpop.permute.xlu0 %490
        %492 = vrot.lane.b32.xlu0 %v445, 4
        %v493 = vpop.permute.xlu0 %492
        %494 = vrot.lane.b32.xlu0 %v453, 4
        %v495 = vpop.permute.xlu0 %494
        %496 = vrot.lane.b32.xlu0 %v461, 4
        %v497 = vpop.permute.xlu0 %496
        %v499 = vunpack.c.l.b16 %v207
        %v500 = vpack.c.b16 %v257, %v499
        %vm501 = vcmask 1046528
        %v502 = vrot.slane %v500, 1
        %v503 = vrot.slane %v293, 1
        %v504 = vsel %vm501, %v502, %v503
        %v505 = vrot.slane %v294, 1
        %v506 = vsel %vm501, %v503, %v505
        %v507 = vrot.slane %v295, 1
        %v508 = vsel %vm501, %v505, %v507
        %v509 = vrot.slane %v296, 1
        %v510 = vsel %vm501, %v507, %v509
        %v511 = vrot.slane %v297, 1
        %v512 = vsel %vm501, %v509, %v511
        %v513 = vrot.slane %v298, 1
        %v514 = vsel %vm501, %v511, %v513
        %v515 = vrot.slane %v299, 1
        %v516 = vsel %vm501, %v513, %v515
        %v517 = vrot.slane %v300, 1
        %v518 = vsel %vm501, %v515, %v517
        %v519 = vrot.slane %v301, 1
        %v520 = vsel %vm501, %v517, %v519
        %v521 = vrot.slane %v302, 1
        %v522 = vsel %vm501, %v519, %v521
        %v523 = vrot.slane %v303, 1
        %v524 = vsel %vm501, %v521, %v523
        %v525 = vrot.slane %v304, 1
        %v526 = vsel %vm501, %v523, %v525
        %v527 = vrot.slane %v305, 1
        %v528 = vsel %vm501, %v525, %v527
        %v529 = vrot.slane %v306, 1
        %v530 = vsel %vm501, %v527, %v529
        %v531 = vrot.slane %v307, 1
        %v532 = vsel %vm501, %v529, %v531
        %v533 = vrot.slane %v308, 1
        %v534 = vsel %vm501, %v531, %v533
        %v535 = vrot.slane %v309, 1
        %v536 = vsel %vm501, %v533, %v535
        %v537 = vrot.slane %v312, 1
        %v538 = vsel %vm501, %v535, %v537
        %539 = vrot.lane.b32.xlu0 %v504, 8
        %v540 = vpop.permute.xlu0 %539
        %541 = vrot.lane.b32.xlu0 %v506, 8
        %v542 = vpop.permute.xlu0 %541
        %543 = vrot.lane.b32.xlu0 %v508, 8
        %v544 = vpop.permute.xlu0 %543
        %545 = vrot.lane.b32.xlu0 %v510, 8
        %v546 = vpop.permute.xlu0 %545
        %547 = vrot.lane.b32.xlu0 %v512, 8
        %v548 = vpop.permute.xlu0 %547
        %549 = vrot.lane.b32.xlu0 %v514, 8
        %v550 = vpop.permute.xlu0 %549
        %551 = vrot.lane.b32.xlu0 %v516, 8
        %v552 = vpop.permute.xlu0 %551
        %553 = vrot.lane.b32.xlu0 %v518, 8
        %v554 = vpop.permute.xlu0 %553
        %555 = vrot.lane.b32.xlu0 %v520, 8
        %v556 = vpop.permute.xlu0 %555
        %557 = vrot.lane.b32.xlu0 %v522, 8
        %v558 = vpop.permute.xlu0 %557
        %559 = vrot.lane.b32.xlu0 %v524, 8
        %v560 = vpop.permute.xlu0 %559
        %561 = vrot.lane.b32.xlu0 %v526, 8
        %v562 = vpop.permute.xlu0 %561
        %563 = vrot.lane.b32.xlu0 %v528, 8
        %v564 = vpop.permute.xlu0 %563
        %565 = vrot.lane.b32.xlu0 %v530, 8
        %v566 = vpop.permute.xlu0 %565
        %567 = vrot.lane.b32.xlu0 %v532, 8
        %v568 = vpop.permute.xlu0 %567
        %569 = vrot.lane.b32.xlu0 %v534, 8
        %v570 = vpop.permute.xlu0 %569
        %571 = vrot.lane.b32.xlu0 %v536, 8
        %v572 = vpop.permute.xlu0 %571
        %573 = vrot.lane.b32.xlu0 %v538, 8
        %v574 = vpop.permute.xlu0 %573
        %v579 = vunpack.c.l.b16 %v208
        %v580 = vunpack.c.l.b16 %v209
        %v581 = vunpack.c.l.b16 %v210
        %v582 = vunpack.c.l.b16 %v211
        %v583 = vpack.c.b16 %v259, %v579
        %v584 = vpack.c.b16 %v581, %v580
        %v585 = vpack.c.b16 %v582, %v582
        %v586 = vrot.slane %v583, 1
        %v587 = vsel %vm501, %v586, %v505
        %v588 = vrot.slane %v584, 1
        %v589 = vsel %vm501, %v535, %v588
        %v590 = vrot.slane %v585, 1
        %v591 = vsel %vm501, %v588, %v590
        %592 = vrot.lane.b32.xlu0 %v587, 12
        %v593 = vpop.permute.xlu0 %592
        %594 = vrot.lane.b32.xlu0 %v508, 12
        %v595 = vpop.permute.xlu0 %594
        %596 = vrot.lane.b32.xlu0 %v510, 12
        %v597 = vpop.permute.xlu0 %596
        %598 = vrot.lane.b32.xlu0 %v512, 12
        %v599 = vpop.permute.xlu0 %598
        %600 = vrot.lane.b32.xlu0 %v514, 12
        %v601 = vpop.permute.xlu0 %600
        %602 = vrot.lane.b32.xlu0 %v516, 12
        %v603 = vpop.permute.xlu0 %602
        %604 = vrot.lane.b32.xlu0 %v518, 12
        %v605 = vpop.permute.xlu0 %604
        %606 = vrot.lane.b32.xlu0 %v520, 12
        %v607 = vpop.permute.xlu0 %606
        %608 = vrot.lane.b32.xlu0 %v522, 12
        %v609 = vpop.permute.xlu0 %608
        %610 = vrot.lane.b32.xlu0 %v524, 12
        %v611 = vpop.permute.xlu0 %610
        %612 = vrot.lane.b32.xlu0 %v526, 12
        %v613 = vpop.permute.xlu0 %612
        %614 = vrot.lane.b32.xlu0 %v528, 12
        %v615 = vpop.permute.xlu0 %614
        %616 = vrot.lane.b32.xlu0 %v530, 12
        %v617 = vpop.permute.xlu0 %616
        %618 = vrot.lane.b32.xlu0 %v532, 12
        %v619 = vpop.permute.xlu0 %618
        %620 = vrot.lane.b32.xlu0 %v534, 12
        %v621 = vpop.permute.xlu0 %620
        %622 = vrot.lane.b32.xlu0 %v536, 12
        %v623 = vpop.permute.xlu0 %622
        %624 = vrot.lane.b32.xlu0 %v589, 12
        %v625 = vpop.permute.xlu0 %624
        %626 = vrot.lane.b32.xlu0 %v591, 12
        %v627 = vpop.permute.xlu0 %626
        %v629 = vunpack.c.l.b16 %v212
        %v630 = vpack.c.b16 %v629, %v629
        %vm631 = vsmask.f32 6400
        %v633 = vshrl.u32 %v583, 16
        %v635 = vrot.slane %v633, 1
        %v636 = vshll.u32 %v583, 16
        %v638 = vrot.slane %v636, 2
        %v639 = vor.u32 %v635, %v638
        %v640 = vrot.slane %v334, 1
        %v641 = vrot.slane %v330, 2
        %v642 = vor.u32 %v640, %v641
        %v643 = vsel %vm631, %v639, %v642
        %v644 = vrot.slane %v342, 1
        %v645 = vrot.slane %v338, 2
        %v646 = vor.u32 %v644, %v645
        %v647 = vsel %vm631, %v642, %v646
        %v648 = vrot.slane %v350, 1
        %v649 = vrot.slane %v346, 2
        %v650 = vor.u32 %v648, %v649
        %v651 = vsel %vm631, %v646, %v650
        %v652 = vrot.slane %v358, 1
        %v653 = vrot.slane %v354, 2
        %v654 = vor.u32 %v652, %v653
        %v655 = vsel %vm631, %v650, %v654
        %v656 = vrot.slane %v366, 1
        %v657 = vrot.slane %v362, 2
        %v658 = vor.u32 %v656, %v657
        %v659 = vsel %vm631, %v654, %v658
        %v660 = vrot.slane %v374, 1
        %v661 = vrot.slane %v370, 2
        %v662 = vor.u32 %v660, %v661
        %v663 = vsel %vm631, %v658, %v662
        %v664 = vrot.slane %v382, 1
        %v665 = vrot.slane %v378, 2
        %v666 = vor.u32 %v664, %v665
        %v667 = vsel %vm631, %v662, %v666
        %v668 = vrot.slane %v390, 1
        %v669 = vrot.slane %v386, 2
        %v670 = vor.u32 %v668, %v669
        %v671 = vsel %vm631, %v666, %v670
        %v672 = vrot.slane %v398, 1
        %v673 = vrot.slane %v394, 2
        %v674 = vor.u32 %v672, %v673
        %v675 = vsel %vm631, %v670, %v674
        %v676 = vrot.slane %v406, 1
        %v677 = vrot.slane %v402, 2
        %v678 = vor.u32 %v676, %v677
        %v679 = vsel %vm631, %v674, %v678
        %v680 = vrot.slane %v414, 1
        %v681 = vrot.slane %v410, 2
        %v682 = vor.u32 %v680, %v681
        %v683 = vsel %vm631, %v678, %v682
        %v684 = vrot.slane %v422, 1
        %v685 = vrot.slane %v418, 2
        %v686 = vor.u32 %v684, %v685
        %v687 = vsel %vm631, %v682, %v686
        %v688 = vrot.slane %v430, 1
        %v689 = vrot.slane %v426, 2
        %v690 = vor.u32 %v688, %v689
        %v691 = vsel %vm631, %v686, %v690
        %v692 = vrot.slane %v438, 1
        %v693 = vrot.slane %v434, 2
        %v694 = vor.u32 %v692, %v693
        %v695 = vsel %vm631, %v690, %v694
        %v696 = vrot.slane %v446, 1
        %v697 = vrot.slane %v442, 2
        %v698 = vor.u32 %v696, %v697
        %v699 = vsel %vm631, %v694, %v698
        %v700 = vrot.slane %v454, 1
        %v701 = vrot.slane %v450, 2
        %v702 = vor.u32 %v700, %v701
        %v703 = vsel %vm631, %v698, %v702
        %v705 = vshrl.u32 %v584, 16
        %v707 = vrot.slane %v705, 1
        %v708 = vshll.u32 %v584, 16
        %v710 = vrot.slane %v708, 2
        %v711 = vor.u32 %v707, %v710
        %v712 = vsel %vm631, %v702, %v711
        %v714 = vshrl.u32 %v630, 16
        %v716 = vrot.slane %v714, 1
        %v717 = vshll.u32 %v630, 16
        %v719 = vrot.slane %v717, 2
        %v720 = vor.u32 %v716, %v719
        %v721 = vsel %vm631, %v711, %v720
        %722 = vrot.lane.b32.xlu0 %v643, 16
        %v723 = vpop.permute.xlu0 %722
        %724 = vrot.lane.b32.xlu0 %v647, 16
        %v725 = vpop.permute.xlu0 %724
        %726 = vrot.lane.b32.xlu0 %v651, 16
        %v727 = vpop.permute.xlu0 %726
        %728 = vrot.lane.b32.xlu0 %v655, 16
        %v729 = vpop.permute.xlu0 %728
        %730 = vrot.lane.b32.xlu0 %v659, 16
        %v731 = vpop.permute.xlu0 %730
        %732 = vrot.lane.b32.xlu0 %v663, 16
        %v733 = vpop.permute.xlu0 %732
        %734 = vrot.lane.b32.xlu0 %v667, 16
        %v735 = vpop.permute.xlu0 %734
        %736 = vrot.lane.b32.xlu0 %v671, 16
        %v737 = vpop.permute.xlu0 %736
        %738 = vrot.lane.b32.xlu0 %v675, 16
        %v739 = vpop.permute.xlu0 %738
        %740 = vrot.lane.b32.xlu0 %v679, 16
        %v741 = vpop.permute.xlu0 %740
        %742 = vrot.lane.b32.xlu0 %v683, 16
        %v743 = vpop.permute.xlu0 %742
        %744 = vrot.lane.b32.xlu0 %v687, 16
        %v745 = vpop.permute.xlu0 %744
        %746 = vrot.lane.b32.xlu0 %v691, 16
        %v747 = vpop.permute.xlu0 %746
        %748 = vrot.lane.b32.xlu0 %v695, 16
        %v749 = vpop.permute.xlu0 %748
        %750 = vrot.lane.b32.xlu0 %v699, 16
        %v751 = vpop.permute.xlu0 %750
        %752 = vrot.lane.b32.xlu0 %v703, 16
        %v753 = vpop.permute.xlu0 %752
        %754 = vrot.lane.b32.xlu0 %v712, 16
        %v755 = vpop.permute.xlu0 %754
        %756 = vrot.lane.b32.xlu0 %v721, 16
        %v757 = vpop.permute.xlu0 %756
        %v759 = vunpack.c.l.b16 %v213
        %v760 = vpack.c.b16 %v259, %v759
        %vm761 = vcmask 1045504
        %v762 = vrot.slane %v760, 2
        %v763 = vrot.slane %v294, 2
        %v764 = vsel %vm761, %v762, %v763
        %v765 = vrot.slane %v295, 2
        %v766 = vsel %vm761, %v763, %v765
        %v767 = vrot.slane %v296, 2
        %v768 = vsel %vm761, %v765, %v767
        %v769 = vrot.slane %v297, 2
        %v770 = vsel %vm761, %v767, %v769
        %v771 = vrot.slane %v298, 2
        %v772 = vsel %vm761, %v769, %v771
        %v773 = vrot.slane %v299, 2
        %v774 = vsel %vm761, %v771, %v773
        %v775 = vrot.slane %v300, 2
        %v776 = vsel %vm761, %v773, %v775
        %v777 = vrot.slane %v301, 2
        %v778 = vsel %vm761, %v775, %v777
        %v779 = vrot.slane %v302, 2
        %v780 = vsel %vm761, %v777, %v779
        %v781 = vrot.slane %v303, 2
        %v782 = vsel %vm761, %v779, %v781
        %v783 = vrot.slane %v304, 2
        %v784 = vsel %vm761, %v781, %v783
        %v785 = vrot.slane %v305, 2
        %v786 = vsel %vm761, %v783, %v785
        %v787 = vrot.slane %v306, 2
        %v788 = vsel %vm761, %v785, %v787
        %v789 = vrot.slane %v307, 2
        %v790 = vsel %vm761, %v787, %v789
        %v791 = vrot.slane %v308, 2
        %v792 = vsel %vm761, %v789, %v791
        %v793 = vrot.slane %v309, 2
        %v794 = vsel %vm761, %v791, %v793
        %v795 = vrot.slane %v584, 2
        %v796 = vsel %vm761, %v793, %v795
        %v797 = vrot.slane %v630, 2
        %v798 = vsel %vm761, %v795, %v797
        %799 = vrot.lane.b32.xlu0 %v764, 20
        %v800 = vpop.permute.xlu0 %799
        %801 = vrot.lane.b32.xlu0 %v766, 20
        %v802 = vpop.permute.xlu0 %801
        %803 = vrot.lane.b32.xlu0 %v768, 20
        %v804 = vpop.permute.xlu0 %803
        %805 = vrot.lane.b32.xlu0 %v770, 20
        %v806 = vpop.permute.xlu0 %805
        %807 = vrot.lane.b32.xlu0 %v772, 20
        %v808 = vpop.permute.xlu0 %807
        %809 = vrot.lane.b32.xlu0 %v774, 20
        %v810 = vpop.permute.xlu0 %809
        %811 = vrot.lane.b32.xlu0 %v776, 20
        %v812 = vpop.permute.xlu0 %811
        %813 = vrot.lane.b32.xlu0 %v778, 20
        %v814 = vpop.permute.xlu0 %813
        %815 = vrot.lane.b32.xlu0 %v780, 20
        %v816 = vpop.permute.xlu0 %815
        %817 = vrot.lane.b32.xlu0 %v782, 20
        %v818 = vpop.permute.xlu0 %817
        %819 = vrot.lane.b32.xlu0 %v784, 20
        %v820 = vpop.permute.xlu0 %819
        %821 = vrot.lane.b32.xlu0 %v786, 20
        %v822 = vpop.permute.xlu0 %821
        %823 = vrot.lane.b32.xlu0 %v788, 20
        %v824 = vpop.permute.xlu0 %823
        %825 = vrot.lane.b32.xlu0 %v790, 20
        %v826 = vpop.permute.xlu0 %825
        %827 = vrot.lane.b32.xlu0 %v792, 20
        %v828 = vpop.permute.xlu0 %827
        %829 = vrot.lane.b32.xlu0 %v794, 20
        %v830 = vpop.permute.xlu0 %829
        %831 = vrot.lane.b32.xlu0 %v796, 20
        %v832 = vpop.permute.xlu0 %831
        %833 = vrot.lane.b32.xlu0 %v798, 20
        %v834 = vpop.permute.xlu0 %833
        %v839 = vunpack.c.l.b16 %v214
        %v840 = vunpack.c.l.b16 %v215
        %v841 = vunpack.c.l.b16 %v216
        %v842 = vunpack.c.l.b16 %v217
        %v843 = vpack.c.b16 %v261, %v839
        %v844 = vpack.c.b16 %v841, %v840
        %v845 = vpack.c.b16 %v842, %v842
        %v846 = vrot.slane %v843, 2
        %v847 = vsel %vm761, %v846, %v765
        %v848 = vrot.slane %v844, 2
        %v849 = vsel %vm761, %v795, %v848
        %v850 = vrot.slane %v845, 2
        %v851 = vsel %vm761, %v848, %v850
        %852 = vrot.lane.b32.xlu0 %v847, 24
        %v853 = vpop.permute.xlu0 %852
        %854 = vrot.lane.b32.xlu0 %v768, 24
        %v855 = vpop.permute.xlu0 %854
        %856 = vrot.lane.b32.xlu0 %v770, 24
        %v857 = vpop.permute.xlu0 %856
        %858 = vrot.lane.b32.xlu0 %v772, 24
        %v859 = vpop.permute.xlu0 %858
        %860 = vrot.lane.b32.xlu0 %v774, 24
        %v861 = vpop.permute.xlu0 %860
        %862 = vrot.lane.b32.xlu0 %v776, 24
        %v863 = vpop.permute.xlu0 %862
        %864 = vrot.lane.b32.xlu0 %v778, 24
        %v865 = vpop.permute.xlu0 %864
        %866 = vrot.lane.b32.xlu0 %v780, 24
        %v867 = vpop.permute.xlu0 %866
        %868 = vrot.lane.b32.xlu0 %v782, 24
        %v869 = vpop.permute.xlu0 %868
        %870 = vrot.lane.b32.xlu0 %v784, 24
        %v871 = vpop.permute.xlu0 %870
        %872 = vrot.lane.b32.xlu0 %v786, 24
        %v873 = vpop.permute.xlu0 %872
        %874 = vrot.lane.b32.xlu0 %v788, 24
        %v875 = vpop.permute.xlu0 %874
        %876 = vrot.lane.b32.xlu0 %v790, 24
        %v877 = vpop.permute.xlu0 %876
        %878 = vrot.lane.b32.xlu0 %v792, 24
        %v879 = vpop.permute.xlu0 %878
        %880 = vrot.lane.b32.xlu0 %v794, 24
        %v881 = vpop.permute.xlu0 %880
        %882 = vrot.lane.b32.xlu0 %v796, 24
        %v883 = vpop.permute.xlu0 %882
        %884 = vrot.lane.b32.xlu0 %v849, 24
        %v885 = vpop.permute.xlu0 %884
        %886 = vrot.lane.b32.xlu0 %v851, 24
        %v887 = vpop.permute.xlu0 %886
        %v889 = vunpack.c.l.b16 %v218
        %v890 = vpack.c.b16 %v889, %v889
        %vm891 = vsmask.f32 5376
        %v893 = vshrl.u32 %v843, 16
        %v895 = vrot.slane %v893, 2
        %v896 = vshll.u32 %v843, 16
        %v898 = vrot.slane %v896, 3
        %v899 = vor.u32 %v895, %v898
        %v900 = vrot.slane %v342, 2
        %v901 = vrot.slane %v338, 3
        %v902 = vor.u32 %v900, %v901
        %v903 = vsel %vm891, %v899, %v902
        %v904 = vrot.slane %v350, 2
        %v905 = vrot.slane %v346, 3
        %v906 = vor.u32 %v904, %v905
        %v907 = vsel %vm891, %v902, %v906
        %v908 = vrot.slane %v358, 2
        %v909 = vrot.slane %v354, 3
        %v910 = vor.u32 %v908, %v909
        %v911 = vsel %vm891, %v906, %v910
        %v912 = vrot.slane %v366, 2
        %v913 = vrot.slane %v362, 3
        %v914 = vor.u32 %v912, %v913
        %v915 = vsel %vm891, %v910, %v914
        %v916 = vrot.slane %v374, 2
        %v917 = vrot.slane %v370, 3
        %v918 = vor.u32 %v916, %v917
        %v919 = vsel %vm891, %v914, %v918
        %v920 = vrot.slane %v382, 2
        %v921 = vrot.slane %v378, 3
        %v922 = vor.u32 %v920, %v921
        %v923 = vsel %vm891, %v918, %v922
        %v924 = vrot.slane %v390, 2
        %v925 = vrot.slane %v386, 3
        %v926 = vor.u32 %v924, %v925
        %v927 = vsel %vm891, %v922, %v926
        %v928 = vrot.slane %v398, 2
        %v929 = vrot.slane %v394, 3
        %v930 = vor.u32 %v928, %v929
        %v931 = vsel %vm891, %v926, %v930
        %v932 = vrot.slane %v406, 2
        %v933 = vrot.slane %v402, 3
        %v934 = vor.u32 %v932, %v933
        %v935 = vsel %vm891, %v930, %v934
        %v936 = vrot.slane %v414, 2
        %v937 = vrot.slane %v410, 3
        %v938 = vor.u32 %v936, %v937
        %v939 = vsel %vm891, %v934, %v938
        %v940 = vrot.slane %v422, 2
        %v941 = vrot.slane %v418, 3
        %v942 = vor.u32 %v940, %v941
        %v943 = vsel %vm891, %v938, %v942
        %v944 = vrot.slane %v430, 2
        %v945 = vrot.slane %v426, 3
        %v946 = vor.u32 %v944, %v945
        %v947 = vsel %vm891, %v942, %v946
        %v948 = vrot.slane %v438, 2
        %v949 = vrot.slane %v434, 3
        %v950 = vor.u32 %v948, %v949
        %v951 = vsel %vm891, %v946, %v950
        %v952 = vrot.slane %v446, 2
        %v953 = vrot.slane %v442, 3
        %v954 = vor.u32 %v952, %v953
        %v955 = vsel %vm891, %v950, %v954
        %v956 = vrot.slane %v454, 2
        %v957 = vrot.slane %v450, 3
        %v958 = vor.u32 %v956, %v957
        %v959 = vsel %vm891, %v954, %v958
        %v960 = vrot.slane %v705, 2
        %v961 = vrot.slane %v708, 3
        %v962 = vor.u32 %v960, %v961
        %v963 = vsel %vm891, %v958, %v962
        %v965 = vshrl.u32 %v844, 16
        %v967 = vrot.slane %v965, 2
        %v968 = vshll.u32 %v844, 16
        %v970 = vrot.slane %v968, 3
        %v971 = vor.u32 %v967, %v970
        %v972 = vsel %vm891, %v962, %v971
        %v974 = vshrl.u32 %v890, 16
        %v976 = vrot.slane %v974, 2
        %v977 = vshll.u32 %v890, 16
        %v979 = vrot.slane %v977, 3
        %v980 = vor.u32 %v976, %v979
        %v981 = vsel %vm891, %v971, %v980
        %982 = vrot.lane.b32.xlu0 %v903, 28
        %v983 = vpop.permute.xlu0 %982
        %984 = vrot.lane.b32.xlu0 %v907, 28
        %v985 = vpop.permute.xlu0 %984
        %986 = vrot.lane.b32.xlu0 %v911, 28
        %v987 = vpop.permute.xlu0 %986
        %988 = vrot.lane.b32.xlu0 %v915, 28
        %v989 = vpop.permute.xlu0 %988
        %990 = vrot.lane.b32.xlu0 %v919, 28
        %v991 = vpop.permute.xlu0 %990
        %992 = vrot.lane.b32.xlu0 %v923, 28
        %v993 = vpop.permute.xlu0 %992
        %994 = vrot.lane.b32.xlu0 %v927, 28
        %v995 = vpop.permute.xlu0 %994
        %996 = vrot.lane.b32.xlu0 %v931, 28
        %v997 = vpop.permute.xlu0 %996
        %998 = vrot.lane.b32.xlu0 %v935, 28
        %v999 = vpop.permute.xlu0 %998
        %1000 = vrot.lane.b32.xlu0 %v939, 28
        %v1001 = vpop.permute.xlu0 %1000
        %1002 = vrot.lane.b32.xlu0 %v943, 28
        %v1003 = vpop.permute.xlu0 %1002
        %1004 = vrot.lane.b32.xlu0 %v947, 28
        %v1005 = vpop.permute.xlu0 %1004
        %1006 = vrot.lane.b32.xlu0 %v951, 28
        %v1007 = vpop.permute.xlu0 %1006
        %1008 = vrot.lane.b32.xlu0 %v955, 28
        %v1009 = vpop.permute.xlu0 %1008
        %1010 = vrot.lane.b32.xlu0 %v959, 28
        %v1011 = vpop.permute.xlu0 %1010
        %1012 = vrot.lane.b32.xlu0 %v963, 28
        %v1013 = vpop.permute.xlu0 %1012
        %1014 = vrot.lane.b32.xlu0 %v972, 28
        %v1015 = vpop.permute.xlu0 %1014
        %1016 = vrot.lane.b32.xlu0 %v981, 28
        %v1017 = vpop.permute.xlu0 %1016
        %v1019 = vunpack.c.l.b16 %v219
        %v1020 = vpack.c.b16 %v261, %v1019
        %vm1021 = vcmask 1044480
        %v1022 = vrot.slane %v1020, 3
        %v1023 = vrot.slane %v295, 3
        %v1024 = vsel %vm1021, %v1022, %v1023
        %v1025 = vrot.slane %v296, 3
        %v1026 = vsel %vm1021, %v1023, %v1025
        %v1027 = vrot.slane %v297, 3
        %v1028 = vsel %vm1021, %v1025, %v1027
        %v1029 = vrot.slane %v298, 3
        %v1030 = vsel %vm1021, %v1027, %v1029
        %v1031 = vrot.slane %v299, 3
        %v1032 = vsel %vm1021, %v1029, %v1031
        %v1033 = vrot.slane %v300, 3
        %v1034 = vsel %vm1021, %v1031, %v1033
        %v1035 = vrot.slane %v301, 3
        %v1036 = vsel %vm1021, %v1033, %v1035
        %v1037 = vrot.slane %v302, 3
        %v1038 = vsel %vm1021, %v1035, %v1037
        %v1039 = vrot.slane %v303, 3
        %v1040 = vsel %vm1021, %v1037, %v1039
        %v1041 = vrot.slane %v304, 3
        %v1042 = vsel %vm1021, %v1039, %v1041
        %v1043 = vrot.slane %v305, 3
        %v1044 = vsel %vm1021, %v1041, %v1043
        %v1045 = vrot.slane %v306, 3
        %v1046 = vsel %vm1021, %v1043, %v1045
        %v1047 = vrot.slane %v307, 3
        %v1048 = vsel %vm1021, %v1045, %v1047
        %v1049 = vrot.slane %v308, 3
        %v1050 = vsel %vm1021, %v1047, %v1049
        %v1051 = vrot.slane %v309, 3
        %v1052 = vsel %vm1021, %v1049, %v1051
        %v1053 = vrot.slane %v584, 3
        %v1054 = vsel %vm1021, %v1051, %v1053
        %v1055 = vrot.slane %v844, 3
        %v1056 = vsel %vm1021, %v1053, %v1055
        %v1057 = vrot.slane %v890, 3
        %v1058 = vsel %vm1021, %v1055, %v1057
        %1059 = vrot.lane.b32.xlu0 %v1024, 32
        %v1060 = vpop.permute.xlu0 %1059
        %1061 = vrot.lane.b32.xlu0 %v1026, 32
        %v1062 = vpop.permute.xlu0 %1061
        %1063 = vrot.lane.b32.xlu0 %v1028, 32
        %v1064 = vpop.permute.xlu0 %1063
        %1065 = vrot.lane.b32.xlu0 %v1030, 32
        %v1066 = vpop.permute.xlu0 %1065
        %1067 = vrot.lane.b32.xlu0 %v1032, 32
        %v1068 = vpop.permute.xlu0 %1067
        %1069 = vrot.lane.b32.xlu0 %v1034, 32
        %v1070 = vpop.permute.xlu0 %1069
        %1071 = vrot.lane.b32.xlu0 %v1036, 32
        %v1072 = vpop.permute.xlu0 %1071
        %1073 = vrot.lane.b32.xlu0 %v1038, 32
        %v1074 = vpop.permute.xlu0 %1073
        %1075 = vrot.lane.b32.xlu0 %v1040, 32
        %v1076 = vpop.permute.xlu0 %1075
        %1077 = vrot.lane.b32.xlu0 %v1042, 32
        %v1078 = vpop.permute.xlu0 %1077
        %1079 = vrot.lane.b32.xlu0 %v1044, 32
        %v1080 = vpop.permute.xlu0 %1079
        %1081 = vrot.lane.b32.xlu0 %v1046, 32
        %v1082 = vpop.permute.xlu0 %1081
        %1083 = vrot.lane.b32.xlu0 %v1048, 32
        %v1084 = vpop.permute.xlu0 %1083
        %1085 = vrot.lane.b32.xlu0 %v1050, 32
        %v1086 = vpop.permute.xlu0 %1085
        %1087 = vrot.lane.b32.xlu0 %v1052, 32
        %v1088 = vpop.permute.xlu0 %1087
        %1089 = vrot.lane.b32.xlu0 %v1054, 32
        %v1090 = vpop.permute.xlu0 %1089
        %1091 = vrot.lane.b32.xlu0 %v1056, 32
        %v1092 = vpop.permute.xlu0 %1091
        %1093 = vrot.lane.b32.xlu0 %v1058, 32
        %v1094 = vpop.permute.xlu0 %1093
        %vm1095 = vcmask 31744
        %v1097 = vsel %vm1095, %v292, %v463
        %v1099 = vsel %vm1095, %v293, %v465
        %v1101 = vsel %vm1095, %v294, %v467
        %v1103 = vsel %vm1095, %v295, %v469
        %v1105 = vsel %vm1095, %v296, %v471
        %v1107 = vsel %vm1095, %v297, %v473
        %v1109 = vsel %vm1095, %v298, %v475
        %v1111 = vsel %vm1095, %v299, %v477
        %v1113 = vsel %vm1095, %v300, %v479
        %v1115 = vsel %vm1095, %v301, %v481
        %v1117 = vsel %vm1095, %v302, %v483
        %v1119 = vsel %vm1095, %v303, %v485
        %v1121 = vsel %vm1095, %v304, %v487
        %v1123 = vsel %vm1095, %v305, %v489
        %v1125 = vsel %vm1095, %v306, %v491
        %v1127 = vsel %vm1095, %v307, %v493
        %v1129 = vsel %vm1095, %v308, %v495
        %v1131 = vsel %vm1095, %v309, %v497
        %vm1132 = vcmask 64512
        %v1134 = vsel %vm1132, %v1097, %v540
        %v1136 = vsel %vm1132, %v1099, %v542
        %v1138 = vsel %vm1132, %v1101, %v544
        %v1140 = vsel %vm1132, %v1103, %v546
        %v1142 = vsel %vm1132, %v1105, %v548
        %v1144 = vsel %vm1132, %v1107, %v550
        %v1146 = vsel %vm1132, %v1109, %v552
        %v1148 = vsel %vm1132, %v1111, %v554
        %v1150 = vsel %vm1132, %v1113, %v556
        %v1152 = vsel %vm1132, %v1115, %v558
        %v1154 = vsel %vm1132, %v1117, %v560
        %v1156 = vsel %vm1132, %v1119, %v562
        %v1158 = vsel %vm1132, %v1121, %v564
        %v1160 = vsel %vm1132, %v1123, %v566
        %v1162 = vsel %vm1132, %v1125, %v568
        %v1164 = vsel %vm1132, %v1127, %v570
        %v1166 = vsel %vm1132, %v1129, %v572
        %v1168 = vsel %vm1132, %v1131, %v574
        %vm1169 = vcmask 97280
        %v1171 = vsel %vm1169, %v1134, %v593
        %v1173 = vsel %vm1169, %v1136, %v595
        %v1175 = vsel %vm1169, %v1138, %v597
        %v1177 = vsel %vm1169, %v1140, %v599
        %v1179 = vsel %vm1169, %v1142, %v601
        %v1181 = vsel %vm1169, %v1144, %v603
        %v1183 = vsel %vm1169, %v1146, %v605
        %v1185 = vsel %vm1169, %v1148, %v607
        %v1187 = vsel %vm1169, %v1150, %v609
        %v1189 = vsel %vm1169, %v1152, %v611
        %v1191 = vsel %vm1169, %v1154, %v613
        %v1193 = vsel %vm1169, %v1156, %v615
        %v1195 = vsel %vm1169, %v1158, %v617
        %v1197 = vsel %vm1169, %v1160, %v619
        %v1199 = vsel %vm1169, %v1162, %v621
        %v1201 = vsel %vm1169, %v1164, %v623
        %v1203 = vsel %vm1169, %v1166, %v625
        %v1205 = vsel %vm1169, %v1168, %v627
        %vm1206 = vcmask 130048
        %v1208 = vsel %vm1206, %v1171, %v723
        %v1210 = vsel %vm1206, %v1173, %v725
        %v1212 = vsel %vm1206, %v1175, %v727
        %v1214 = vsel %vm1206, %v1177, %v729
        %v1216 = vsel %vm1206, %v1179, %v731
        %v1218 = vsel %vm1206, %v1181, %v733
        %v1220 = vsel %vm1206, %v1183, %v735
        %v1222 = vsel %vm1206, %v1185, %v737
        %v1224 = vsel %vm1206, %v1187, %v739
        %v1226 = vsel %vm1206, %v1189, %v741
        %v1228 = vsel %vm1206, %v1191, %v743
        %v1230 = vsel %vm1206, %v1193, %v745
        %v1232 = vsel %vm1206, %v1195, %v747
        %v1234 = vsel %vm1206, %v1197, %v749
        %v1236 = vsel %vm1206, %v1199, %v751
        %v1238 = vsel %vm1206, %v1201, %v753
        %v1240 = vsel %vm1206, %v1203, %v755
        %v1242 = vsel %vm1206, %v1205, %v757
        %vm1243 = vcmask 162816
        %v1245 = vsel %vm1243, %v1208, %v800
        %v1247 = vsel %vm1243, %v1210, %v802
        %v1249 = vsel %vm1243, %v1212, %v804
        %v1251 = vsel %vm1243, %v1214, %v806
        %v1253 = vsel %vm1243, %v1216, %v808
        %v1255 = vsel %vm1243, %v1218, %v810
        %v1257 = vsel %vm1243, %v1220, %v812
        %v1259 = vsel %vm1243, %v1222, %v814
        %v1261 = vsel %vm1243, %v1224, %v816
        %v1263 = vsel %vm1243, %v1226, %v818
        %v1265 = vsel %vm1243, %v1228, %v820
        %v1267 = vsel %vm1243, %v1230, %v822
        %v1269 = vsel %vm1243, %v1232, %v824
        %v1271 = vsel %vm1243, %v1234, %v826
        %v1273 = vsel %vm1243, %v1236, %v828
        %v1275 = vsel %vm1243, %v1238, %v830
        %v1277 = vsel %vm1243, %v1240, %v832
        %v1279 = vsel %vm1243, %v1242, %v834
        %vm1280 = vcmask 195584
        %v1282 = vsel %vm1280, %v1245, %v853
        %v1284 = vsel %vm1280, %v1247, %v855
        %v1286 = vsel %vm1280, %v1249, %v857
        %v1288 = vsel %vm1280, %v1251, %v859
        %v1290 = vsel %vm1280, %v1253, %v861
        %v1292 = vsel %vm1280, %v1255, %v863
        %v1294 = vsel %vm1280, %v1257, %v865
        %v1296 = vsel %vm1280, %v1259, %v867
        %v1298 = vsel %vm1280, %v1261, %v869
        %v1300 = vsel %vm1280, %v1263, %v871
        %v1302 = vsel %vm1280, %v1265, %v873
        %v1304 = vsel %vm1280, %v1267, %v875
        %v1306 = vsel %vm1280, %v1269, %v877
        %v1308 = vsel %vm1280, %v1271, %v879
        %v1310 = vsel %vm1280, %v1273, %v881
        %v1312 = vsel %vm1280, %v1275, %v883
        %v1314 = vsel %vm1280, %v1277, %v885
        %v1316 = vsel %vm1280, %v1279, %v887
        %vm1317 = vcmask 228352
        %v1319 = vsel %vm1317, %v1282, %v983
        %v1321 = vsel %vm1317, %v1284, %v985
        %v1323 = vsel %vm1317, %v1286, %v987
        %v1325 = vsel %vm1317, %v1288, %v989
        %v1327 = vsel %vm1317, %v1290, %v991
        %v1329 = vsel %vm1317, %v1292, %v993
        %v1331 = vsel %vm1317, %v1294, %v995
        %v1333 = vsel %vm1317, %v1296, %v997
        %v1335 = vsel %vm1317, %v1298, %v999
        %v1337 = vsel %vm1317, %v1300, %v1001
        %v1339 = vsel %vm1317, %v1302, %v1003
        %v1341 = vsel %vm1317, %v1304, %v1005
        %v1343 = vsel %vm1317, %v1306, %v1007
        %v1345 = vsel %vm1317, %v1308, %v1009
        %v1347 = vsel %vm1317, %v1310, %v1011
        %v1349 = vsel %vm1317, %v1312, %v1013
        %v1351 = vsel %vm1317, %v1314, %v1015
        %v1353 = vsel %vm1317, %v1316, %v1017
        %vm1354 = vcmask 261120
        %v1356 = vsel %vm1354, %v1319, %v1060
        %v1358 = vsel %vm1354, %v1321, %v1062
        %v1360 = vsel %vm1354, %v1323, %v1064
        %v1362 = vsel %vm1354, %v1325, %v1066
        %v1364 = vsel %vm1354, %v1327, %v1068
        %v1366 = vsel %vm1354, %v1329, %v1070
        %v1368 = vsel %vm1354, %v1331, %v1072
        %v1370 = vsel %vm1354, %v1333, %v1074
        %v1372 = vsel %vm1354, %v1335, %v1076
        %v1374 = vsel %vm1354, %v1337, %v1078
        %v1376 = vsel %vm1354, %v1339, %v1080
        %v1378 = vsel %vm1354, %v1341, %v1082
        %v1380 = vsel %vm1354, %v1343, %v1084
        %v1382 = vsel %vm1354, %v1345, %v1086
        %v1384 = vsel %vm1354, %v1347, %v1088
        %v1386 = vsel %vm1354, %v1349, %v1090
        %v1388 = vsel %vm1354, %v1351, %v1092
        %v1390 = vsel %vm1354, %v1353, %v1094
        %v1391 = vld [vmem:[%s1] sm:$0xff]
        %v1392 = vld [vmem:[%s1 + $0x8] sm:$0xf]
        %v1393 = vld [vmem:[%s1 + $0xc] sm:$0xff]
        %v1394 = vld [vmem:[%s1 + $0x14] sm:$0xf]
        %v1395 = vld [vmem:[%s1 + $0x18] sm:$0xff]
        %v1396 = vld [vmem:[%s1 + $0x20] sm:$0xf]
        %v1397 = vld [vmem:[%s1 + $0x24] sm:$0xff]
        %v1398 = vld [vmem:[%s1 + $0x2c] sm:$0xf]
        %v1399 = vld [vmem:[%s1 + $0x30] sm:$0x33]
        %v1400 = vld [vmem:[%s1 + $0x38] sm:$0x3]
        %v1401 = vld [vmem:[%s2] sm:$0x7]
        %v1403 = vlaneseq
        %v1404 = vshrl.u32 %v1403, 7
        %v1405 = vsub.s32 0, %v1404
        %v1406 = vrot.slane %v1401, %v1405
        %v1407 = vlaneseq
        %v1408 = vshrl.u32 %v1407, 7
        %v1409 = vsub.s32 1, %v1408
        %v1410 = vrot.slane %v1401, %v1409
        %v1411 = vlaneseq
        %v1412 = vshrl.u32 %v1411, 7
        %v1413 = vsub.s32 2, %v1412
        %v1414 = vrot.slane %v1401, %v1413
        %v1428 = vunpack.c.l.b16 %v1391
        %v1429 = vunpack.c.h.b16 %v1391
        %v1430 = vunpack.c.l.b16 %v1392
        %v1431 = vunpack.c.l.b16 %v1393
        %v1432 = vunpack.c.h.b16 %v1393
        %v1433 = vunpack.c.l.b16 %v1394
        %v1434 = vunpack.c.l.b16 %v1395
        %v1435 = vunpack.c.h.b16 %v1395
        %v1436 = vunpack.c.l.b16 %v1396
        %v1437 = vunpack.c.l.b16 %v1397
        %v1438 = vunpack.c.h.b16 %v1397
        %v1439 = vunpack.c.l.b16 %v1398
        %v1440 = vunpack.c.l.b16 %v1399
        %v1441 = vunpack.c.h.b16 %v1399
        %v1442 = vunpack.c.l.b16 %v1400
        %v1443 = vpack.c.b16 %v1431, %v1428
        %v1444 = vpack.c.b16 %v1432, %v1429
        %v1445 = vpack.c.b16 %v1433, %v1430
        %v1446 = vpack.c.b16 %v1437, %v1434
        %v1447 = vpack.c.b16 %v1438, %v1435
        %v1448 = vpack.c.b16 %v1439, %v1436
        %v1449 = vpack.c.b16 %v1440, %v1440
        %v1450 = vpack.c.b16 %v1441, %v1441
        %v1451 = vpack.c.b16 %v1442, %v1442
        %vm1458 = vcmask 293888
        %v1459 = vsel %vm1458, %v1356, 0
        %v1461 = vsel %vm1458, %v1358, 0
        %v1463 = vsel %vm1458, %v1360, 0
        %v1465 = vsel %vm1458, %v1362, 0
        %v1467 = vsel %vm1458, %v1364, 0
        %v1469 = vsel %vm1458, %v1366, 0
        %v1471 = vsel %vm1458, %v1368, 0
        %v1473 = vsel %vm1458, %v1370, 0
        %v1475 = vsel %vm1458, %v1372, 0
        %v1477 = vsel %vm1458, %v1374, 0
        %v1479 = vsel %vm1458, %v1376, 0
        %v1481 = vsel %vm1458, %v1378, 0
        %v1483 = vsel %vm1458, %v1380, 0
        %v1485 = vsel %vm1458, %v1382, 0
        %v1487 = vsel %vm1458, %v1384, 0
        %v1489 = vsel %vm1458, %v1386, 0
        %v1491 = vsel %vm1458, %v1388, 0
        %v1493 = vsel %vm1458, %v1390, 0
        %vm1495 = vcmask 1041408
        %v1497 = vsel %vm1495, %v1449, 0
        %v1500 = vsel %vm1495, %v1450, 0
        %v1503 = vsel %vm1495, %v1451, 0
        %1505 = vmatprep.subr.bf16.mxu0 %v1444
        %1506 = vmatpush1.bf16.msra.mxu0 %v1443
        %1507 = vmatprep.subr.bf16.mxu0 %v1447
        %1508 = vmatpush1.bf16.msra.mxu0 %v1446
        %1509 = vmatprep.subr.bf16.mxu0 %v1500
        %1510 = vmatpush1.bf16.msra.mxu0 %v1497
        %1511 = vmatprep.subr.bf16.mxu0 0
        %1512 = vmatpush1.bf16.msra.mxu0 0
        %1513 = vmatprep.subr.bf16.mxu0 0
        %1514 = vmatpush1.bf16.msra.mxu0 0
        %1515 = vmatprep.subr.bf16.mxu0 0
        %1516 = vmatpush1.bf16.msra.mxu0 0
        %1517 = vmatprep.subr.bf16.mxu0 0
        %1518 = vmatpush1.bf16.msra.mxu0 0
        %1519 = vmatprep.subr.bf16.mxu0 0
        %1520 = vmatpush1.bf16.msra.mxu0 0
        %1521 = vmatprep.subr.bf16.mxu0 0
        %1522 = vmatpush1.bf16.msra.mxu0 0
        %1523 = vmatprep.subr.bf16.mxu0 0
        %1524 = vmatpush1.bf16.msra.mxu0 0
        %1525 = vmatprep.subr.bf16.mxu0 0
        %1526 = vmatpush1.bf16.msra.mxu0 0
        %1527 = vmatprep.subr.bf16.mxu0 0
        %1528 = vmatpush1.bf16.msra.mxu0 0
        %1529 = vmatprep.subr.bf16.mxu0 0
        %1530 = vmatpush1.bf16.msra.mxu0 0
        %1531 = vmatprep.subr.bf16.mxu0 0
        %1532 = vmatpush1.bf16.msra.mxu0 0
        %1533 = vmatprep.subr.bf16.mxu0 0
        %1534 = vmatpush1.bf16.msra.mxu0 0
        %1535 = vmatprep.subr.bf16.mxu0 0
        %1536 = vmatpush1.bf16.msra.mxu0 0
        %1537 = vmatprep.mubr.bf16.mxu0 0
        %1538 = vmatmul.mubr.bf16.gmra.mrb[0].mxu0 %v1459
        %v1539 = vpop.f32.mrb[0].mxu0
        %v1540 = vadd.f32 %v1406, %v1539
        %v1541 = vpop.f32.mrb[0].mxu0
        %v1542 = vadd.f32 %v1410, %v1541
        %v1543 = vpop.f32.mrb[0].mxu0
        %v1544 = vadd.f32 %v1406, %v1543
        %v1545 = vpop.f32.mrb[0].mxu0
        %v1546 = vadd.f32 %v1410, %v1545
        %1547 = vmatprep.mubr.bf16.mxu0 0
        %1548 = vmatmul.mubr.bf16.gmra.mrb[0].mxu0 %v1461
        %v1549 = vpop.f32.mrb[0].mxu0
        %v1550 = vadd.f32 %v1406, %v1549
        %v1551 = vpop.f32.mrb[0].mxu0
        %v1552 = vadd.f32 %v1410, %v1551
        %v1553 = vpop.f32.mrb[0].mxu0
        %v1554 = vadd.f32 %v1406, %v1553
        %v1555 = vpop.f32.mrb[0].mxu0
        %v1556 = vadd.f32 %v1410, %v1555
        %1557 = vmatprep.mubr.bf16.mxu0 0
        %1558 = vmatmul.mubr.bf16.gmra.mrb[0].mxu0 %v1463
        %v1559 = vpop.f32.mrb[0].mxu0
        %v1560 = vadd.f32 %v1406, %v1559
        %v1561 = vpop.f32.mrb[0].mxu0
        %v1562 = vadd.f32 %v1410, %v1561
        %v1563 = vpop.f32.mrb[0].mxu0
        %v1564 = vadd.f32 %v1406, %v1563
        %v1565 = vpop.f32.mrb[0].mxu0
        %v1566 = vadd.f32 %v1410, %v1565
        %1567 = vmatprep.mubr.bf16.mxu0 0
        %1568 = vmatmul.mubr.bf16.gmra.mrb[0].mxu0 %v1465
        %v1569 = vpop.f32.mrb[0].mxu0
        %v1570 = vadd.f32 %v1406, %v1569
        %v1571 = vpop.f32.mrb[0].mxu0
        %v1572 = vadd.f32 %v1410, %v1571
        %v1573 = vpop.f32.mrb[0].mxu0
        %v1574 = vadd.f32 %v1406, %v1573
        %v1575 = vpop.f32.mrb[0].mxu0
        %v1576 = vadd.f32 %v1410, %v1575
        %1577 = vmatprep.mubr.bf16.mxu0 0
        %1578 = vmatmul.mubr.bf16.gmra.mrb[0].mxu0 %v1467
        %v1579 = vpop.f32.mrb[0].mxu0
        %v1580 = vadd.f32 %v1406, %v1579
        %v1581 = vpop.f32.mrb[0].mxu0
        %v1582 = vadd.f32 %v1410, %v1581
        %v1583 = vpop.f32.mrb[0].mxu0
        %v1584 = vadd.f32 %v1406, %v1583
        %v1585 = vpop.f32.mrb[0].mxu0
        %v1586 = vadd.f32 %v1410, %v1585
        %1587 = vmatprep.mubr.bf16.mxu0 0
        %1588 = vmatmul.mubr.bf16.gmra.mrb[0].mxu0 %v1469
        %v1589 = vpop.f32.mrb[0].mxu0
        %v1590 = vadd.f32 %v1406, %v1589
        %v1591 = vpop.f32.mrb[0].mxu0
        %v1592 = vadd.f32 %v1410, %v1591
        %v1593 = vpop.f32.mrb[0].mxu0
        %v1594 = vadd.f32 %v1406, %v1593
        %v1595 = vpop.f32.mrb[0].mxu0
        %v1596 = vadd.f32 %v1410, %v1595
        %1597 = vmatprep.mubr.bf16.mxu0 0
        %1598 = vmatmul.mubr.bf16.gmra.mrb[0].mxu0 %v1471
        %v1599 = vpop.f32.mrb[0].mxu0
        %v1600 = vadd.f32 %v1406, %v1599
        %v1601 = vpop.f32.mrb[0].mxu0
        %v1602 = vadd.f32 %v1410, %v1601
        %v1603 = vpop.f32.mrb[0].mxu0
        %v1604 = vadd.f32 %v1406, %v1603
        %v1605 = vpop.f32.mrb[0].mxu0
        %v1606 = vadd.f32 %v1410, %v1605
        %1607 = vmatprep.mubr.bf16.mxu0 0
        %1608 = vmatmul.mubr.bf16.gmra.mrb[0].mxu0 %v1473
        %v1609 = vpop.f32.mrb[0].mxu0
        %v1610 = vadd.f32 %v1406, %v1609
        %v1611 = vpop.f32.mrb[0].mxu0
        %v1612 = vadd.f32 %v1410, %v1611
        %v1613 = vpop.f32.mrb[0].mxu0
        %v1614 = vadd.f32 %v1406, %v1613
        %v1615 = vpop.f32.mrb[0].mxu0
        %v1616 = vadd.f32 %v1410, %v1615
        %1617 = vmatprep.mubr.bf16.mxu0 0
        %1618 = vmatmul.mubr.bf16.gmra.mrb[0].mxu0 %v1475
        %v1619 = vpop.f32.mrb[0].mxu0
        %v1620 = vadd.f32 %v1406, %v1619
        %v1621 = vpop.f32.mrb[0].mxu0
        %v1622 = vadd.f32 %v1410, %v1621
        %v1623 = vpop.f32.mrb[0].mxu0
        %v1624 = vadd.f32 %v1406, %v1623
        %v1625 = vpop.f32.mrb[0].mxu0
        %v1626 = vadd.f32 %v1410, %v1625
        %1627 = vmatprep.mubr.bf16.mxu0 0
        %1628 = vmatmul.mubr.bf16.gmra.mrb[0].mxu0 %v1477
        %v1629 = vpop.f32.mrb[0].mxu0
        %v1630 = vadd.f32 %v1406, %v1629
        %v1631 = vpop.f32.mrb[0].mxu0
        %v1632 = vadd.f32 %v1410, %v1631
        %v1633 = vpop.f32.mrb[0].mxu0
        %v1634 = vadd.f32 %v1406, %v1633
        %v1635 = vpop.f32.mrb[0].mxu0
        %v1636 = vadd.f32 %v1410, %v1635
        %1637 = vmatprep.mubr.bf16.mxu0 0
        %1638 = vmatmul.mubr.bf16.gmra.mrb[0].mxu0 %v1479
        %v1639 = vpop.f32.mrb[0].mxu0
        %v1640 = vadd.f32 %v1406, %v1639
        %v1641 = vpop.f32.mrb[0].mxu0
        %v1642 = vadd.f32 %v1410, %v1641
        %v1643 = vpop.f32.mrb[0].mxu0
        %v1644 = vadd.f32 %v1406, %v1643
        %v1645 = vpop.f32.mrb[0].mxu0
        %v1646 = vadd.f32 %v1410, %v1645
        %1647 = vmatprep.mubr.bf16.mxu0 0
        %1648 = vmatmul.mubr.bf16.gmra.mrb[0].mxu0 %v1481
        %v1649 = vpop.f32.mrb[0].mxu0
        %v1650 = vadd.f32 %v1406, %v1649
        %v1651 = vpop.f32.mrb[0].mxu0
        %v1652 = vadd.f32 %v1410, %v1651
        %v1653 = vpop.f32.mrb[0].mxu0
        %v1654 = vadd.f32 %v1406, %v1653
        %v1655 = vpop.f32.mrb[0].mxu0
        %v1656 = vadd.f32 %v1410, %v1655
        %1657 = vmatprep.mubr.bf16.mxu0 0
        %1658 = vmatmul.mubr.bf16.gmra.mrb[0].mxu0 %v1483
        %v1659 = vpop.f32.mrb[0].mxu0
        %v1660 = vadd.f32 %v1406, %v1659
        %v1661 = vpop.f32.mrb[0].mxu0
        %v1662 = vadd.f32 %v1410, %v1661
        %v1663 = vpop.f32.mrb[0].mxu0
        %v1664 = vadd.f32 %v1406, %v1663
        %v1665 = vpop.f32.mrb[0].mxu0
        %v1666 = vadd.f32 %v1410, %v1665
        %1667 = vmatprep.mubr.bf16.mxu0 0
        %1668 = vmatmul.mubr.bf16.gmra.mrb[0].mxu0 %v1485
        %v1669 = vpop.f32.mrb[0].mxu0
        %v1670 = vadd.f32 %v1406, %v1669
        %v1671 = vpop.f32.mrb[0].mxu0
        %v1672 = vadd.f32 %v1410, %v1671
        %v1673 = vpop.f32.mrb[0].mxu0
        %v1674 = vadd.f32 %v1406, %v1673
        %v1675 = vpop.f32.mrb[0].mxu0
        %v1676 = vadd.f32 %v1410, %v1675
        %1677 = vmatprep.mubr.bf16.mxu0 0
        %1678 = vmatmul.mubr.bf16.gmra.mrb[0].mxu0 %v1487
        %v1679 = vpop.f32.mrb[0].mxu0
        %v1680 = vadd.f32 %v1406, %v1679
        %v1681 = vpop.f32.mrb[0].mxu0
        %v1682 = vadd.f32 %v1410, %v1681
        %v1683 = vpop.f32.mrb[0].mxu0
        %v1684 = vadd.f32 %v1406, %v1683
        %v1685 = vpop.f32.mrb[0].mxu0
        %v1686 = vadd.f32 %v1410, %v1685
        %1687 = vmatprep.mubr.bf16.mxu0 0
        %1688 = vmatmul.mubr.bf16.gmra.mrb[0].mxu0 %v1489
        %v1689 = vpop.f32.mrb[0].mxu0
        %v1690 = vadd.f32 %v1406, %v1689
        %v1691 = vpop.f32.mrb[0].mxu0
        %v1692 = vadd.f32 %v1410, %v1691
        %v1693 = vpop.f32.mrb[0].mxu0
        %v1694 = vadd.f32 %v1406, %v1693
        %v1695 = vpop.f32.mrb[0].mxu0
        %v1696 = vadd.f32 %v1410, %v1695
        %1697 = vmatprep.mubr.bf16.mxu0 0
        %1698 = vmatmul.mubr.bf16.gmra.mrb[0].mxu0 %v1491
        %v1699 = vpop.f32.mrb[0].mxu0
        %v1700 = vadd.f32 %v1406, %v1699
        %v1701 = vpop.f32.mrb[0].mxu0
        %v1702 = vadd.f32 %v1410, %v1701
        %v1703 = vpop.f32.mrb[0].mxu0
        %v1704 = vadd.f32 %v1406, %v1703
        %v1705 = vpop.f32.mrb[0].mxu0
        %v1706 = vadd.f32 %v1410, %v1705
        %1707 = vmatprep.mubr.bf16.mxu0 0
        %1708 = vmatmul.mubr.bf16.gmra.mrb[0].mxu0 %v1493
        %v1709 = vpop.f32.mrb[0].mxu0
        %v1710 = vadd.f32 %v1406, %v1709
        %v1711 = vpop.f32.mrb[0].mxu0
        %v1712 = vadd.f32 %v1410, %v1711
        %v1713 = vpop.f32.mrb[0].mxu0
        %v1714 = vadd.f32 %v1406, %v1713
        %v1715 = vpop.f32.mrb[0].mxu0
        %v1716 = vadd.f32 %v1410, %v1715
        %1717 = vdwg.mxu0
        %1718 = vmatprep.subr.bf16.mxu0 0
        %1719 = vmatpush1.bf16.msra.mxu0 %v1445
        %1720 = vmatprep.subr.bf16.mxu0 0
        %1721 = vmatpush1.bf16.msra.mxu0 %v1448
        %1722 = vmatprep.subr.bf16.mxu0 0
        %1723 = vmatpush1.bf16.msra.mxu0 %v1503
        %1724 = vmatprep.subr.bf16.mxu0 0
        %1725 = vmatpush1.bf16.msra.mxu0 0
        %1726 = vmatprep.subr.bf16.mxu0 0
        %1727 = vmatpush1.bf16.msra.mxu0 0
        %1728 = vmatprep.subr.bf16.mxu0 0
        %1729 = vmatpush1.bf16.msra.mxu0 0
        %1730 = vmatprep.subr.bf16.mxu0 0
        %1731 = vmatpush1.bf16.msra.mxu0 0
        %1732 = vmatprep.subr.bf16.mxu0 0
        %1733 = vmatpush1.bf16.msra.mxu0 0
        %1734 = vmatprep.subr.bf16.mxu0 0
        %1735 = vmatpush1.bf16.msra.mxu0 0
        %1736 = vmatprep.subr.bf16.mxu0 0
        %1737 = vmatpush1.bf16.msra.mxu0 0
        %1738 = vmatprep.subr.bf16.mxu0 0
        %1739 = vmatpush1.bf16.msra.mxu0 0
        %1740 = vmatprep.subr.bf16.mxu0 0
        %1741 = vmatpush1.bf16.msra.mxu0 0
        %1742 = vmatprep.subr.bf16.mxu0 0
        %1743 = vmatpush1.bf16.msra.mxu0 0
        %1744 = vmatprep.subr.bf16.mxu0 0
        %1745 = vmatpush1.bf16.msra.mxu0 0
        %1746 = vmatprep.subr.bf16.mxu0 0
        %1747 = vmatpush1.bf16.msra.mxu0 0
        %1748 = vmatprep.subr.bf16.mxu0 0
        %1749 = vmatpush1.bf16.msra.mxu0 0
        %1750 = vmatprep.mubr.bf16.mxu0 0
        %1751 = vmatmul.mubr.bf16.gmra.mrb[0].mxu0 %v1459
        %v1752 = vpop.f32.mrb[0].mxu0
        %v1753 = vadd.f32 %v1414, %v1752
        %v1754 = vpop.f32.mrb[0].mxu0
        %v1755 = vpop.f32.mrb[0].mxu0
        %v1756 = vadd.f32 %v1414, %v1755
        %v1757 = vpop.f32.mrb[0].mxu0
        %1758 = vmatprep.mubr.bf16.mxu0 0
        %1759 = vmatmul.mubr.bf16.gmra.mrb[0].mxu0 %v1461
        %v1760 = vpop.f32.mrb[0].mxu0
        %v1761 = vadd.f32 %v1414, %v1760
        %v1762 = vpop.f32.mrb[0].mxu0
        %v1763 = vpop.f32.mrb[0].mxu0
        %v1764 = vadd.f32 %v1414, %v1763
        %v1765 = vpop.f32.mrb[0].mxu0
        %1766 = vmatprep.mubr.bf16.mxu0 0
        %1767 = vmatmul.mubr.bf16.gmra.mrb[0].mxu0 %v1463
        %v1768 = vpop.f32.mrb[0].mxu0
        %v1769 = vadd.f32 %v1414, %v1768
        %v1770 = vpop.f32.mrb[0].mxu0
        %v1771 = vpop.f32.mrb[0].mxu0
        %v1772 = vadd.f32 %v1414, %v1771
        %v1773 = vpop.f32.mrb[0].mxu0
        %1774 = vmatprep.mubr.bf16.mxu0 0
        %1775 = vmatmul.mubr.bf16.gmra.mrb[0].mxu0 %v1465
        %v1776 = vpop.f32.mrb[0].mxu0
        %v1777 = vadd.f32 %v1414, %v1776
        %v1778 = vpop.f32.mrb[0].mxu0
        %v1779 = vpop.f32.mrb[0].mxu0
        %v1780 = vadd.f32 %v1414, %v1779
        %v1781 = vpop.f32.mrb[0].mxu0
        %1782 = vmatprep.mubr.bf16.mxu0 0
        %1783 = vmatmul.mubr.bf16.gmra.mrb[0].mxu0 %v1467
        %v1784 = vpop.f32.mrb[0].mxu0
        %v1785 = vadd.f32 %v1414, %v1784
        %v1786 = vpop.f32.mrb[0].mxu0
        %v1787 = vpop.f32.mrb[0].mxu0
        %v1788 = vadd.f32 %v1414, %v1787
        %v1789 = vpop.f32.mrb[0].mxu0
        %1790 = vmatprep.mubr.bf16.mxu0 0
        %1791 = vmatmul.mubr.bf16.gmra.mrb[0].mxu0 %v1469
        %v1792 = vpop.f32.mrb[0].mxu0
        %v1793 = vadd.f32 %v1414, %v1792
        %v1794 = vpop.f32.mrb[0].mxu0
        %v1795 = vpop.f32.mrb[0].mxu0
        %v1796 = vadd.f32 %v1414, %v1795
        %v1797 = vpop.f32.mrb[0].mxu0
        %1798 = vmatprep.mubr.bf16.mxu0 0
        %1799 = vmatmul.mubr.bf16.gmra.mrb[0].mxu0 %v1471
        %v1800 = vpop.f32.mrb[0].mxu0
        %v1801 = vadd.f32 %v1414, %v1800
        %v1802 = vpop.f32.mrb[0].mxu0
        %v1803 = vpop.f32.mrb[0].mxu0
        %v1804 = vadd.f32 %v1414, %v1803
        %v1805 = vpop.f32.mrb[0].mxu0
        %1806 = vmatprep.mubr.bf16.mxu0 0
        %1807 = vmatmul.mubr.bf16.gmra.mrb[0].mxu0 %v1473
        %v1808 = vpop.f32.mrb[0].mxu0
        %v1809 = vadd.f32 %v1414, %v1808
        %v1810 = vpop.f32.mrb[0].mxu0
        %v1811 = vpop.f32.mrb[0].mxu0
        %v1812 = vadd.f32 %v1414, %v1811
        %v1813 = vpop.f32.mrb[0].mxu0
        %1814 = vmatprep.mubr.bf16.mxu0 0
        %1815 = vmatmul.mubr.bf16.gmra.mrb[0].mxu0 %v1475
        %v1816 = vpop.f32.mrb[0].mxu0
        %v1817 = vadd.f32 %v1414, %v1816
        %v1818 = vpop.f32.mrb[0].mxu0
        %v1819 = vpop.f32.mrb[0].mxu0
        %v1820 = vadd.f32 %v1414, %v1819
        %v1821 = vpop.f32.mrb[0].mxu0
        %1822 = vmatprep.mubr.bf16.mxu0 0
        %1823 = vmatmul.mubr.bf16.gmra.mrb[0].mxu0 %v1477
        %v1824 = vpop.f32.mrb[0].mxu0
        %v1825 = vadd.f32 %v1414, %v1824
        %v1826 = vpop.f32.mrb[0].mxu0
        %v1827 = vpop.f32.mrb[0].mxu0
        %v1828 = vadd.f32 %v1414, %v1827
        %v1829 = vpop.f32.mrb[0].mxu0
        %1830 = vmatprep.mubr.bf16.mxu0 0
        %1831 = vmatmul.mubr.bf16.gmra.mrb[0].mxu0 %v1479
        %v1832 = vpop.f32.mrb[0].mxu0
        %v1833 = vadd.f32 %v1414, %v1832
        %v1834 = vpop.f32.mrb[0].mxu0
        %v1835 = vpop.f32.mrb[0].mxu0
        %v1836 = vadd.f32 %v1414, %v1835
        %v1837 = vpop.f32.mrb[0].mxu0
        %1838 = vmatprep.mubr.bf16.mxu0 0
        %1839 = vmatmul.mubr.bf16.gmra.mrb[0].mxu0 %v1481
        %v1840 = vpop.f32.mrb[0].mxu0
        %v1841 = vadd.f32 %v1414, %v1840
        %v1842 = vpop.f32.mrb[0].mxu0
        %v1843 = vpop.f32.mrb[0].mxu0
        %v1844 = vadd.f32 %v1414, %v1843
        %v1845 = vpop.f32.mrb[0].mxu0
        %1846 = vmatprep.mubr.bf16.mxu0 0
        %1847 = vmatmul.mubr.bf16.gmra.mrb[0].mxu0 %v1483
        %v1848 = vpop.f32.mrb[0].mxu0
        %v1849 = vadd.f32 %v1414, %v1848
        %v1850 = vpop.f32.mrb[0].mxu0
        %v1851 = vpop.f32.mrb[0].mxu0
        %v1852 = vadd.f32 %v1414, %v1851
        %v1853 = vpop.f32.mrb[0].mxu0
        %1854 = vmatprep.mubr.bf16.mxu0 0
        %1855 = vmatmul.mubr.bf16.gmra.mrb[0].mxu0 %v1485
        %v1856 = vpop.f32.mrb[0].mxu0
        %v1857 = vadd.f32 %v1414, %v1856
        %v1858 = vpop.f32.mrb[0].mxu0
        %v1859 = vpop.f32.mrb[0].mxu0
        %v1860 = vadd.f32 %v1414, %v1859
        %v1861 = vpop.f32.mrb[0].mxu0
        %1862 = vmatprep.mubr.bf16.mxu0 0
        %1863 = vmatmul.mubr.bf16.gmra.mrb[0].mxu0 %v1487
        %v1864 = vpop.f32.mrb[0].mxu0
        %v1865 = vadd.f32 %v1414, %v1864
        %v1866 = vpop.f32.mrb[0].mxu0
        %v1867 = vpop.f32.mrb[0].mxu0
        %v1868 = vadd.f32 %v1414, %v1867
        %v1869 = vpop.f32.mrb[0].mxu0
        %1870 = vmatprep.mubr.bf16.mxu0 0
        %1871 = vmatmul.mubr.bf16.gmra.mrb[0].mxu0 %v1489
        %v1872 = vpop.f32.mrb[0].mxu0
        %v1873 = vadd.f32 %v1414, %v1872
        %v1874 = vpop.f32.mrb[0].mxu0
        %v1875 = vpop.f32.mrb[0].mxu0
        %v1876 = vadd.f32 %v1414, %v1875
        %v1877 = vpop.f32.mrb[0].mxu0
        %1878 = vmatprep.mubr.bf16.mxu0 0
        %1879 = vmatmul.mubr.bf16.gmra.mrb[0].mxu0 %v1491
        %v1880 = vpop.f32.mrb[0].mxu0
        %v1881 = vadd.f32 %v1414, %v1880
        %v1882 = vpop.f32.mrb[0].mxu0
        %v1883 = vpop.f32.mrb[0].mxu0
        %v1884 = vadd.f32 %v1414, %v1883
        %v1885 = vpop.f32.mrb[0].mxu0
        %1886 = vmatprep.mubr.bf16.mxu0 0
        %1887 = vmatmul.mubr.bf16.gmra.mrb[0].mxu0 %v1493
        %v1888 = vpop.f32.mrb[0].mxu0
        %v1889 = vadd.f32 %v1414, %v1888
        %v1890 = vpop.f32.mrb[0].mxu0
        %v1891 = vpop.f32.mrb[0].mxu0
        %v1892 = vadd.f32 %v1414, %v1891
        %v1893 = vpop.f32.mrb[0].mxu0
        %1894 = vdwg.mxu0
        %v1895 = vsub.f32 0.0, %v1542
        %v1896 = vsub.f32 0.0, %v1546
        %v1897 = vsub.f32 0.0, %v1552
        %v1898 = vsub.f32 0.0, %v1556
        %v1899 = vsub.f32 0.0, %v1562
        %v1900 = vsub.f32 0.0, %v1566
        %v1901 = vsub.f32 0.0, %v1572
        %v1902 = vsub.f32 0.0, %v1576
        %v1903 = vsub.f32 0.0, %v1582
        %v1904 = vsub.f32 0.0, %v1586
        %v1905 = vsub.f32 0.0, %v1592
        %v1906 = vsub.f32 0.0, %v1596
        %v1907 = vsub.f32 0.0, %v1602
        %v1908 = vsub.f32 0.0, %v1606
        %v1909 = vsub.f32 0.0, %v1612
        %v1910 = vsub.f32 0.0, %v1616
        %v1911 = vsub.f32 0.0, %v1622
        %v1912 = vsub.f32 0.0, %v1626
        %v1913 = vsub.f32 0.0, %v1632
        %v1914 = vsub.f32 0.0, %v1636
        %v1915 = vsub.f32 0.0, %v1642
        %v1916 = vsub.f32 0.0, %v1646
        %v1917 = vsub.f32 0.0, %v1652
        %v1918 = vsub.f32 0.0, %v1656
        %v1919 = vsub.f32 0.0, %v1662
        %v1920 = vsub.f32 0.0, %v1666
        %v1921 = vsub.f32 0.0, %v1672
        %v1922 = vsub.f32 0.0, %v1676
        %v1923 = vsub.f32 0.0, %v1682
        %v1924 = vsub.f32 0.0, %v1686
        %v1925 = vsub.f32 0.0, %v1692
        %v1926 = vsub.f32 0.0, %v1696
        %v1927 = vsub.f32 0.0, %v1702
        %v1928 = vsub.f32 0.0, %v1706
        %v1929 = vsub.f32 0.0, %v1712
        %v1930 = vsub.f32 0.0, %v1716
        %v1931 = vmul.f32 %v1895, 1.442695
        %v1932 = vpow.pop %v1931
        %v1933 = vmul.f32 %v1896, 1.442695
        %v1934 = vpow.pop %v1933
        %v1935 = vmul.f32 %v1897, 1.442695
        %v1936 = vpow.pop %v1935
        %v1937 = vmul.f32 %v1898, 1.442695
        %v1938 = vpow.pop %v1937
        %v1939 = vmul.f32 %v1899, 1.442695
        %v1940 = vpow.pop %v1939
        %v1941 = vmul.f32 %v1900, 1.442695
        %v1942 = vpow.pop %v1941
        %v1943 = vmul.f32 %v1901, 1.442695
        %v1944 = vpow.pop %v1943
        %v1945 = vmul.f32 %v1902, 1.442695
        %v1946 = vpow.pop %v1945
        %v1947 = vmul.f32 %v1903, 1.442695
        %v1948 = vpow.pop %v1947
        %v1949 = vmul.f32 %v1904, 1.442695
        %v1950 = vpow.pop %v1949
        %v1951 = vmul.f32 %v1905, 1.442695
        %v1952 = vpow.pop %v1951
        %v1953 = vmul.f32 %v1906, 1.442695
        %v1954 = vpow.pop %v1953
        %v1955 = vmul.f32 %v1907, 1.442695
        %v1956 = vpow.pop %v1955
        %v1957 = vmul.f32 %v1908, 1.442695
        %v1958 = vpow.pop %v1957
        %v1959 = vmul.f32 %v1909, 1.442695
        %v1960 = vpow.pop %v1959
        %v1961 = vmul.f32 %v1910, 1.442695
        %v1962 = vpow.pop %v1961
        %v1963 = vmul.f32 %v1911, 1.442695
        %v1964 = vpow.pop %v1963
        %v1965 = vmul.f32 %v1912, 1.442695
        %v1966 = vpow.pop %v1965
        %v1967 = vmul.f32 %v1913, 1.442695
        %v1968 = vpow.pop %v1967
        %v1969 = vmul.f32 %v1914, 1.442695
        %v1970 = vpow.pop %v1969
        %v1971 = vmul.f32 %v1915, 1.442695
        %v1972 = vpow.pop %v1971
        %v1973 = vmul.f32 %v1916, 1.442695
        %v1974 = vpow.pop %v1973
        %v1975 = vmul.f32 %v1917, 1.442695
        %v1976 = vpow.pop %v1975
        %v1977 = vmul.f32 %v1918, 1.442695
        %v1978 = vpow.pop %v1977
        %v1979 = vmul.f32 %v1919, 1.442695
        %v1980 = vpow.pop %v1979
        %v1981 = vmul.f32 %v1920, 1.442695
        %v1982 = vpow.pop %v1981
        %v1983 = vmul.f32 %v1921, 1.442695
        %v1984 = vpow.pop %v1983
        %v1985 = vmul.f32 %v1922, 1.442695
        %v1986 = vpow.pop %v1985
        %v1987 = vmul.f32 %v1923, 1.442695
        %v1988 = vpow.pop %v1987
        %v1989 = vmul.f32 %v1924, 1.442695
        %v1990 = vpow.pop %v1989
        %v1991 = vmul.f32 %v1925, 1.442695
        %v1992 = vpow.pop %v1991
        %v1993 = vmul.f32 %v1926, 1.442695
        %v1994 = vpow.pop %v1993
        %v1995 = vmul.f32 %v1927, 1.442695
        %v1996 = vpow.pop %v1995
        %v1997 = vmul.f32 %v1928, 1.442695
        %v1998 = vpow.pop %v1997
        %v1999 = vmul.f32 %v1929, 1.442695
        %v2000 = vpow.pop %v1999
        %v2001 = vmul.f32 %v1930, 1.442695
        %v2002 = vpow.pop %v2001
        %v2003 = vadd.f32 %v1932, 1.0
        %v2004 = vadd.f32 %v1934, 1.0
        %v2005 = vadd.f32 %v1936, 1.0
        %v2006 = vadd.f32 %v1938, 1.0
        %v2007 = vadd.f32 %v1940, 1.0
        %v2008 = vadd.f32 %v1942, 1.0
        %v2009 = vadd.f32 %v1944, 1.0
        %v2010 = vadd.f32 %v1946, 1.0
        %v2011 = vadd.f32 %v1948, 1.0
        %v2012 = vadd.f32 %v1950, 1.0
        %v2013 = vadd.f32 %v1952, 1.0
        %v2014 = vadd.f32 %v1954, 1.0
        %v2015 = vadd.f32 %v1956, 1.0
        %v2016 = vadd.f32 %v1958, 1.0
        %v2017 = vadd.f32 %v1960, 1.0
        %v2018 = vadd.f32 %v1962, 1.0
        %v2019 = vadd.f32 %v1964, 1.0
        %v2020 = vadd.f32 %v1966, 1.0
        %v2021 = vadd.f32 %v1968, 1.0
        %v2022 = vadd.f32 %v1970, 1.0
        %v2023 = vadd.f32 %v1972, 1.0
        %v2024 = vadd.f32 %v1974, 1.0
        %v2025 = vadd.f32 %v1976, 1.0
        %v2026 = vadd.f32 %v1978, 1.0
        %v2027 = vadd.f32 %v1980, 1.0
        %v2028 = vadd.f32 %v1982, 1.0
        %v2029 = vadd.f32 %v1984, 1.0
        %v2030 = vadd.f32 %v1986, 1.0
        %v2031 = vadd.f32 %v1988, 1.0
        %v2032 = vadd.f32 %v1990, 1.0
        %v2033 = vadd.f32 %v1992, 1.0
        %v2034 = vadd.f32 %v1994, 1.0
        %v2035 = vadd.f32 %v1996, 1.0
        %v2036 = vadd.f32 %v1998, 1.0
        %v2037 = vadd.f32 %v2000, 1.0
        %v2038 = vadd.f32 %v2002, 1.0
        %v2039 = vrcp.pop %v2003
        %v2040 = vrcp.pop %v2004
        %v2041 = vrcp.pop %v2005
        %v2042 = vrcp.pop %v2006
        %v2043 = vrcp.pop %v2007
        %v2044 = vrcp.pop %v2008
        %v2045 = vrcp.pop %v2009
        %v2046 = vrcp.pop %v2010
        %v2047 = vrcp.pop %v2011
        %v2048 = vrcp.pop %v2012
        %v2049 = vrcp.pop %v2013
        %v2050 = vrcp.pop %v2014
        %v2051 = vrcp.pop %v2015
        %v2052 = vrcp.pop %v2016
        %v2053 = vrcp.pop %v2017
        %v2054 = vrcp.pop %v2018
        %v2055 = vrcp.pop %v2019
        %v2056 = vrcp.pop %v2020
        %v2057 = vrcp.pop %v2021
        %v2058 = vrcp.pop %v2022
        %v2059 = vrcp.pop %v2023
        %v2060 = vrcp.pop %v2024
        %v2061 = vrcp.pop %v2025
        %v2062 = vrcp.pop %v2026
        %v2063 = vrcp.pop %v2027
        %v2064 = vrcp.pop %v2028
        %v2065 = vrcp.pop %v2029
        %v2066 = vrcp.pop %v2030
        %v2067 = vrcp.pop %v2031
        %v2068 = vrcp.pop %v2032
        %v2069 = vrcp.pop %v2033
        %v2070 = vrcp.pop %v2034
        %v2071 = vrcp.pop %v2035
        %v2072 = vrcp.pop %v2036
        %v2073 = vrcp.pop %v2037
        %v2074 = vrcp.pop %v2038
        %v2075 = vmul.f32 %v1540, %v2039
        %v2076 = vmul.f32 %v1544, %v2040
        %v2077 = vmul.f32 %v1550, %v2041
        %v2078 = vmul.f32 %v1554, %v2042
        %v2079 = vmul.f32 %v1560, %v2043
        %v2080 = vmul.f32 %v1564, %v2044
        %v2081 = vmul.f32 %v1570, %v2045
        %v2082 = vmul.f32 %v1574, %v2046
        %v2083 = vmul.f32 %v1580, %v2047
        %v2084 = vmul.f32 %v1584, %v2048
        %v2085 = vmul.f32 %v1590, %v2049
        %v2086 = vmul.f32 %v1594, %v2050
        %v2087 = vmul.f32 %v1600, %v2051
        %v2088 = vmul.f32 %v1604, %v2052
        %v2089 = vmul.f32 %v1610, %v2053
        %v2090 = vmul.f32 %v1614, %v2054
        %v2091 = vmul.f32 %v1620, %v2055
        %v2092 = vmul.f32 %v1624, %v2056
        %v2093 = vmul.f32 %v1630, %v2057
        %v2094 = vmul.f32 %v1634, %v2058
        %v2095 = vmul.f32 %v1640, %v2059
        %v2096 = vmul.f32 %v1644, %v2060
        %v2097 = vmul.f32 %v1650, %v2061
        %v2098 = vmul.f32 %v1654, %v2062
        %v2099 = vmul.f32 %v1660, %v2063
        %v2100 = vmul.f32 %v1664, %v2064
        %v2101 = vmul.f32 %v1670, %v2065
        %v2102 = vmul.f32 %v1674, %v2066
        %v2103 = vmul.f32 %v1680, %v2067
        %v2104 = vmul.f32 %v1684, %v2068
        %v2105 = vmul.f32 %v1690, %v2069
        %v2106 = vmul.f32 %v1694, %v2070
        %v2107 = vmul.f32 %v1700, %v2071
        %v2108 = vmul.f32 %v1704, %v2072
        %v2109 = vmul.f32 %v1710, %v2073
        %v2110 = vmul.f32 %v1714, %v2074
        %v2111 = vlaneseq
        %v2112 = vshrl.u32 %v2111, 7
        %v2113 = vadd.s32 %v2112, 8
        %v2114 = vadd.s32 %v2112, 16
        %v2115 = vadd.s32 %v2112, 24
        %v2116 = vadd.s32 %v2112, 32
        %v2117 = vadd.s32 %v2112, 40
        %v2118 = vadd.s32 %v2112, 48
        %v2119 = vadd.s32 %v2112, 56
        %v2120 = vadd.s32 %v2112, 64
        %v2121 = vadd.s32 %v2112, 72
        %v2122 = vadd.s32 %v2112, 80
        %v2123 = vadd.s32 %v2112, 88
        %v2124 = vadd.s32 %v2112, 96
        %v2125 = vadd.s32 %v2112, 104
        %v2126 = vadd.s32 %v2112, 112
        %v2127 = vadd.s32 %v2112, 120
        %v2128 = vadd.s32 %v2112, 128
        %v2129 = vadd.s32 %v2112, 136
        %v2130 = vadd.s32 %v2112, 144
        %v2131 = vadd.s32 %v2112, 152
        %v2132 = vadd.s32 %v2112, 160
        %v2133 = vadd.s32 %v2112, 168
        %v2134 = vadd.s32 %v2112, 176
        %v2135 = vadd.s32 %v2112, 184
        %v2136 = vadd.s32 %v2112, 192
        %v2137 = vadd.s32 %v2112, 200
        %v2138 = vadd.s32 %v2112, 208
        %v2139 = vadd.s32 %v2112, 216
        %v2140 = vadd.s32 %v2112, 224
        %v2141 = vadd.s32 %v2112, 232
        %v2142 = vadd.s32 %v2112, 240
        %v2143 = vadd.s32 %v2112, 248
        %v2144 = vadd.s32 %v2112, 256
        %v2145 = vadd.s32 %v2112, 264
        %v2146 = vadd.s32 %v2112, 272
        %v2147 = vadd.s32 %v2112, 280
        %vm2148 = vcmp.lt.s32.totalorder %v2112, 0
        %v2149 = vsub.s32 0, %v2112
        %v2150 = vsel %vm2148, %v2149, %v2112
        %v2151 = vmul.u32.u64.compose %v2150, 3817748708
        %v2152 = vextract.low.u32 %v2151
        %v2153 = vextract.high.u32 %v2151
        %v2154 = vshrl.u32 %v2153, 4
        %v2155 = vmul.u32 %v2154, 18
        %v2156 = vsub.s32 %v2150, %v2155
        %v2157 = vsub.s32 0, %v2156
        %v2158 = vsel %vm2148, %v2157, %v2156
        %vm2159 = vcmp.lt.s32.totalorder %v2113, 0
        %v2160 = vsub.s32 0, %v2113
        %v2161 = vsel %vm2159, %v2160, %v2113
        %v2162 = vmul.u32.u64.compose %v2161, 3817748708
        %v2163 = vextract.low.u32 %v2162
        %v2164 = vextract.high.u32 %v2162
        %v2165 = vshrl.u32 %v2164, 4
        %v2166 = vmul.u32 %v2165, 18
        %v2167 = vsub.s32 %v2161, %v2166
        %v2168 = vsub.s32 0, %v2167
        %v2169 = vsel %vm2159, %v2168, %v2167
        %vm2170 = vcmp.lt.s32.totalorder %v2114, 0
        %v2171 = vsub.s32 0, %v2114
        %v2172 = vsel %vm2170, %v2171, %v2114
        %v2173 = vmul.u32.u64.compose %v2172, 3817748708
        %v2174 = vextract.low.u32 %v2173
        %v2175 = vextract.high.u32 %v2173
        %v2176 = vshrl.u32 %v2175, 4
        %v2177 = vmul.u32 %v2176, 18
        %v2178 = vsub.s32 %v2172, %v2177
        %v2179 = vsub.s32 0, %v2178
        %v2180 = vsel %vm2170, %v2179, %v2178
        %vm2181 = vcmp.lt.s32.totalorder %v2115, 0
        %v2182 = vsub.s32 0, %v2115
        %v2183 = vsel %vm2181, %v2182, %v2115
        %v2184 = vmul.u32.u64.compose %v2183, 3817748708
        %v2185 = vextract.low.u32 %v2184
        %v2186 = vextract.high.u32 %v2184
        %v2187 = vshrl.u32 %v2186, 4
        %v2188 = vmul.u32 %v2187, 18
        %v2189 = vsub.s32 %v2183, %v2188
        %v2190 = vsub.s32 0, %v2189
        %v2191 = vsel %vm2181, %v2190, %v2189
        %vm2192 = vcmp.lt.s32.totalorder %v2116, 0
        %v2193 = vsub.s32 0, %v2116
        %v2194 = vsel %vm2192, %v2193, %v2116
        %v2195 = vmul.u32.u64.compose %v2194, 3817748708
        %v2196 = vextract.low.u32 %v2195
        %v2197 = vextract.high.u32 %v2195
        %v2198 = vshrl.u32 %v2197, 4
        %v2199 = vmul.u32 %v2198, 18
        %v2200 = vsub.s32 %v2194, %v2199
        %v2201 = vsub.s32 0, %v2200
        %v2202 = vsel %vm2192, %v2201, %v2200
        %vm2203 = vcmp.lt.s32.totalorder %v2117, 0
        %v2204 = vsub.s32 0, %v2117
        %v2205 = vsel %vm2203, %v2204, %v2117
        %v2206 = vmul.u32.u64.compose %v2205, 3817748708
        %v2207 = vextract.low.u32 %v2206
        %v2208 = vextract.high.u32 %v2206
        %v2209 = vshrl.u32 %v2208, 4
        %v2210 = vmul.u32 %v2209, 18
        %v2211 = vsub.s32 %v2205, %v2210
        %v2212 = vsub.s32 0, %v2211
        %v2213 = vsel %vm2203, %v2212, %v2211
        %vm2214 = vcmp.lt.s32.totalorder %v2118, 0
        %v2215 = vsub.s32 0, %v2118
        %v2216 = vsel %vm2214, %v2215, %v2118
        %v2217 = vmul.u32.u64.compose %v2216, 3817748708
        %v2218 = vextract.low.u32 %v2217
        %v2219 = vextract.high.u32 %v2217
        %v2220 = vshrl.u32 %v2219, 4
        %v2221 = vmul.u32 %v2220, 18
        %v2222 = vsub.s32 %v2216, %v2221
        %v2223 = vsub.s32 0, %v2222
        %v2224 = vsel %vm2214, %v2223, %v2222
        %vm2225 = vcmp.lt.s32.totalorder %v2119, 0
        %v2226 = vsub.s32 0, %v2119
        %v2227 = vsel %vm2225, %v2226, %v2119
        %v2228 = vmul.u32.u64.compose %v2227, 3817748708
        %v2229 = vextract.low.u32 %v2228
        %v2230 = vextract.high.u32 %v2228
        %v2231 = vshrl.u32 %v2230, 4
        %v2232 = vmul.u32 %v2231, 18
        %v2233 = vsub.s32 %v2227, %v2232
        %v2234 = vsub.s32 0, %v2233
        %v2235 = vsel %vm2225, %v2234, %v2233
        %vm2236 = vcmp.lt.s32.totalorder %v2120, 0
        %v2237 = vsub.s32 0, %v2120
        %v2238 = vsel %vm2236, %v2237, %v2120
        %v2239 = vmul.u32.u64.compose %v2238, 3817748708
        %v2240 = vextract.low.u32 %v2239
        %v2241 = vextract.high.u32 %v2239
        %v2242 = vshrl.u32 %v2241, 4
        %v2243 = vmul.u32 %v2242, 18
        %v2244 = vsub.s32 %v2238, %v2243
        %v2245 = vsub.s32 0, %v2244
        %v2246 = vsel %vm2236, %v2245, %v2244
        %vm2247 = vcmp.lt.s32.totalorder %v2121, 0
        %v2248 = vsub.s32 0, %v2121
        %v2249 = vsel %vm2247, %v2248, %v2121
        %v2250 = vmul.u32.u64.compose %v2249, 3817748708
        %v2251 = vextract.low.u32 %v2250
        %v2252 = vextract.high.u32 %v2250
        %v2253 = vshrl.u32 %v2252, 4
        %v2254 = vmul.u32 %v2253, 18
        %v2255 = vsub.s32 %v2249, %v2254
        %v2256 = vsub.s32 0, %v2255
        %v2257 = vsel %vm2247, %v2256, %v2255
        %vm2258 = vcmp.lt.s32.totalorder %v2122, 0
        %v2259 = vsub.s32 0, %v2122
        %v2260 = vsel %vm2258, %v2259, %v2122
        %v2261 = vmul.u32.u64.compose %v2260, 3817748708
        %v2262 = vextract.low.u32 %v2261
        %v2263 = vextract.high.u32 %v2261
        %v2264 = vshrl.u32 %v2263, 4
        %v2265 = vmul.u32 %v2264, 18
        %v2266 = vsub.s32 %v2260, %v2265
        %v2267 = vsub.s32 0, %v2266
        %v2268 = vsel %vm2258, %v2267, %v2266
        %vm2269 = vcmp.lt.s32.totalorder %v2123, 0
        %v2270 = vsub.s32 0, %v2123
        %v2271 = vsel %vm2269, %v2270, %v2123
        %v2272 = vmul.u32.u64.compose %v2271, 3817748708
        %v2273 = vextract.low.u32 %v2272
        %v2274 = vextract.high.u32 %v2272
        %v2275 = vshrl.u32 %v2274, 4
        %v2276 = vmul.u32 %v2275, 18
        %v2277 = vsub.s32 %v2271, %v2276
        %v2278 = vsub.s32 0, %v2277
        %v2279 = vsel %vm2269, %v2278, %v2277
        %vm2280 = vcmp.lt.s32.totalorder %v2124, 0
        %v2281 = vsub.s32 0, %v2124
        %v2282 = vsel %vm2280, %v2281, %v2124
        %v2283 = vmul.u32.u64.compose %v2282, 3817748708
        %v2284 = vextract.low.u32 %v2283
        %v2285 = vextract.high.u32 %v2283
        %v2286 = vshrl.u32 %v2285, 4
        %v2287 = vmul.u32 %v2286, 18
        %v2288 = vsub.s32 %v2282, %v2287
        %v2289 = vsub.s32 0, %v2288
        %v2290 = vsel %vm2280, %v2289, %v2288
        %vm2291 = vcmp.lt.s32.totalorder %v2125, 0
        %v2292 = vsub.s32 0, %v2125
        %v2293 = vsel %vm2291, %v2292, %v2125
        %v2294 = vmul.u32.u64.compose %v2293, 3817748708
        %v2295 = vextract.low.u32 %v2294
        %v2296 = vextract.high.u32 %v2294
        %v2297 = vshrl.u32 %v2296, 4
        %v2298 = vmul.u32 %v2297, 18
        %v2299 = vsub.s32 %v2293, %v2298
        %v2300 = vsub.s32 0, %v2299
        %v2301 = vsel %vm2291, %v2300, %v2299
        %vm2302 = vcmp.lt.s32.totalorder %v2126, 0
        %v2303 = vsub.s32 0, %v2126
        %v2304 = vsel %vm2302, %v2303, %v2126
        %v2305 = vmul.u32.u64.compose %v2304, 3817748708
        %v2306 = vextract.low.u32 %v2305
        %v2307 = vextract.high.u32 %v2305
        %v2308 = vshrl.u32 %v2307, 4
        %v2309 = vmul.u32 %v2308, 18
        %v2310 = vsub.s32 %v2304, %v2309
        %v2311 = vsub.s32 0, %v2310
        %v2312 = vsel %vm2302, %v2311, %v2310
        %vm2313 = vcmp.lt.s32.totalorder %v2127, 0
        %v2314 = vsub.s32 0, %v2127
        %v2315 = vsel %vm2313, %v2314, %v2127
        %v2316 = vmul.u32.u64.compose %v2315, 3817748708
        %v2317 = vextract.low.u32 %v2316
        %v2318 = vextract.high.u32 %v2316
        %v2319 = vshrl.u32 %v2318, 4
        %v2320 = vmul.u32 %v2319, 18
        %v2321 = vsub.s32 %v2315, %v2320
        %v2322 = vsub.s32 0, %v2321
        %v2323 = vsel %vm2313, %v2322, %v2321
        %vm2324 = vcmp.lt.s32.totalorder %v2128, 0
        %v2325 = vsub.s32 0, %v2128
        %v2326 = vsel %vm2324, %v2325, %v2128
        %v2327 = vmul.u32.u64.compose %v2326, 3817748708
        %v2328 = vextract.low.u32 %v2327
        %v2329 = vextract.high.u32 %v2327
        %v2330 = vshrl.u32 %v2329, 4
        %v2331 = vmul.u32 %v2330, 18
        %v2332 = vsub.s32 %v2326, %v2331
        %v2333 = vsub.s32 0, %v2332
        %v2334 = vsel %vm2324, %v2333, %v2332
        %vm2335 = vcmp.lt.s32.totalorder %v2129, 0
        %v2336 = vsub.s32 0, %v2129
        %v2337 = vsel %vm2335, %v2336, %v2129
        %v2338 = vmul.u32.u64.compose %v2337, 3817748708
        %v2339 = vextract.low.u32 %v2338
        %v2340 = vextract.high.u32 %v2338
        %v2341 = vshrl.u32 %v2340, 4
        %v2342 = vmul.u32 %v2341, 18
        %v2343 = vsub.s32 %v2337, %v2342
        %v2344 = vsub.s32 0, %v2343
        %v2345 = vsel %vm2335, %v2344, %v2343
        %vm2346 = vcmp.lt.s32.totalorder %v2130, 0
        %v2347 = vsub.s32 0, %v2130
        %v2348 = vsel %vm2346, %v2347, %v2130
        %v2349 = vmul.u32.u64.compose %v2348, 3817748708
        %v2350 = vextract.low.u32 %v2349
        %v2351 = vextract.high.u32 %v2349
        %v2352 = vshrl.u32 %v2351, 4
        %v2353 = vmul.u32 %v2352, 18
        %v2354 = vsub.s32 %v2348, %v2353
        %v2355 = vsub.s32 0, %v2354
        %v2356 = vsel %vm2346, %v2355, %v2354
        %vm2357 = vcmp.lt.s32.totalorder %v2131, 0
        %v2358 = vsub.s32 0, %v2131
        %v2359 = vsel %vm2357, %v2358, %v2131
        %v2360 = vmul.u32.u64.compose %v2359, 3817748708
        %v2361 = vextract.low.u32 %v2360
        %v2362 = vextract.high.u32 %v2360
        %v2363 = vshrl.u32 %v2362, 4
        %v2364 = vmul.u32 %v2363, 18
        %v2365 = vsub.s32 %v2359, %v2364
        %v2366 = vsub.s32 0, %v2365
        %v2367 = vsel %vm2357, %v2366, %v2365
        %vm2368 = vcmp.lt.s32.totalorder %v2132, 0
        %v2369 = vsub.s32 0, %v2132
        %v2370 = vsel %vm2368, %v2369, %v2132
        %v2371 = vmul.u32.u64.compose %v2370, 3817748708
        %v2372 = vextract.low.u32 %v2371
        %v2373 = vextract.high.u32 %v2371
        %v2374 = vshrl.u32 %v2373, 4
        %v2375 = vmul.u32 %v2374, 18
        %v2376 = vsub.s32 %v2370, %v2375
        %v2377 = vsub.s32 0, %v2376
        %v2378 = vsel %vm2368, %v2377, %v2376
        %vm2379 = vcmp.lt.s32.totalorder %v2133, 0
        %v2380 = vsub.s32 0, %v2133
        %v2381 = vsel %vm2379, %v2380, %v2133
        %v2382 = vmul.u32.u64.compose %v2381, 3817748708
        %v2383 = vextract.low.u32 %v2382
        %v2384 = vextract.high.u32 %v2382
        %v2385 = vshrl.u32 %v2384, 4
        %v2386 = vmul.u32 %v2385, 18
        %v2387 = vsub.s32 %v2381, %v2386
        %v2388 = vsub.s32 0, %v2387
        %v2389 = vsel %vm2379, %v2388, %v2387
        %vm2390 = vcmp.lt.s32.totalorder %v2134, 0
        %v2391 = vsub.s32 0, %v2134
        %v2392 = vsel %vm2390, %v2391, %v2134
        %v2393 = vmul.u32.u64.compose %v2392, 3817748708
        %v2394 = vextract.low.u32 %v2393
        %v2395 = vextract.high.u32 %v2393
        %v2396 = vshrl.u32 %v2395, 4
        %v2397 = vmul.u32 %v2396, 18
        %v2398 = vsub.s32 %v2392, %v2397
        %v2399 = vsub.s32 0, %v2398
        %v2400 = vsel %vm2390, %v2399, %v2398
        %vm2401 = vcmp.lt.s32.totalorder %v2135, 0
        %v2402 = vsub.s32 0, %v2135
        %v2403 = vsel %vm2401, %v2402, %v2135
        %v2404 = vmul.u32.u64.compose %v2403, 3817748708
        %v2405 = vextract.low.u32 %v2404
        %v2406 = vextract.high.u32 %v2404
        %v2407 = vshrl.u32 %v2406, 4
        %v2408 = vmul.u32 %v2407, 18
        %v2409 = vsub.s32 %v2403, %v2408
        %v2410 = vsub.s32 0, %v2409
        %v2411 = vsel %vm2401, %v2410, %v2409
        %vm2412 = vcmp.lt.s32.totalorder %v2136, 0
        %v2413 = vsub.s32 0, %v2136
        %v2414 = vsel %vm2412, %v2413, %v2136
        %v2415 = vmul.u32.u64.compose %v2414, 3817748708
        %v2416 = vextract.low.u32 %v2415
        %v2417 = vextract.high.u32 %v2415
        %v2418 = vshrl.u32 %v2417, 4
        %v2419 = vmul.u32 %v2418, 18
        %v2420 = vsub.s32 %v2414, %v2419
        %v2421 = vsub.s32 0, %v2420
        %v2422 = vsel %vm2412, %v2421, %v2420
        %vm2423 = vcmp.lt.s32.totalorder %v2137, 0
        %v2424 = vsub.s32 0, %v2137
        %v2425 = vsel %vm2423, %v2424, %v2137
        %v2426 = vmul.u32.u64.compose %v2425, 3817748708
        %v2427 = vextract.low.u32 %v2426
        %v2428 = vextract.high.u32 %v2426
        %v2429 = vshrl.u32 %v2428, 4
        %v2430 = vmul.u32 %v2429, 18
        %v2431 = vsub.s32 %v2425, %v2430
        %v2432 = vsub.s32 0, %v2431
        %v2433 = vsel %vm2423, %v2432, %v2431
        %vm2434 = vcmp.lt.s32.totalorder %v2138, 0
        %v2435 = vsub.s32 0, %v2138
        %v2436 = vsel %vm2434, %v2435, %v2138
        %v2437 = vmul.u32.u64.compose %v2436, 3817748708
        %v2438 = vextract.low.u32 %v2437
        %v2439 = vextract.high.u32 %v2437
        %v2440 = vshrl.u32 %v2439, 4
        %v2441 = vmul.u32 %v2440, 18
        %v2442 = vsub.s32 %v2436, %v2441
        %v2443 = vsub.s32 0, %v2442
        %v2444 = vsel %vm2434, %v2443, %v2442
        %vm2445 = vcmp.lt.s32.totalorder %v2139, 0
        %v2446 = vsub.s32 0, %v2139
        %v2447 = vsel %vm2445, %v2446, %v2139
        %v2448 = vmul.u32.u64.compose %v2447, 3817748708
        %v2449 = vextract.low.u32 %v2448
        %v2450 = vextract.high.u32 %v2448
        %v2451 = vshrl.u32 %v2450, 4
        %v2452 = vmul.u32 %v2451, 18
        %v2453 = vsub.s32 %v2447, %v2452
        %v2454 = vsub.s32 0, %v2453
        %v2455 = vsel %vm2445, %v2454, %v2453
        %vm2456 = vcmp.lt.s32.totalorder %v2140, 0
        %v2457 = vsub.s32 0, %v2140
        %v2458 = vsel %vm2456, %v2457, %v2140
        %v2459 = vmul.u32.u64.compose %v2458, 3817748708
        %v2460 = vextract.low.u32 %v2459
        %v2461 = vextract.high.u32 %v2459
        %v2462 = vshrl.u32 %v2461, 4
        %v2463 = vmul.u32 %v2462, 18
        %v2464 = vsub.s32 %v2458, %v2463
        %v2465 = vsub.s32 0, %v2464
        %v2466 = vsel %vm2456, %v2465, %v2464
        %vm2467 = vcmp.lt.s32.totalorder %v2141, 0
        %v2468 = vsub.s32 0, %v2141
        %v2469 = vsel %vm2467, %v2468, %v2141
        %v2470 = vmul.u32.u64.compose %v2469, 3817748708
        %v2471 = vextract.low.u32 %v2470
        %v2472 = vextract.high.u32 %v2470
        %v2473 = vshrl.u32 %v2472, 4
        %v2474 = vmul.u32 %v2473, 18
        %v2475 = vsub.s32 %v2469, %v2474
        %v2476 = vsub.s32 0, %v2475
        %v2477 = vsel %vm2467, %v2476, %v2475
        %vm2478 = vcmp.lt.s32.totalorder %v2142, 0
        %v2479 = vsub.s32 0, %v2142
        %v2480 = vsel %vm2478, %v2479, %v2142
        %v2481 = vmul.u32.u64.compose %v2480, 3817748708
        %v2482 = vextract.low.u32 %v2481
        %v2483 = vextract.high.u32 %v2481
        %v2484 = vshrl.u32 %v2483, 4
        %v2485 = vmul.u32 %v2484, 18
        %v2486 = vsub.s32 %v2480, %v2485
        %v2487 = vsub.s32 0, %v2486
        %v2488 = vsel %vm2478, %v2487, %v2486
        %vm2489 = vcmp.lt.s32.totalorder %v2143, 0
        %v2490 = vsub.s32 0, %v2143
        %v2491 = vsel %vm2489, %v2490, %v2143
        %v2492 = vmul.u32.u64.compose %v2491, 3817748708
        %v2493 = vextract.low.u32 %v2492
        %v2494 = vextract.high.u32 %v2492
        %v2495 = vshrl.u32 %v2494, 4
        %v2496 = vmul.u32 %v2495, 18
        %v2497 = vsub.s32 %v2491, %v2496
        %v2498 = vsub.s32 0, %v2497
        %v2499 = vsel %vm2489, %v2498, %v2497
        %vm2500 = vcmp.lt.s32.totalorder %v2144, 0
        %v2501 = vsub.s32 0, %v2144
        %v2502 = vsel %vm2500, %v2501, %v2144
        %v2503 = vmul.u32.u64.compose %v2502, 3817748708
        %v2504 = vextract.low.u32 %v2503
        %v2505 = vextract.high.u32 %v2503
        %v2506 = vshrl.u32 %v2505, 4
        %v2507 = vmul.u32 %v2506, 18
        %v2508 = vsub.s32 %v2502, %v2507
        %v2509 = vsub.s32 0, %v2508
        %v2510 = vsel %vm2500, %v2509, %v2508
        %vm2511 = vcmp.lt.s32.totalorder %v2145, 0
        %v2512 = vsub.s32 0, %v2145
        %v2513 = vsel %vm2511, %v2512, %v2145
        %v2514 = vmul.u32.u64.compose %v2513, 3817748708
        %v2515 = vextract.low.u32 %v2514
        %v2516 = vextract.high.u32 %v2514
        %v2517 = vshrl.u32 %v2516, 4
        %v2518 = vmul.u32 %v2517, 18
        %v2519 = vsub.s32 %v2513, %v2518
        %v2520 = vsub.s32 0, %v2519
        %v2521 = vsel %vm2511, %v2520, %v2519
        %vm2522 = vcmp.lt.s32.totalorder %v2146, 0
        %v2523 = vsub.s32 0, %v2146
        %v2524 = vsel %vm2522, %v2523, %v2146
        %v2525 = vmul.u32.u64.compose %v2524, 3817748708
        %v2526 = vextract.low.u32 %v2525
        %v2527 = vextract.high.u32 %v2525
        %v2528 = vshrl.u32 %v2527, 4
        %v2529 = vmul.u32 %v2528, 18
        %v2530 = vsub.s32 %v2524, %v2529
        %v2531 = vsub.s32 0, %v2530
        %v2532 = vsel %vm2522, %v2531, %v2530
        %vm2533 = vcmp.lt.s32.totalorder %v2147, 0
        %v2534 = vsub.s32 0, %v2147
        %v2535 = vsel %vm2533, %v2534, %v2147
        %v2536 = vmul.u32.u64.compose %v2535, 3817748708
        %v2537 = vextract.low.u32 %v2536
        %v2538 = vextract.high.u32 %v2536
        %v2539 = vshrl.u32 %v2538, 4
        %v2540 = vmul.u32 %v2539, 18
        %v2541 = vsub.s32 %v2535, %v2540
        %v2542 = vsub.s32 0, %v2541
        %v2543 = vsel %vm2533, %v2542, %v2541
        %vm2544 = vcmp.ne.s32.totalorder %v2158, 0
        %vm2545 = vcmp.ne.s32.totalorder %v2169, 0
        %vm2546 = vcmp.ne.s32.totalorder %v2180, 0
        %vm2547 = vcmp.ne.s32.totalorder %v2191, 0
        %vm2548 = vcmp.ne.s32.totalorder %v2202, 0
        %vm2549 = vcmp.ne.s32.totalorder %v2213, 0
        %vm2550 = vcmp.ne.s32.totalorder %v2224, 0
        %vm2551 = vcmp.ne.s32.totalorder %v2235, 0
        %vm2552 = vcmp.ne.s32.totalorder %v2246, 0
        %vm2553 = vcmp.ne.s32.totalorder %v2257, 0
        %vm2554 = vcmp.ne.s32.totalorder %v2268, 0
        %vm2555 = vcmp.ne.s32.totalorder %v2279, 0
        %vm2556 = vcmp.ne.s32.totalorder %v2290, 0
        %vm2557 = vcmp.ne.s32.totalorder %v2301, 0
        %vm2558 = vcmp.ne.s32.totalorder %v2312, 0
        %vm2559 = vcmp.ne.s32.totalorder %v2323, 0
        %vm2560 = vcmp.ne.s32.totalorder %v2334, 0
        %vm2561 = vcmp.ne.s32.totalorder %v2345, 0
        %vm2562 = vcmp.ne.s32.totalorder %v2356, 0
        %vm2563 = vcmp.ne.s32.totalorder %v2367, 0
        %vm2564 = vcmp.ne.s32.totalorder %v2378, 0
        %vm2565 = vcmp.ne.s32.totalorder %v2389, 0
        %vm2566 = vcmp.ne.s32.totalorder %v2400, 0
        %vm2567 = vcmp.ne.s32.totalorder %v2411, 0
        %vm2568 = vcmp.ne.s32.totalorder %v2422, 0
        %vm2569 = vcmp.ne.s32.totalorder %v2433, 0
        %vm2570 = vcmp.ne.s32.totalorder %v2444, 0
        %vm2571 = vcmp.ne.s32.totalorder %v2455, 0
        %vm2572 = vcmp.ne.s32.totalorder %v2466, 0
        %vm2573 = vcmp.ne.s32.totalorder %v2477, 0
        %vm2574 = vcmp.ne.s32.totalorder %v2488, 0
        %vm2575 = vcmp.ne.s32.totalorder %v2499, 0
        %vm2576 = vcmp.ne.s32.totalorder %v2510, 0
        %vm2577 = vcmp.ne.s32.totalorder %v2521, 0
        %vm2578 = vcmp.ne.s32.totalorder %v2532, 0
        %vm2579 = vcmp.ne.s32.totalorder %v2543, 0
        %vm2580 = vcmp.lt.s32.totalorder %v2158, 0
        %vm2581 = vcmp.lt.s32.totalorder %v2169, 0
        %vm2582 = vcmp.lt.s32.totalorder %v2180, 0
        %vm2583 = vcmp.lt.s32.totalorder %v2191, 0
        %vm2584 = vcmp.lt.s32.totalorder %v2202, 0
        %vm2585 = vcmp.lt.s32.totalorder %v2213, 0
        %vm2586 = vcmp.lt.s32.totalorder %v2224, 0
        %vm2587 = vcmp.lt.s32.totalorder %v2235, 0
        %vm2588 = vcmp.lt.s32.totalorder %v2246, 0
        %vm2589 = vcmp.lt.s32.totalorder %v2257, 0
        %vm2590 = vcmp.lt.s32.totalorder %v2268, 0
        %vm2591 = vcmp.lt.s32.totalorder %v2279, 0
        %vm2592 = vcmp.lt.s32.totalorder %v2290, 0
        %vm2593 = vcmp.lt.s32.totalorder %v2301, 0
        %vm2594 = vcmp.lt.s32.totalorder %v2312, 0
        %vm2595 = vcmp.lt.s32.totalorder %v2323, 0
        %vm2596 = vcmp.lt.s32.totalorder %v2334, 0
        %vm2597 = vcmp.lt.s32.totalorder %v2345, 0
        %vm2598 = vcmp.lt.s32.totalorder %v2356, 0
        %vm2599 = vcmp.lt.s32.totalorder %v2367, 0
        %vm2600 = vcmp.lt.s32.totalorder %v2378, 0
        %vm2601 = vcmp.lt.s32.totalorder %v2389, 0
        %vm2602 = vcmp.lt.s32.totalorder %v2400, 0
        %vm2603 = vcmp.lt.s32.totalorder %v2411, 0
        %vm2604 = vcmp.lt.s32.totalorder %v2422, 0
        %vm2605 = vcmp.lt.s32.totalorder %v2433, 0
        %vm2606 = vcmp.lt.s32.totalorder %v2444, 0
        %vm2607 = vcmp.lt.s32.totalorder %v2455, 0
        %vm2608 = vcmp.lt.s32.totalorder %v2466, 0
        %vm2609 = vcmp.lt.s32.totalorder %v2477, 0
        %vm2610 = vcmp.lt.s32.totalorder %v2488, 0
        %vm2611 = vcmp.lt.s32.totalorder %v2499, 0
        %vm2612 = vcmp.lt.s32.totalorder %v2510, 0
        %vm2613 = vcmp.lt.s32.totalorder %v2521, 0
        %vm2614 = vcmp.lt.s32.totalorder %v2532, 0
        %vm2615 = vcmp.lt.s32.totalorder %v2543, 0
        %vm2616 = vmand %vm2580, %vm2544
        %vm2617 = vmand %vm2581, %vm2545
        %vm2618 = vmand %vm2582, %vm2546
        %vm2619 = vmand %vm2583, %vm2547
        %vm2620 = vmand %vm2584, %vm2548
        %vm2621 = vmand %vm2585, %vm2549
        %vm2622 = vmand %vm2586, %vm2550
        %vm2623 = vmand %vm2587, %vm2551
        %vm2624 = vmand %vm2588, %vm2552
        %vm2625 = vmand %vm2589, %vm2553
        %vm2626 = vmand %vm2590, %vm2554
        %vm2627 = vmand %vm2591, %vm2555
        %vm2628 = vmand %vm2592, %vm2556
        %vm2629 = vmand %vm2593, %vm2557
        %vm2630 = vmand %vm2594, %vm2558
        %vm2631 = vmand %vm2595, %vm2559
        %vm2632 = vmand %vm2596, %vm2560
        %vm2633 = vmand %vm2597, %vm2561
        %vm2634 = vmand %vm2598, %vm2562
        %vm2635 = vmand %vm2599, %vm2563
        %vm2636 = vmand %vm2600, %vm2564
        %vm2637 = vmand %vm2601, %vm2565
        %vm2638 = vmand %vm2602, %vm2566
        %vm2639 = vmand %vm2603, %vm2567
        %vm2640 = vmand %vm2604, %vm2568
        %vm2641 = vmand %vm2605, %vm2569
        %vm2642 = vmand %vm2606, %vm2570
        %vm2643 = vmand %vm2607, %vm2571
        %vm2644 = vmand %vm2608, %vm2572
        %vm2645 = vmand %vm2609, %vm2573
        %vm2646 = vmand %vm2610, %vm2574
        %vm2647 = vmand %vm2611, %vm2575
        %vm2648 = vmand %vm2612, %vm2576
        %vm2649 = vmand %vm2613, %vm2577
        %vm2650 = vmand %vm2614, %vm2578
        %vm2651 = vmand %vm2615, %vm2579
        %v2652 = vadd.s32 %v2158, 18
        %v2653 = vadd.s32 %v2169, 18
        %v2654 = vadd.s32 %v2180, 18
        %v2655 = vadd.s32 %v2191, 18
        %v2656 = vadd.s32 %v2202, 18
        %v2657 = vadd.s32 %v2213, 18
        %v2658 = vadd.s32 %v2224, 18
        %v2659 = vadd.s32 %v2235, 18
        %v2660 = vadd.s32 %v2246, 18
        %v2661 = vadd.s32 %v2257, 18
        %v2662 = vadd.s32 %v2268, 18
        %v2663 = vadd.s32 %v2279, 18
        %v2664 = vadd.s32 %v2290, 18
        %v2665 = vadd.s32 %v2301, 18
        %v2666 = vadd.s32 %v2312, 18
        %v2667 = vadd.s32 %v2323, 18
        %v2668 = vadd.s32 %v2334, 18
        %v2669 = vadd.s32 %v2345, 18
        %v2670 = vadd.s32 %v2356, 18
        %v2671 = vadd.s32 %v2367, 18
        %v2672 = vadd.s32 %v2378, 18
        %v2673 = vadd.s32 %v2389, 18
        %v2674 = vadd.s32 %v2400, 18
        %v2675 = vadd.s32 %v2411, 18
        %v2676 = vadd.s32 %v2422, 18
        %v2677 = vadd.s32 %v2433, 18
        %v2678 = vadd.s32 %v2444, 18
        %v2679 = vadd.s32 %v2455, 18
        %v2680 = vadd.s32 %v2466, 18
        %v2681 = vadd.s32 %v2477, 18
        %v2682 = vadd.s32 %v2488, 18
        %v2683 = vadd.s32 %v2499, 18
        %v2684 = vadd.s32 %v2510, 18
        %v2685 = vadd.s32 %v2521, 18
        %v2686 = vadd.s32 %v2532, 18
        %v2687 = vadd.s32 %v2543, 18
        %v2688 = vsel %vm2616, %v2652, %v2158
        %v2689 = vsel %vm2617, %v2653, %v2169
        %v2690 = vsel %vm2618, %v2654, %v2180
        %v2691 = vsel %vm2619, %v2655, %v2191
        %v2692 = vsel %vm2620, %v2656, %v2202
        %v2693 = vsel %vm2621, %v2657, %v2213
        %v2694 = vsel %vm2622, %v2658, %v2224
        %v2695 = vsel %vm2623, %v2659, %v2235
        %v2696 = vsel %vm2624, %v2660, %v2246
        %v2697 = vsel %vm2625, %v2661, %v2257
        %v2698 = vsel %vm2626, %v2662, %v2268
        %v2699 = vsel %vm2627, %v2663, %v2279
        %v2700 = vsel %vm2628, %v2664, %v2290
        %v2701 = vsel %vm2629, %v2665, %v2301
        %v2702 = vsel %vm2630, %v2666, %v2312
        %v2703 = vsel %vm2631, %v2667, %v2323
        %v2704 = vsel %vm2632, %v2668, %v2334
        %v2705 = vsel %vm2633, %v2669, %v2345
        %v2706 = vsel %vm2634, %v2670, %v2356
        %v2707 = vsel %vm2635, %v2671, %v2367
        %v2708 = vsel %vm2636, %v2672, %v2378
        %v2709 = vsel %vm2637, %v2673, %v2389
        %v2710 = vsel %vm2638, %v2674, %v2400
        %v2711 = vsel %vm2639, %v2675, %v2411
        %v2712 = vsel %vm2640, %v2676, %v2422
        %v2713 = vsel %vm2641, %v2677, %v2433
        %v2714 = vsel %vm2642, %v2678, %v2444
        %v2715 = vsel %vm2643, %v2679, %v2455
        %v2716 = vsel %vm2644, %v2680, %v2466
        %v2717 = vsel %vm2645, %v2681, %v2477
        %v2718 = vsel %vm2646, %v2682, %v2488
        %v2719 = vsel %vm2647, %v2683, %v2499
        %v2720 = vsel %vm2648, %v2684, %v2510
        %v2721 = vsel %vm2649, %v2685, %v2521
        %v2722 = vsel %vm2650, %v2686, %v2532
        %v2723 = vsel %vm2651, %v2687, %v2543
        %vm2724 = vcmp.lt.s32.totalorder %v2688, 16
        %vm2725 = vcmp.lt.s32.totalorder %v2689, 16
        %vm2726 = vcmp.lt.s32.totalorder %v2690, 16
        %vm2727 = vcmp.lt.s32.totalorder %v2691, 16
        %vm2728 = vcmp.lt.s32.totalorder %v2692, 16
        %vm2729 = vcmp.lt.s32.totalorder %v2693, 16
        %vm2730 = vcmp.lt.s32.totalorder %v2694, 16
        %vm2731 = vcmp.lt.s32.totalorder %v2695, 16
        %vm2732 = vcmp.lt.s32.totalorder %v2696, 16
        %vm2733 = vcmp.lt.s32.totalorder %v2697, 16
        %vm2734 = vcmp.lt.s32.totalorder %v2698, 16
        %vm2735 = vcmp.lt.s32.totalorder %v2699, 16
        %vm2736 = vcmp.lt.s32.totalorder %v2700, 16
        %vm2737 = vcmp.lt.s32.totalorder %v2701, 16
        %vm2738 = vcmp.lt.s32.totalorder %v2702, 16
        %vm2739 = vcmp.lt.s32.totalorder %v2703, 16
        %vm2740 = vcmp.lt.s32.totalorder %v2704, 16
        %vm2741 = vcmp.lt.s32.totalorder %v2705, 16
        %vm2742 = vcmp.lt.s32.totalorder %v2706, 16
        %vm2743 = vcmp.lt.s32.totalorder %v2707, 16
        %vm2744 = vcmp.lt.s32.totalorder %v2708, 16
        %vm2745 = vcmp.lt.s32.totalorder %v2709, 16
        %vm2746 = vcmp.lt.s32.totalorder %v2710, 16
        %vm2747 = vcmp.lt.s32.totalorder %v2711, 16
        %vm2748 = vcmp.lt.s32.totalorder %v2712, 16
        %vm2749 = vcmp.lt.s32.totalorder %v2713, 16
        %vm2750 = vcmp.lt.s32.totalorder %v2714, 16
        %vm2751 = vcmp.lt.s32.totalorder %v2715, 16
        %vm2752 = vcmp.lt.s32.totalorder %v2716, 16
        %vm2753 = vcmp.lt.s32.totalorder %v2717, 16
        %vm2754 = vcmp.lt.s32.totalorder %v2718, 16
        %vm2755 = vcmp.lt.s32.totalorder %v2719, 16
        %vm2756 = vcmp.lt.s32.totalorder %v2720, 16
        %vm2757 = vcmp.lt.s32.totalorder %v2721, 16
        %vm2758 = vcmp.lt.s32.totalorder %v2722, 16
        %vm2759 = vcmp.lt.s32.totalorder %v2723, 16
        %v2760 = vsel %vm2724, 1, 0
        %v2761 = vsel %vm2725, 1, 0
        %v2762 = vsel %vm2726, 1, 0
        %v2763 = vsel %vm2727, 1, 0
        %v2764 = vsel %vm2728, 1, 0
        %v2765 = vsel %vm2729, 1, 0
        %v2766 = vsel %vm2730, 1, 0
        %v2767 = vsel %vm2731, 1, 0
        %v2768 = vsel %vm2732, 1, 0
        %v2769 = vsel %vm2733, 1, 0
        %v2770 = vsel %vm2734, 1, 0
        %v2771 = vsel %vm2735, 1, 0
        %v2772 = vsel %vm2736, 1, 0
        %v2773 = vsel %vm2737, 1, 0
        %v2774 = vsel %vm2738, 1, 0
        %v2775 = vsel %vm2739, 1, 0
        %v2776 = vsel %vm2740, 1, 0
        %v2777 = vsel %vm2741, 1, 0
        %v2778 = vsel %vm2742, 1, 0
        %v2779 = vsel %vm2743, 1, 0
        %v2780 = vsel %vm2744, 1, 0
        %v2781 = vsel %vm2745, 1, 0
        %v2782 = vsel %vm2746, 1, 0
        %v2783 = vsel %vm2747, 1, 0
        %v2784 = vsel %vm2748, 1, 0
        %v2785 = vsel %vm2749, 1, 0
        %v2786 = vsel %vm2750, 1, 0
        %v2787 = vsel %vm2751, 1, 0
        %v2788 = vsel %vm2752, 1, 0
        %v2789 = vsel %vm2753, 1, 0
        %v2790 = vsel %vm2754, 1, 0
        %v2791 = vsel %vm2755, 1, 0
        %v2792 = vsel %vm2756, 1, 0
        %v2793 = vsel %vm2757, 1, 0
        %v2794 = vsel %vm2758, 1, 0
        %v2795 = vsel %vm2759, 1, 0
        %vm2796 = vcmp.eq.s32.totalorder %v2760, 1
        %vm2797 = vcmp.eq.s32.totalorder %v2761, 1
        %vm2798 = vcmp.eq.s32.totalorder %v2762, 1
        %vm2799 = vcmp.eq.s32.totalorder %v2763, 1
        %vm2800 = vcmp.eq.s32.totalorder %v2764, 1
        %vm2801 = vcmp.eq.s32.totalorder %v2765, 1
        %vm2802 = vcmp.eq.s32.totalorder %v2766, 1
        %vm2803 = vcmp.eq.s32.totalorder %v2767, 1
        %vm2804 = vcmp.eq.s32.totalorder %v2768, 1
        %vm2805 = vcmp.eq.s32.totalorder %v2769, 1
        %vm2806 = vcmp.eq.s32.totalorder %v2770, 1
        %vm2807 = vcmp.eq.s32.totalorder %v2771, 1
        %vm2808 = vcmp.eq.s32.totalorder %v2772, 1
        %vm2809 = vcmp.eq.s32.totalorder %v2773, 1
        %vm2810 = vcmp.eq.s32.totalorder %v2774, 1
        %vm2811 = vcmp.eq.s32.totalorder %v2775, 1
        %vm2812 = vcmp.eq.s32.totalorder %v2776, 1
        %vm2813 = vcmp.eq.s32.totalorder %v2777, 1
        %vm2814 = vcmp.eq.s32.totalorder %v2778, 1
        %vm2815 = vcmp.eq.s32.totalorder %v2779, 1
        %vm2816 = vcmp.eq.s32.totalorder %v2780, 1
        %vm2817 = vcmp.eq.s32.totalorder %v2781, 1
        %vm2818 = vcmp.eq.s32.totalorder %v2782, 1
        %vm2819 = vcmp.eq.s32.totalorder %v2783, 1
        %vm2820 = vcmp.eq.s32.totalorder %v2784, 1
        %vm2821 = vcmp.eq.s32.totalorder %v2785, 1
        %vm2822 = vcmp.eq.s32.totalorder %v2786, 1
        %vm2823 = vcmp.eq.s32.totalorder %v2787, 1
        %vm2824 = vcmp.eq.s32.totalorder %v2788, 1
        %vm2825 = vcmp.eq.s32.totalorder %v2789, 1
        %vm2826 = vcmp.eq.s32.totalorder %v2790, 1
        %vm2827 = vcmp.eq.s32.totalorder %v2791, 1
        %vm2828 = vcmp.eq.s32.totalorder %v2792, 1
        %vm2829 = vcmp.eq.s32.totalorder %v2793, 1
        %vm2830 = vcmp.eq.s32.totalorder %v2794, 1
        %vm2831 = vcmp.eq.s32.totalorder %v2795, 1
        %v2832 = vsel %vm2796, %v2075, 0.0
        %v2833 = vsel %vm2797, %v2076, 0.0
        %v2834 = vsel %vm2798, %v2077, 0.0
        %v2835 = vsel %vm2799, %v2078, 0.0
        %v2836 = vsel %vm2800, %v2079, 0.0
        %v2837 = vsel %vm2801, %v2080, 0.0
        %v2838 = vsel %vm2802, %v2081, 0.0
        %v2839 = vsel %vm2803, %v2082, 0.0
        %v2840 = vsel %vm2804, %v2083, 0.0
        %v2841 = vsel %vm2805, %v2084, 0.0
        %v2842 = vsel %vm2806, %v2085, 0.0
        %v2843 = vsel %vm2807, %v2086, 0.0
        %v2844 = vsel %vm2808, %v2087, 0.0
        %v2845 = vsel %vm2809, %v2088, 0.0
        %v2846 = vsel %vm2810, %v2089, 0.0
        %v2847 = vsel %vm2811, %v2090, 0.0
        %v2848 = vsel %vm2812, %v2091, 0.0
        %v2849 = vsel %vm2813, %v2092, 0.0
        %v2850 = vsel %vm2814, %v2093, 0.0
        %v2851 = vsel %vm2815, %v2094, 0.0
        %v2852 = vsel %vm2816, %v2095, 0.0
        %v2853 = vsel %vm2817, %v2096, 0.0
        %v2854 = vsel %vm2818, %v2097, 0.0
        %v2855 = vsel %vm2819, %v2098, 0.0
        %v2856 = vsel %vm2820, %v2099, 0.0
        %v2857 = vsel %vm2821, %v2100, 0.0
        %v2858 = vsel %vm2822, %v2101, 0.0
        %v2859 = vsel %vm2823, %v2102, 0.0
        %v2860 = vsel %vm2824, %v2103, 0.0
        %v2861 = vsel %vm2825, %v2104, 0.0
        %v2862 = vsel %vm2826, %v2105, 0.0
        %v2863 = vsel %vm2827, %v2106, 0.0
        %v2864 = vsel %vm2828, %v2107, 0.0
        %v2865 = vsel %vm2829, %v2108, 0.0
        %v2866 = vsel %vm2830, %v2109, 0.0
        %v2867 = vsel %vm2831, %v2110, 0.0
        %v2868 = vadd.f32 %v2832, %v2833
        %v2869 = vadd.f32 %v2868, %v2834
        %v2870 = vadd.f32 %v2869, %v2835
        %v2871 = vadd.f32 %v2870, %v2836
        %v2872 = vadd.f32 %v2871, %v2837
        %v2873 = vadd.f32 %v2872, %v2838
        %v2874 = vadd.f32 %v2873, %v2839
        %v2875 = vadd.f32 %v2874, %v2840
        %v2876 = vadd.f32 %v2875, %v2841
        %v2877 = vadd.f32 %v2876, %v2842
        %v2878 = vadd.f32 %v2877, %v2843
        %v2879 = vadd.f32 %v2878, %v2844
        %v2880 = vadd.f32 %v2879, %v2845
        %v2881 = vadd.f32 %v2880, %v2846
        %v2882 = vadd.f32 %v2881, %v2847
        %v2883 = vadd.f32 %v2882, %v2848
        %v2884 = vadd.f32 %v2883, %v2849
        %v2885 = vadd.f32 %v2884, %v2850
        %v2886 = vadd.f32 %v2885, %v2851
        %v2887 = vadd.f32 %v2886, %v2852
        %v2888 = vadd.f32 %v2887, %v2853
        %v2889 = vadd.f32 %v2888, %v2854
        %v2890 = vadd.f32 %v2889, %v2855
        %v2891 = vadd.f32 %v2890, %v2856
        %v2892 = vadd.f32 %v2891, %v2857
        %v2893 = vadd.f32 %v2892, %v2858
        %v2894 = vadd.f32 %v2893, %v2859
        %v2895 = vadd.f32 %v2894, %v2860
        %v2896 = vadd.f32 %v2895, %v2861
        %v2897 = vadd.f32 %v2896, %v2862
        %v2898 = vadd.f32 %v2897, %v2863
        %v2899 = vadd.f32 %v2898, %v2864
        %v2900 = vadd.f32 %v2899, %v2865
        %v2901 = vadd.f32 %v2900, %v2866
        %v2902 = vadd.f32 %v2901, %v2867
        %v2903 = vrot.slane %v2902, 4
        %v2904 = vadd.f32 %v2902, %v2903
        %v2905 = vrot.slane %v2904, 2
        %v2906 = vadd.f32 %v2904, %v2905
        %v2907 = vrot.slane %v2906, 1
        %v2908 = vadd.f32 %v2906, %v2907
        %v2909 = vmul.f32 %v2908, 0.00390625
        %v2910 = vmul.f32 %v2832, %v2832
        %v2911 = vmul.f32 %v2833, %v2833
        %v2912 = vmul.f32 %v2834, %v2834
        %v2913 = vmul.f32 %v2835, %v2835
        %v2914 = vmul.f32 %v2836, %v2836
        %v2915 = vmul.f32 %v2837, %v2837
        %v2916 = vmul.f32 %v2838, %v2838
        %v2917 = vmul.f32 %v2839, %v2839
        %v2918 = vmul.f32 %v2840, %v2840
        %v2919 = vmul.f32 %v2841, %v2841
        %v2920 = vmul.f32 %v2842, %v2842
        %v2921 = vmul.f32 %v2843, %v2843
        %v2922 = vmul.f32 %v2844, %v2844
        %v2923 = vmul.f32 %v2845, %v2845
        %v2924 = vmul.f32 %v2846, %v2846
        %v2925 = vmul.f32 %v2847, %v2847
        %v2926 = vmul.f32 %v2848, %v2848
        %v2927 = vmul.f32 %v2849, %v2849
        %v2928 = vmul.f32 %v2850, %v2850
        %v2929 = vmul.f32 %v2851, %v2851
        %v2930 = vmul.f32 %v2852, %v2852
        %v2931 = vmul.f32 %v2853, %v2853
        %v2932 = vmul.f32 %v2854, %v2854
        %v2933 = vmul.f32 %v2855, %v2855
        %v2934 = vmul.f32 %v2856, %v2856
        %v2935 = vmul.f32 %v2857, %v2857
        %v2936 = vmul.f32 %v2858, %v2858
        %v2937 = vmul.f32 %v2859, %v2859
        %v2938 = vmul.f32 %v2860, %v2860
        %v2939 = vmul.f32 %v2861, %v2861
        %v2940 = vmul.f32 %v2862, %v2862
        %v2941 = vmul.f32 %v2863, %v2863
        %v2942 = vmul.f32 %v2864, %v2864
        %v2943 = vmul.f32 %v2865, %v2865
        %v2944 = vmul.f32 %v2866, %v2866
        %v2945 = vmul.f32 %v2867, %v2867
        %v2946 = vadd.f32 %v2910, %v2911
        %v2947 = vadd.f32 %v2946, %v2912
        %v2948 = vadd.f32 %v2947, %v2913
        %v2949 = vadd.f32 %v2948, %v2914
        %v2950 = vadd.f32 %v2949, %v2915
        %v2951 = vadd.f32 %v2950, %v2916
        %v2952 = vadd.f32 %v2951, %v2917
        %v2953 = vadd.f32 %v2952, %v2918
        %v2954 = vadd.f32 %v2953, %v2919
        %v2955 = vadd.f32 %v2954, %v2920
        %v2956 = vadd.f32 %v2955, %v2921
        %v2957 = vadd.f32 %v2956, %v2922
        %v2958 = vadd.f32 %v2957, %v2923
        %v2959 = vadd.f32 %v2958, %v2924
        %v2960 = vadd.f32 %v2959, %v2925
        %v2961 = vadd.f32 %v2960, %v2926
        %v2962 = vadd.f32 %v2961, %v2927
        %v2963 = vadd.f32 %v2962, %v2928
        %v2964 = vadd.f32 %v2963, %v2929
        %v2965 = vadd.f32 %v2964, %v2930
        %v2966 = vadd.f32 %v2965, %v2931
        %v2967 = vadd.f32 %v2966, %v2932
        %v2968 = vadd.f32 %v2967, %v2933
        %v2969 = vadd.f32 %v2968, %v2934
        %v2970 = vadd.f32 %v2969, %v2935
        %v2971 = vadd.f32 %v2970, %v2936
        %v2972 = vadd.f32 %v2971, %v2937
        %v2973 = vadd.f32 %v2972, %v2938
        %v2974 = vadd.f32 %v2973, %v2939
        %v2975 = vadd.f32 %v2974, %v2940
        %v2976 = vadd.f32 %v2975, %v2941
        %v2977 = vadd.f32 %v2976, %v2942
        %v2978 = vadd.f32 %v2977, %v2943
        %v2979 = vadd.f32 %v2978, %v2944
        %v2980 = vadd.f32 %v2979, %v2945
        %v2981 = vrot.slane %v2980, 4
        %v2982 = vadd.f32 %v2980, %v2981
        %v2983 = vrot.slane %v2982, 2
        %v2984 = vadd.f32 %v2982, %v2983
        %v2985 = vrot.slane %v2984, 1
        %v2986 = vadd.f32 %v2984, %v2985
        %v2987 = vmul.f32 %v2986, 0.00390625
        %v2988 = vmul.f32 %v2909, %v2909
        %v2989 = vsub.f32 %v2987, %v2988
        %v2990 = vsub.f32 %v2075, %v2909
        %v2991 = vsub.f32 %v2076, %v2909
        %v2992 = vsub.f32 %v2077, %v2909
        %v2993 = vsub.f32 %v2078, %v2909
        %v2994 = vsub.f32 %v2079, %v2909
        %v2995 = vsub.f32 %v2080, %v2909
        %v2996 = vsub.f32 %v2081, %v2909
        %v2997 = vsub.f32 %v2082, %v2909
        %v2998 = vsub.f32 %v2083, %v2909
        %v2999 = vsub.f32 %v2084, %v2909
        %v3000 = vsub.f32 %v2085, %v2909
        %v3001 = vsub.f32 %v2086, %v2909
        %v3002 = vsub.f32 %v2087, %v2909
        %v3003 = vsub.f32 %v2088, %v2909
        %v3004 = vsub.f32 %v2089, %v2909
        %v3005 = vsub.f32 %v2090, %v2909
        %v3006 = vsub.f32 %v2091, %v2909
        %v3007 = vsub.f32 %v2092, %v2909
        %v3008 = vsub.f32 %v2093, %v2909
        %v3009 = vsub.f32 %v2094, %v2909
        %v3010 = vsub.f32 %v2095, %v2909
        %v3011 = vsub.f32 %v2096, %v2909
        %v3012 = vsub.f32 %v2097, %v2909
        %v3013 = vsub.f32 %v2098, %v2909
        %v3014 = vsub.f32 %v2099, %v2909
        %v3015 = vsub.f32 %v2100, %v2909
        %v3016 = vsub.f32 %v2101, %v2909
        %v3017 = vsub.f32 %v2102, %v2909
        %v3018 = vsub.f32 %v2103, %v2909
        %v3019 = vsub.f32 %v2104, %v2909
        %v3020 = vsub.f32 %v2105, %v2909
        %v3021 = vsub.f32 %v2106, %v2909
        %v3022 = vsub.f32 %v2107, %v2909
        %v3023 = vsub.f32 %v2108, %v2909
        %v3024 = vsub.f32 %v2109, %v2909
        %v3025 = vsub.f32 %v2110, %v2909
        %v3026 = vmax.f32 %v2989, 0.0
        %v3027 = vadd.f32 %v3026, 1e-05
        %v3028 = vrsqrt.pop %v3027
        %v3029 = vmul.f32 %v2990, %v3028
        %v3030 = vmul.f32 %v2991, %v3028
        %v3031 = vmul.f32 %v2992, %v3028
        %v3032 = vmul.f32 %v2993, %v3028
        %v3033 = vmul.f32 %v2994, %v3028
        %v3034 = vmul.f32 %v2995, %v3028
        %v3035 = vmul.f32 %v2996, %v3028
        %v3036 = vmul.f32 %v2997, %v3028
        %v3037 = vmul.f32 %v2998, %v3028
        %v3038 = vmul.f32 %v2999, %v3028
        %v3039 = vmul.f32 %v3000, %v3028
        %v3040 = vmul.f32 %v3001, %v3028
        %v3041 = vmul.f32 %v3002, %v3028
        %v3042 = vmul.f32 %v3003, %v3028
        %v3043 = vmul.f32 %v3004, %v3028
        %v3044 = vmul.f32 %v3005, %v3028
        %v3045 = vmul.f32 %v3006, %v3028
        %v3046 = vmul.f32 %v3007, %v3028
        %v3047 = vmul.f32 %v3008, %v3028
        %v3048 = vmul.f32 %v3009, %v3028
        %v3049 = vmul.f32 %v3010, %v3028
        %v3050 = vmul.f32 %v3011, %v3028
        %v3051 = vmul.f32 %v3012, %v3028
        %v3052 = vmul.f32 %v3013, %v3028
        %v3053 = vmul.f32 %v3014, %v3028
        %v3054 = vmul.f32 %v3015, %v3028
        %v3055 = vmul.f32 %v3016, %v3028
        %v3056 = vmul.f32 %v3017, %v3028
        %v3057 = vmul.f32 %v3018, %v3028
        %v3058 = vmul.f32 %v3019, %v3028
        %v3059 = vmul.f32 %v3020, %v3028
        %v3060 = vmul.f32 %v3021, %v3028
        %v3061 = vmul.f32 %v3022, %v3028
        %v3062 = vmul.f32 %v3023, %v3028
        %v3063 = vmul.f32 %v3024, %v3028
        %v3064 = vmul.f32 %v3025, %v3028
        %vm3065 = vcmp.ge.f32.partialorder %v3029, 0.0
        %vm3066 = vcmp.ge.f32.partialorder %v3030, 0.0
        %vm3067 = vcmp.ge.f32.partialorder %v3031, 0.0
        %vm3068 = vcmp.ge.f32.partialorder %v3032, 0.0
        %vm3069 = vcmp.ge.f32.partialorder %v3033, 0.0
        %vm3070 = vcmp.ge.f32.partialorder %v3034, 0.0
        %vm3071 = vcmp.ge.f32.partialorder %v3035, 0.0
        %vm3072 = vcmp.ge.f32.partialorder %v3036, 0.0
        %vm3073 = vcmp.ge.f32.partialorder %v3037, 0.0
        %vm3074 = vcmp.ge.f32.partialorder %v3038, 0.0
        %vm3075 = vcmp.ge.f32.partialorder %v3039, 0.0
        %vm3076 = vcmp.ge.f32.partialorder %v3040, 0.0
        %vm3077 = vcmp.ge.f32.partialorder %v3041, 0.0
        %vm3078 = vcmp.ge.f32.partialorder %v3042, 0.0
        %vm3079 = vcmp.ge.f32.partialorder %v3043, 0.0
        %vm3080 = vcmp.ge.f32.partialorder %v3044, 0.0
        %vm3081 = vcmp.ge.f32.partialorder %v3045, 0.0
        %vm3082 = vcmp.ge.f32.partialorder %v3046, 0.0
        %vm3083 = vcmp.ge.f32.partialorder %v3047, 0.0
        %vm3084 = vcmp.ge.f32.partialorder %v3048, 0.0
        %vm3085 = vcmp.ge.f32.partialorder %v3049, 0.0
        %vm3086 = vcmp.ge.f32.partialorder %v3050, 0.0
        %vm3087 = vcmp.ge.f32.partialorder %v3051, 0.0
        %vm3088 = vcmp.ge.f32.partialorder %v3052, 0.0
        %vm3089 = vcmp.ge.f32.partialorder %v3053, 0.0
        %vm3090 = vcmp.ge.f32.partialorder %v3054, 0.0
        %vm3091 = vcmp.ge.f32.partialorder %v3055, 0.0
        %vm3092 = vcmp.ge.f32.partialorder %v3056, 0.0
        %vm3093 = vcmp.ge.f32.partialorder %v3057, 0.0
        %vm3094 = vcmp.ge.f32.partialorder %v3058, 0.0
        %vm3095 = vcmp.ge.f32.partialorder %v3059, 0.0
        %vm3096 = vcmp.ge.f32.partialorder %v3060, 0.0
        %vm3097 = vcmp.ge.f32.partialorder %v3061, 0.0
        %vm3098 = vcmp.ge.f32.partialorder %v3062, 0.0
        %vm3099 = vcmp.ge.f32.partialorder %v3063, 0.0
        %vm3100 = vcmp.ge.f32.partialorder %v3064, 0.0
        %v3101 = vmul.f32 %v3029, 0.2
        %v3102 = vmul.f32 %v3030, 0.2
        %v3103 = vmul.f32 %v3031, 0.2
        %v3104 = vmul.f32 %v3032, 0.2
        %v3105 = vmul.f32 %v3033, 0.2
        %v3106 = vmul.f32 %v3034, 0.2
        %v3107 = vmul.f32 %v3035, 0.2
        %v3108 = vmul.f32 %v3036, 0.2
        %v3109 = vmul.f32 %v3037, 0.2
        %v3110 = vmul.f32 %v3038, 0.2
        %v3111 = vmul.f32 %v3039, 0.2
        %v3112 = vmul.f32 %v3040, 0.2
        %v3113 = vmul.f32 %v3041, 0.2
        %v3114 = vmul.f32 %v3042, 0.2
        %v3115 = vmul.f32 %v3043, 0.2
        %v3116 = vmul.f32 %v3044, 0.2
        %v3117 = vmul.f32 %v3045, 0.2
        %v3118 = vmul.f32 %v3046, 0.2
        %v3119 = vmul.f32 %v3047, 0.2
        %v3120 = vmul.f32 %v3048, 0.2
        %v3121 = vmul.f32 %v3049, 0.2
        %v3122 = vmul.f32 %v3050, 0.2
        %v3123 = vmul.f32 %v3051, 0.2
        %v3124 = vmul.f32 %v3052, 0.2
        %v3125 = vmul.f32 %v3053, 0.2
        %v3126 = vmul.f32 %v3054, 0.2
        %v3127 = vmul.f32 %v3055, 0.2
        %v3128 = vmul.f32 %v3056, 0.2
        %v3129 = vmul.f32 %v3057, 0.2
        %v3130 = vmul.f32 %v3058, 0.2
        %v3131 = vmul.f32 %v3059, 0.2
        %v3132 = vmul.f32 %v3060, 0.2
        %v3133 = vmul.f32 %v3061, 0.2
        %v3134 = vmul.f32 %v3062, 0.2
        %v3135 = vmul.f32 %v3063, 0.2
        %v3136 = vmul.f32 %v3064, 0.2
        %v3137 = vsel %vm3065, %v3029, %v3101
        %v3138 = vsel %vm3066, %v3030, %v3102
        %v3139 = vsel %vm3067, %v3031, %v3103
        %v3140 = vsel %vm3068, %v3032, %v3104
        %v3141 = vsel %vm3069, %v3033, %v3105
        %v3142 = vsel %vm3070, %v3034, %v3106
        %v3143 = vsel %vm3071, %v3035, %v3107
        %v3144 = vsel %vm3072, %v3036, %v3108
        %v3145 = vsel %vm3073, %v3037, %v3109
        %v3146 = vsel %vm3074, %v3038, %v3110
        %v3147 = vsel %vm3075, %v3039, %v3111
        %v3148 = vsel %vm3076, %v3040, %v3112
        %v3149 = vsel %vm3077, %v3041, %v3113
        %v3150 = vsel %vm3078, %v3042, %v3114
        %v3151 = vsel %vm3079, %v3043, %v3115
        %v3152 = vsel %vm3080, %v3044, %v3116
        %v3153 = vsel %vm3081, %v3045, %v3117
        %v3154 = vsel %vm3082, %v3046, %v3118
        %v3155 = vsel %vm3083, %v3047, %v3119
        %v3156 = vsel %vm3084, %v3048, %v3120
        %v3157 = vsel %vm3085, %v3049, %v3121
        %v3158 = vsel %vm3086, %v3050, %v3122
        %v3159 = vsel %vm3087, %v3051, %v3123
        %v3160 = vsel %vm3088, %v3052, %v3124
        %v3161 = vsel %vm3089, %v3053, %v3125
        %v3162 = vsel %vm3090, %v3054, %v3126
        %v3163 = vsel %vm3091, %v3055, %v3127
        %v3164 = vsel %vm3092, %v3056, %v3128
        %v3165 = vsel %vm3093, %v3057, %v3129
        %v3166 = vsel %vm3094, %v3058, %v3130
        %v3167 = vsel %vm3095, %v3059, %v3131
        %v3168 = vsel %vm3096, %v3060, %v3132
        %v3169 = vsel %vm3097, %v3061, %v3133
        %v3170 = vsel %vm3098, %v3062, %v3134
        %v3171 = vsel %vm3099, %v3063, %v3135
        %v3172 = vsel %vm3100, %v3064, %v3136
        %v3173 = vadd.f32 %v3137, %v1753
        %v3174 = vadd.f32 %v3138, %v1756
        %v3175 = vadd.f32 %v3139, %v1761
        %v3176 = vadd.f32 %v3140, %v1764
        %v3177 = vadd.f32 %v3141, %v1769
        %v3178 = vadd.f32 %v3142, %v1772
        %v3179 = vadd.f32 %v3143, %v1777
        %v3180 = vadd.f32 %v3144, %v1780
        %v3181 = vadd.f32 %v3145, %v1785
        %v3182 = vadd.f32 %v3146, %v1788
        %v3183 = vadd.f32 %v3147, %v1793
        %v3184 = vadd.f32 %v3148, %v1796
        %v3185 = vadd.f32 %v3149, %v1801
        %v3186 = vadd.f32 %v3150, %v1804
        %v3187 = vadd.f32 %v3151, %v1809
        %v3188 = vadd.f32 %v3152, %v1812
        %v3189 = vadd.f32 %v3153, %v1817
        %v3190 = vadd.f32 %v3154, %v1820
        %v3191 = vadd.f32 %v3155, %v1825
        %v3192 = vadd.f32 %v3156, %v1828
        %v3193 = vadd.f32 %v3157, %v1833
        %v3194 = vadd.f32 %v3158, %v1836
        %v3195 = vadd.f32 %v3159, %v1841
        %v3196 = vadd.f32 %v3160, %v1844
        %v3197 = vadd.f32 %v3161, %v1849
        %v3198 = vadd.f32 %v3162, %v1852
        %v3199 = vadd.f32 %v3163, %v1857
        %v3200 = vadd.f32 %v3164, %v1860
        %v3201 = vadd.f32 %v3165, %v1865
        %v3202 = vadd.f32 %v3166, %v1868
        %v3203 = vadd.f32 %v3167, %v1873
        %v3204 = vadd.f32 %v3168, %v1876
        %v3205 = vadd.f32 %v3169, %v1881
        %v3206 = vadd.f32 %v3170, %v1884
        %v3207 = vadd.f32 %v3171, %v1889
        %v3208 = vadd.f32 %v3172, %v1892
        %v3209 = vpack.c.bf16 %v3174, %v3173
        %v3210 = vpack.c.bf16 %v3176, %v3175
        %v3211 = vpack.c.bf16 %v3178, %v3177
        %v3212 = vpack.c.bf16 %v3180, %v3179
        %v3213 = vpack.c.bf16 %v3182, %v3181
        %v3214 = vpack.c.bf16 %v3184, %v3183
        %v3215 = vpack.c.bf16 %v3186, %v3185
        %v3216 = vpack.c.bf16 %v3188, %v3187
        %v3217 = vpack.c.bf16 %v3190, %v3189
        %v3218 = vpack.c.bf16 %v3192, %v3191
        %v3219 = vpack.c.bf16 %v3194, %v3193
        %v3220 = vpack.c.bf16 %v3196, %v3195
        %v3221 = vpack.c.bf16 %v3198, %v3197
        %v3222 = vpack.c.bf16 %v3200, %v3199
        %v3223 = vpack.c.bf16 %v3202, %v3201
        %v3224 = vpack.c.bf16 %v3204, %v3203
        %v3225 = vpack.c.bf16 %v3206, %v3205
        %v3226 = vpack.c.bf16 %v3208, %v3207
        %v3245 = vunpack.c.l.b16 %v3209
        %v3246 = vunpack.c.h.b16 %v3209
        %v3247 = vunpack.c.l.b16 %v3210
        %v3248 = vunpack.c.h.b16 %v3210
        %v3249 = vunpack.c.l.b16 %v3211
        %v3250 = vunpack.c.h.b16 %v3211
        %v3251 = vunpack.c.l.b16 %v3212
        %v3252 = vunpack.c.h.b16 %v3212
        %v3253 = vunpack.c.l.b16 %v3213
        %v3254 = vunpack.c.h.b16 %v3213
        %v3255 = vunpack.c.l.b16 %v3214
        %v3256 = vunpack.c.h.b16 %v3214
        %v3257 = vunpack.c.l.b16 %v3215
        %v3258 = vunpack.c.h.b16 %v3215
        %v3259 = vunpack.c.l.b16 %v3216
        %v3260 = vunpack.c.h.b16 %v3216
        %v3261 = vunpack.c.l.b16 %v3217
        %v3262 = vunpack.c.h.b16 %v3217
        %v3263 = vunpack.c.l.b16 %v3218
        %v3264 = vunpack.c.h.b16 %v3218
        %v3265 = vunpack.c.l.b16 %v3219
        %v3266 = vunpack.c.h.b16 %v3219
        %v3267 = vunpack.c.l.b16 %v3220
        %v3268 = vunpack.c.h.b16 %v3220
        %v3269 = vunpack.c.l.b16 %v3221
        %v3270 = vunpack.c.h.b16 %v3221
        %v3271 = vunpack.c.l.b16 %v3222
        %v3272 = vunpack.c.h.b16 %v3222
        %v3273 = vunpack.c.l.b16 %v3223
        %v3274 = vunpack.c.h.b16 %v3223
        %v3275 = vunpack.c.l.b16 %v3224
        %v3276 = vunpack.c.h.b16 %v3224
        %v3277 = vunpack.c.l.b16 %v3225
        %v3278 = vunpack.c.h.b16 %v3225
        %v3279 = vunpack.c.l.b16 %v3226
        %v3280 = vunpack.c.h.b16 %v3226
        %v3281 = vpack.c.b16 %v3245, %v3245
        %v3282 = vpack.c.b16 %v3246, %v3246
        %v3283 = vpack.c.b16 %v3247, %v3247
        %v3284 = vpack.c.b16 %v3248, %v3248
        %v3285 = vpack.c.b16 %v3249, %v3249
        %v3286 = vpack.c.b16 %v3250, %v3250
        %v3287 = vpack.c.b16 %v3251, %v3251
        %v3288 = vpack.c.b16 %v3252, %v3252
        %v3289 = vpack.c.b16 %v3253, %v3253
        %v3290 = vpack.c.b16 %v3254, %v3254
        %v3291 = vpack.c.b16 %v3255, %v3255
        %v3292 = vpack.c.b16 %v3256, %v3256
        %v3293 = vpack.c.b16 %v3257, %v3257
        %v3294 = vpack.c.b16 %v3258, %v3258
        %v3295 = vpack.c.b16 %v3259, %v3259
        %v3296 = vpack.c.b16 %v3260, %v3260
        %v3297 = vpack.c.b16 %v3261, %v3261
        %v3298 = vpack.c.b16 %v3262, %v3262
        %v3299 = vpack.c.b16 %v3263, %v3263
        %v3300 = vpack.c.b16 %v3264, %v3264
        %v3301 = vpack.c.b16 %v3265, %v3265
        %v3302 = vpack.c.b16 %v3266, %v3266
        %v3303 = vpack.c.b16 %v3267, %v3267
        %v3304 = vpack.c.b16 %v3268, %v3268
        %v3305 = vpack.c.b16 %v3269, %v3269
        %v3306 = vpack.c.b16 %v3270, %v3270
        %v3307 = vpack.c.b16 %v3271, %v3271
        %v3308 = vpack.c.b16 %v3272, %v3272
        %v3309 = vpack.c.b16 %v3273, %v3273
        %v3310 = vpack.c.b16 %v3274, %v3274
        %v3311 = vpack.c.b16 %v3275, %v3275
        %v3312 = vpack.c.b16 %v3276, %v3276
        %v3313 = vpack.c.b16 %v3277, %v3277
        %v3314 = vpack.c.b16 %v3278, %v3278
        %v3315 = vpack.c.b16 %v3279, %v3279
        %v3316 = vpack.c.b16 %v3280, %v3280
        %3353 = vst [vmem:[%s163] sm:$0xf] %v3281
        %3354 = vst [vmem:[%s163 + $0x4] sm:$0xf] %v3282
        %3355 = vst [vmem:[%s163 + $0x8] sm:$0xf] %v3283
        %3356 = vst [vmem:[%s163 + $0xc] sm:$0xf] %v3284
        %3357 = vst [vmem:[%s163 + $0x10] sm:$0xf] %v3285
        %3358 = vst [vmem:[%s163 + $0x14] sm:$0xf] %v3286
        %3359 = vst [vmem:[%s163 + $0x18] sm:$0xf] %v3287
        %3360 = vst [vmem:[%s163 + $0x1c] sm:$0xf] %v3288
        %3361 = vst [vmem:[%s163 + $0x20] sm:$0xf] %v3289
        %3362 = vst [vmem:[%s163 + $0x24] sm:$0xf] %v3290
        %3363 = vst [vmem:[%s163 + $0x28] sm:$0xf] %v3291
        %3364 = vst [vmem:[%s163 + $0x2c] sm:$0xf] %v3292
        %3365 = vst [vmem:[%s163 + $0x30] sm:$0xf] %v3293
        %3366 = vst [vmem:[%s163 + $0x34] sm:$0xf] %v3294
        %3367 = vst [vmem:[%s163 + $0x38] sm:$0xf] %v3295
        %3368 = vst [vmem:[%s163 + $0x3c] sm:$0xf] %v3296
        %3369 = vst [vmem:[%s163 + $0x40] sm:$0xf] %v3297
        %3370 = vst [vmem:[%s163 + $0x44] sm:$0xf] %v3298
        %3371 = vst [vmem:[%s163 + $0x48] sm:$0xf] %v3299
        %3372 = vst [vmem:[%s163 + $0x4c] sm:$0xf] %v3300
        %3373 = vst [vmem:[%s163 + $0x50] sm:$0xf] %v3301
        %3374 = vst [vmem:[%s163 + $0x54] sm:$0xf] %v3302
        %3375 = vst [vmem:[%s163 + $0x58] sm:$0xf] %v3303
        %3376 = vst [vmem:[%s163 + $0x5c] sm:$0xf] %v3304
        %3377 = vst [vmem:[%s163 + $0x60] sm:$0xf] %v3305
        %3378 = vst [vmem:[%s163 + $0x64] sm:$0xf] %v3306
        %3379 = vst [vmem:[%s163 + $0x68] sm:$0xf] %v3307
        %3380 = vst [vmem:[%s163 + $0x6c] sm:$0xf] %v3308
        %3381 = vst [vmem:[%s163 + $0x70] sm:$0xf] %v3309
        %3382 = vst [vmem:[%s163 + $0x74] sm:$0xf] %v3310
        %3383 = vst [vmem:[%s163 + $0x78] sm:$0xf] %v3311
        %3384 = vst [vmem:[%s163 + $0x7c] sm:$0xf] %v3312
        %3385 = vst [vmem:[%s163 + $0x80] sm:$0xf] %v3313
        %3386 = vst [vmem:[%s163 + $0x84] sm:$0xf] %v3314
        %3387 = vst [vmem:[%s163 + $0x88] sm:$0xf] %v3315
        %3388 = vst [vmem:[%s163 + $0x8c] sm:$0xf] %v3316
        %s3389 = sand.u32 %s93, 1
        %s3390 = scalar_lea.sflag [#allocation3], %s3389
        %s3391 = sand.u32 %s93, 1
        %s3392 = smul.addr %s3391, 144
        %s3393 = scalar_lea.vmem [#allocation2], %s3392
        // Predicated region
        $region33: #{tpu_custom_call.1} parent=31 // pred_check
          %p3394 = pneg %p103
        $region34: #{tpu_custom_call.1} parent=31 // pred_check_branch
          %3396 = sbr.rel (%p3394) target = $region36
        $region35: #{tpu_custom_call.1} parent=31 // pred_region
          %s3398 = ssub.s32 2304, 2304
          %3399 = vsyncadd %s3390, %s3398
          %s3400 = smul.addr %s17, 36
          %s3401 = smul.addr %s3400, 64
          %s3402 = scalar_lea.hbm %s3, %s3401
          %s3403 = sshll.u32 %s3393, 4
          %s3404 = int_to_ptr.vmem [resolvable:$true] %s3403
          %3409 = dma.vmem_to_hbm [thread:$0]  %s3404, 2304, %s3402, %s3390, 64, 64, 4
        $region36: #{tpu_custom_call.1} parent=31 // pred_fallthru
          _
      $region32: #{tpu_custom_call.1} parent=5 // pred_fallthru
        _
      %p3410 = scmp.le.s32.totalorder 2, %s12
      // Predicated region
      $region37: #{tpu_custom_call.1} parent=5 // pred_check
        %p3411 = pneg %p3410
      $region38: #{tpu_custom_call.1} parent=5 // pred_check_branch
        %3413 = sbr.rel (%p3411) target = $region40
      $region39: #{tpu_custom_call.1} parent=5 // pred_region
        %s3414 = ssub.s32 %s12, 2
        // Predicated region
        $region41: #{tpu_custom_call.1} parent=39 // pred_check
          %p3415 = pneg %p109
        $region42: #{tpu_custom_call.1} parent=39 // pred_check_branch
          %3417 = sbr.rel (%p3415) target = $region44
        $region43: #{tpu_custom_call.1} parent=39 // pred_region
          %s3418 = sand.u32 %s94, 1
          %s3419 = scalar_lea.sflag [#allocation3], %s3418
          %s3420 = sand.u32 %s94, 1
          %s3421 = smul.addr %s3420, 144
          %s3422 = scalar_lea.vmem [#allocation2], %s3421
          %3423 = dma.done %s3419, 2304
        $region44: #{tpu_custom_call.1} parent=39 // pred_fallthru
          _
      $region40: #{tpu_custom_call.1} parent=5 // pred_fallthru
        _
    $region6: #{tpu_custom_call.1} parent=1 // loop_footer
      %s16 = sadd.s32 1, %s12
    $region7: #{tpu_custom_call.1} parent=1 // loop_footer_branch
      %11 = sbr.rel target = $region3
    $region8: #{tpu_custom_call.1} parent=1 // loop_exit
      _
    %3424 = vsyncpa [#allocation3], 1
    %s3425 = scalar_lea.sflag [#allocation3], 1
    %3426 = vsyncpa %s3425, 1

</llo_original>
